<compile_context>
chip_gen: v6e
topology: v6e:2x2x1
jax: 0.10.0
libtpu: 0.0.40
codegen_flags: <defaults>
</compile_context>

<pallas_src>
import functools

import jax
import jax.numpy as jnp
from jax import lax
from jax.experimental import pallas as pl
from jax.experimental.pallas import tpu as pltpu


def _conv_bn_silu_kernel(x_ref, w_ref, scale_ref, bias_ref, o_ref, *, k):
    # x_ref:     (1, Hp, Wp, C1)  bf16 zero-padded NHWC activations (one image)
    # w_ref:     (k*k, C1, TC2)   bf16 conv weights, tap-major, C2-tile j
    # scale_ref: (1, TC2)         f32 folded BatchNorm scale
    # bias_ref:  (1, TC2)         f32 folded BatchNorm bias
    # o_ref:     (1, Ho, Wo, TC2) bf16 output tile (lane-dense: TC2 % 128 == 0)
    _, Hp, Wp, C1 = x_ref.shape
    _, Ho, Wo, TC2 = o_ref.shape

    x = x_ref[0]                       # (Hp, Wp, C1) -- single HBM read, no im2col
    w = w_ref[...]                     # (k*k, C1, TC2)

    # k*k shifted (Ho*Wo, C1) @ (C1, TC2) matmuls accumulated in f32.  The tap
    # slices / reshapes are VMEM-only copies; the kernel is HBM-bound, so the
    # shallow per-tap contraction depth costs no wall clock.
    acc = jnp.zeros((Ho * Wo, TC2), dtype=jnp.float32)
    for t in range(k * k):             # static python loop, unrolled at trace time
        ki, kj = divmod(t, k)
        tap = x[ki:ki + Ho, kj:kj + Wo, :].reshape(Ho * Wo, C1)
        acc = acc + jnp.dot(tap, w[t], preferred_element_type=jnp.float32)

    y = acc * scale_ref[...] + bias_ref[...]    # eval-mode BN folded to affine (f32)
    y = y * jax.nn.sigmoid(y)                   # SiLU(x) = x * sigmoid(x)
    o_ref[...] = y.reshape(1, Ho, Wo, TC2).astype(o_ref.dtype)   # bf16 store


def conv_bn_silu(x_nchw, weight_oihw, gamma, beta, running_mean, running_var,
                 *, k, s=1, p=None, g=1, eps=1e-5, tile_c2=256, out_layout="NCHW"):
    """Pallas implementation of Conv.forward: conv2d -> BatchNorm2d(eval) -> SiLU."""
    assert s == 1, "only stride 1 implemented"   # TODO(synk): strided conv path
    assert g == 1, "only groups=1 implemented"   # TODO(synk): grouped conv path
    if p is None:
        p = k // 2                                # autopad
    N, C1, H, W = x_nchw.shape
    C2 = weight_oihw.shape[0]
    Hp, Wp = H + 2 * p, W + 2 * p
    Ho, Wo = Hp - k + 1, Wp - k + 1
    out_dtype = x_nchw.dtype

    # --- single layout pass on the activations: NCHW -> NHWC, pad, bf16 -------
    x = jnp.transpose(x_nchw, (0, 2, 3, 1)).astype(jnp.bfloat16)
    x = jnp.pad(x, ((0, 0), (p, p), (p, p), (0, 0)))          # (N, Hp, Wp, C1)

    # --- output-channel tiling: lane-dense (multiple of 128) ------------------
    C2p = ((C2 + 127) // 128) * 128
    TC2 = min(tile_c2, C2p)
    if TC2 % 128 != 0 or C2p % TC2 != 0:
        TC2 = 128

    # --- weight repack: (C2, C1, k, k) -> (k*k, C1, C2p) bf16 -----------------
    w = jnp.transpose(weight_oihw, (2, 3, 1, 0)).reshape(k * k, C1, C2)
    w = jnp.pad(w, ((0, 0), (0, 0), (0, C2p - C2))).astype(jnp.bfloat16)

    # --- fold eval-mode BatchNorm into per-channel scale/bias (f32) -----------
    inv_std = lax.rsqrt(running_var.astype(jnp.float32) + eps)
    scale = gamma.astype(jnp.float32) * inv_std
    bias = beta.astype(jnp.float32) - running_mean.astype(jnp.float32) * scale
    scale = jnp.pad(scale, (0, C2p - C2)).reshape(1, C2p)
    bias = jnp.pad(bias, (0, C2p - C2)).reshape(1, C2p)

    grid = (C2p // TC2, N)

    # VMEM budget: double-buffered x / w / scale / bias / out blocks plus f32
    # accumulator + tap staging headroom.  Clamped to [32 MiB, 64 MiB] so real
    # layer sizes are not silently capped by the 16/32 MiB scoped defaults.
    x_blk = Hp * Wp * C1 * 2
    w_blk = k * k * C1 * TC2 * 2
    sb_blk = 2 * TC2 * 4
    o_blk = Ho * Wo * TC2 * 2
    acc_blk = Ho * Wo * TC2 * 4
    step_bytes = 2 * (x_blk + w_blk + sb_blk + o_blk) + 4 * acc_blk
    vmem_limit = int(min(64 * 1024 * 1024, max(32 * 1024 * 1024, step_bytes)))

    cost = pl.CostEstimate(
        flops=2 * N * Ho * Wo * k * k * C1 * C2p,
        transcendentals=N * Ho * Wo * C2p,
        bytes_accessed=(N * Hp * Wp * C1 * 2 + k * k * C1 * C2p * 2
                        + 2 * C2p * 4 + N * Ho * Wo * C2p * 2),
    )

    # NOTE: weight/scale/bias block indices are constant across the inner grid
    # axis, so they are only fetched once per C2 tile; for very large layers on
    # v7x (64 MiB VMEM) consider pipeline_mode=pl.Buffered(1) on those specs to
    # drop their second buffer.
    out = pl.pallas_call(
        functools.partial(_conv_bn_silu_kernel, k=k),
        out_shape=jax.ShapeDtypeStruct((N, Ho, Wo, C2p), jnp.bfloat16),
        grid=grid,
        in_specs=[
            pl.BlockSpec((1, Hp, Wp, C1), lambda j, n: (n, 0, 0, 0)),
            pl.BlockSpec((k * k, C1, TC2), lambda j, n: (0, 0, j)),
            pl.BlockSpec((1, TC2), lambda j, n: (0, j)),
            pl.BlockSpec((1, TC2), lambda j, n: (0, j)),
        ],
        out_specs=pl.BlockSpec((1, Ho, Wo, TC2), lambda j, n: (n, 0, 0, j)),
        compiler_params=pltpu.CompilerParams(
            dimension_semantics=("parallel", "parallel"),
            vmem_limit_bytes=vmem_limit,
        ),
        cost_estimate=cost,
    )(x, w, scale, bias)

    # --- drop channel padding; one fused transpose+cast (or keep NHWC) --------
    if C2p != C2:
        out = out[..., :C2]
    if out_layout == "NHWC":
        return out.astype(out_dtype)
    return jnp.transpose(out, (0, 3, 1, 2)).astype(out_dtype)


def _reference(x_nchw, weight_oihw, gamma, beta, running_mean, running_var, *, k, p, eps=1e-5):
    y = lax.conv_general_dilated(
        x_nchw, weight_oihw, window_strides=(1, 1), padding=[(p, p), (p, p)],
        dimension_numbers=("NCHW", "OIHW", "NCHW"),
        precision=lax.Precision.HIGHEST)
    g = gamma.reshape(1, -1, 1, 1)
    b = beta.reshape(1, -1, 1, 1)
    m = running_mean.reshape(1, -1, 1, 1)
    v = running_var.reshape(1, -1, 1, 1)
    y = (y - m) / jnp.sqrt(v + eps) * g + b
    return y * jax.nn.sigmoid(y)


if __name__ == "__main__":
    # Conv(c1=4, c2=8, k=3, s=1) -> autopad p=1
    c1, c2, k, p = 4, 8, 3, 1
    key = jax.random.PRNGKey(0)
    kx, kw, kg, kb, km, kv = jax.random.split(key, 6)

    x = jax.random.normal(kx, (2, c1, 16, 16), dtype=jnp.float32)
    # nn.Conv2d weight (c2, c1, k, k), bias=False; deterministic synthetic init.
    weight = 0.1 * jax.random.normal(kw, (c2, c1, k, k), dtype=jnp.float32)
    # BatchNorm2d parameters / running stats (eval-mode semantics).
    gamma = 1.0 + 0.1 * jax.random.normal(kg, (c2,), dtype=jnp.float32)
    beta = 0.1 * jax.random.normal(kb, (c2,), dtype=jnp.float32)
    running_mean = 0.1 * jax.random.normal(km, (c2,), dtype=jnp.float32)
    running_var = jax.random.uniform(kv, (c2,), dtype=jnp.float32, minval=0.5, maxval=1.5)

    conv_fn = jax.jit(functools.partial(conv_bn_silu, k=k, p=p))
    out = conv_fn(x, weight, gamma, beta, running_mean, running_var)
    out = jax.block_until_ready(out)

    # Kernel math check vs. a reference fed the same bf16-quantized activations
    # and weights (isolates the kernel from the deliberate bf16 in/out casts).
    xq = x.astype(jnp.bfloat16).astype(jnp.float32)
    wq = weight.astype(jnp.bfloat16).astype(jnp.float32)
    ref_q = _reference(xq, wq, gamma, beta, running_mean, running_var, k=k, p=p)
    # Module-level semantics vs. the full-precision reference (bf16 input and
    # output quantization bounds the difference).
    ref = _reference(x, weight, gamma, beta, running_mean, running_var, k=k, p=p)

    assert out.shape == ref.shape == (2, c2, 16, 16)
    assert jnp.allclose(out, ref_q, atol=2e-2, rtol=2e-2), float(jnp.max(jnp.abs(out - ref_q)))
    assert jnp.allclose(out, ref, atol=5e-2, rtol=5e-2), float(jnp.max(jnp.abs(out - ref)))

    print("KERNEL_OK")
</pallas_src>

<mosaic_0001>
module attributes {stable_mosaic.version = 11 : i64} {
  func.func @_conv_bn_silu_kernel(%arg0: i32, %arg1: i32, %arg2: memref<1x18x18x4xbf16, #tpu.memory_space<vmem>>, %arg3: memref<9x4x128xbf16, #tpu.memory_space<vmem>>, %arg4: memref<1x128xf32, #tpu.memory_space<vmem>>, %arg5: memref<1x128xf32, #tpu.memory_space<vmem>>, %arg6: memref<1x16x16x128xbf16, #tpu.memory_space<vmem>>) attributes {dimension_semantics = [#tpu.dimension_semantics<parallel>, #tpu.dimension_semantics<parallel>], iteration_bounds = array<i64: 1, 2>, scalar_prefetch = 0 : i64, scratch_operands = 0 : i64, tpu.core_type = #tpu.core_type<tc>, window_params = [{transform_indices = @transform_0, window_bounds = array<i64: 1, 18, 18, 4>}, {transform_indices = @transform_1, window_bounds = array<i64: 9, 4, 128>}, {transform_indices = @transform_2, window_bounds = array<i64: 1, 128>}, {transform_indices = @transform_3, window_bounds = array<i64: 1, 128>}, {transform_indices = @transform_4, window_bounds = array<i64: 1, 16, 16, 128>}]} {
    %c0 = arith.constant 0 : index
    %c0_0 = arith.constant 0 : index
    %c0_1 = arith.constant 0 : index
    %c0_2 = arith.constant 0 : index
    %0 = vector.load %arg2[%c0, %c0_0, %c0_1, %c0_2] : memref<1x18x18x4xbf16, #tpu.memory_space<vmem>>, vector<1x18x18x4xbf16>
    %1 = vector.shape_cast %0 : vector<1x18x18x4xbf16> to vector<18x18x4xbf16>
    %c0_3 = arith.constant 0 : index
    %c0_4 = arith.constant 0 : index
    %c0_5 = arith.constant 0 : index
    %2 = vector.load %arg3[%c0_3, %c0_4, %c0_5] : memref<9x4x128xbf16, #tpu.memory_space<vmem>>, vector<9x4x128xbf16>
    %cst = arith.constant 0.000000e+00 : f32
    %3 = vector.broadcast %cst : f32 to vector<256x128xf32>
    %4 = vector.extract_strided_slice %1 {offsets = [0, 0, 0], sizes = [16, 16, 4], strides = [1, 1, 1]} : vector<18x18x4xbf16> to vector<16x16x4xbf16>
    %5 = vector.shape_cast %4 : vector<16x16x4xbf16> to vector<256x4xbf16>
    %6 = vector.extract_strided_slice %2 {offsets = [0, 0, 0], sizes = [1, 4, 128], strides = [1, 1, 1]} : vector<9x4x128xbf16> to vector<1x4x128xbf16>
    %7 = vector.shape_cast %6 : vector<1x4x128xbf16> to vector<4x128xbf16>
    %cst_6 = arith.constant dense<0.000000e+00> : vector<256x128xf32>
    %8 = tpu.matmul %5, %7, %cst_6 {dimension_numbers = #tpu.dot_dimension_numbers<[1], [0], [0], [1], [0, 0, 1, 1], [], []>} : vector<256x4xbf16>, vector<4x128xbf16>, vector<256x128xf32> -> vector<256x128xf32>
    %9 = arith.addf %3, %8 : vector<256x128xf32>
    %10 = vector.extract_strided_slice %1 {offsets = [0, 1, 0], sizes = [16, 16, 4], strides = [1, 1, 1]} : vector<18x18x4xbf16> to vector<16x16x4xbf16>
    %11 = vector.shape_cast %10 : vector<16x16x4xbf16> to vector<256x4xbf16>
    %12 = vector.extract_strided_slice %2 {offsets = [1, 0, 0], sizes = [1, 4, 128], strides = [1, 1, 1]} : vector<9x4x128xbf16> to vector<1x4x128xbf16>
    %13 = vector.shape_cast %12 : vector<1x4x128xbf16> to vector<4x128xbf16>
    %cst_7 = arith.constant dense<0.000000e+00> : vector<256x128xf32>
    %14 = tpu.matmul %11, %13, %cst_7 {dimension_numbers = #tpu.dot_dimension_numbers<[1], [0], [0], [1], [0, 0, 1, 1], [], []>} : vector<256x4xbf16>, vector<4x128xbf16>, vector<256x128xf32> -> vector<256x128xf32>
    %15 = arith.addf %9, %14 : vector<256x128xf32>
    %16 = vector.extract_strided_slice %1 {offsets = [0, 2, 0], sizes = [16, 16, 4], strides = [1, 1, 1]} : vector<18x18x4xbf16> to vector<16x16x4xbf16>
    %17 = vector.shape_cast %16 : vector<16x16x4xbf16> to vector<256x4xbf16>
    %18 = vector.extract_strided_slice %2 {offsets = [2, 0, 0], sizes = [1, 4, 128], strides = [1, 1, 1]} : vector<9x4x128xbf16> to vector<1x4x128xbf16>
    %19 = vector.shape_cast %18 : vector<1x4x128xbf16> to vector<4x128xbf16>
    %cst_8 = arith.constant dense<0.000000e+00> : vector<256x128xf32>
    %20 = tpu.matmul %17, %19, %cst_8 {dimension_numbers = #tpu.dot_dimension_numbers<[1], [0], [0], [1], [0, 0, 1, 1], [], []>} : vector<256x4xbf16>, vector<4x128xbf16>, vector<256x128xf32> -> vector<256x128xf32>
    %21 = arith.addf %15, %20 : vector<256x128xf32>
    %22 = vector.extract_strided_slice %1 {offsets = [1, 0, 0], sizes = [16, 16, 4], strides = [1, 1, 1]} : vector<18x18x4xbf16> to vector<16x16x4xbf16>
    %23 = vector.shape_cast %22 : vector<16x16x4xbf16> to vector<256x4xbf16>
    %24 = vector.extract_strided_slice %2 {offsets = [3, 0, 0], sizes = [1, 4, 128], strides = [1, 1, 1]} : vector<9x4x128xbf16> to vector<1x4x128xbf16>
    %25 = vector.shape_cast %24 : vector<1x4x128xbf16> to vector<4x128xbf16>
    %cst_9 = arith.constant dense<0.000000e+00> : vector<256x128xf32>
    %26 = tpu.matmul %23, %25, %cst_9 {dimension_numbers = #tpu.dot_dimension_numbers<[1], [0], [0], [1], [0, 0, 1, 1], [], []>} : vector<256x4xbf16>, vector<4x128xbf16>, vector<256x128xf32> -> vector<256x128xf32>
    %27 = arith.addf %21, %26 : vector<256x128xf32>
    %28 = vector.extract_strided_slice %1 {offsets = [1, 1, 0], sizes = [16, 16, 4], strides = [1, 1, 1]} : vector<18x18x4xbf16> to vector<16x16x4xbf16>
    %29 = vector.shape_cast %28 : vector<16x16x4xbf16> to vector<256x4xbf16>
    %30 = vector.extract_strided_slice %2 {offsets = [4, 0, 0], sizes = [1, 4, 128], strides = [1, 1, 1]} : vector<9x4x128xbf16> to vector<1x4x128xbf16>
    %31 = vector.shape_cast %30 : vector<1x4x128xbf16> to vector<4x128xbf16>
    %cst_10 = arith.constant dense<0.000000e+00> : vector<256x128xf32>
    %32 = tpu.matmul %29, %31, %cst_10 {dimension_numbers = #tpu.dot_dimension_numbers<[1], [0], [0], [1], [0, 0, 1, 1], [], []>} : vector<256x4xbf16>, vector<4x128xbf16>, vector<256x128xf32> -> vector<256x128xf32>
    %33 = arith.addf %27, %32 : vector<256x128xf32>
    %34 = vector.extract_strided_slice %1 {offsets = [1, 2, 0], sizes = [16, 16, 4], strides = [1, 1, 1]} : vector<18x18x4xbf16> to vector<16x16x4xbf16>
    %35 = vector.shape_cast %34 : vector<16x16x4xbf16> to vector<256x4xbf16>
    %36 = vector.extract_strided_slice %2 {offsets = [5, 0, 0], sizes = [1, 4, 128], strides = [1, 1, 1]} : vector<9x4x128xbf16> to vector<1x4x128xbf16>
    %37 = vector.shape_cast %36 : vector<1x4x128xbf16> to vector<4x128xbf16>
    %cst_11 = arith.constant dense<0.000000e+00> : vector<256x128xf32>
    %38 = tpu.matmul %35, %37, %cst_11 {dimension_numbers = #tpu.dot_dimension_numbers<[1], [0], [0], [1], [0, 0, 1, 1], [], []>} : vector<256x4xbf16>, vector<4x128xbf16>, vector<256x128xf32> -> vector<256x128xf32>
    %39 = arith.addf %33, %38 : vector<256x128xf32>
    %40 = vector.extract_strided_slice %1 {offsets = [2, 0, 0], sizes = [16, 16, 4], strides = [1, 1, 1]} : vector<18x18x4xbf16> to vector<16x16x4xbf16>
    %41 = vector.shape_cast %40 : vector<16x16x4xbf16> to vector<256x4xbf16>
    %42 = vector.extract_strided_slice %2 {offsets = [6, 0, 0], sizes = [1, 4, 128], strides = [1, 1, 1]} : vector<9x4x128xbf16> to vector<1x4x128xbf16>
    %43 = vector.shape_cast %42 : vector<1x4x128xbf16> to vector<4x128xbf16>
    %cst_12 = arith.constant dense<0.000000e+00> : vector<256x128xf32>
    %44 = tpu.matmul %41, %43, %cst_12 {dimension_numbers = #tpu.dot_dimension_numbers<[1], [0], [0], [1], [0, 0, 1, 1], [], []>} : vector<256x4xbf16>, vector<4x128xbf16>, vector<256x128xf32> -> vector<256x128xf32>
    %45 = arith.addf %39, %44 : vector<256x128xf32>
    %46 = vector.extract_strided_slice %1 {offsets = [2, 1, 0], sizes = [16, 16, 4], strides = [1, 1, 1]} : vector<18x18x4xbf16> to vector<16x16x4xbf16>
    %47 = vector.shape_cast %46 : vector<16x16x4xbf16> to vector<256x4xbf16>
    %48 = vector.extract_strided_slice %2 {offsets = [7, 0, 0], sizes = [1, 4, 128], strides = [1, 1, 1]} : vector<9x4x128xbf16> to vector<1x4x128xbf16>
    %49 = vector.shape_cast %48 : vector<1x4x128xbf16> to vector<4x128xbf16>
    %cst_13 = arith.constant dense<0.000000e+00> : vector<256x128xf32>
    %50 = tpu.matmul %47, %49, %cst_13 {dimension_numbers = #tpu.dot_dimension_numbers<[1], [0], [0], [1], [0, 0, 1, 1], [], []>} : vector<256x4xbf16>, vector<4x128xbf16>, vector<256x128xf32> -> vector<256x128xf32>
    %51 = arith.addf %45, %50 : vector<256x128xf32>
    %52 = vector.extract_strided_slice %1 {offsets = [2, 2, 0], sizes = [16, 16, 4], strides = [1, 1, 1]} : vector<18x18x4xbf16> to vector<16x16x4xbf16>
    %53 = vector.shape_cast %52 : vector<16x16x4xbf16> to vector<256x4xbf16>
    %54 = vector.extract_strided_slice %2 {offsets = [8, 0, 0], sizes = [1, 4, 128], strides = [1, 1, 1]} : vector<9x4x128xbf16> to vector<1x4x128xbf16>
    %55 = vector.shape_cast %54 : vector<1x4x128xbf16> to vector<4x128xbf16>
    %cst_14 = arith.constant dense<0.000000e+00> : vector<256x128xf32>
    %56 = tpu.matmul %53, %55, %cst_14 {dimension_numbers = #tpu.dot_dimension_numbers<[1], [0], [0], [1], [0, 0, 1, 1], [], []>} : vector<256x4xbf16>, vector<4x128xbf16>, vector<256x128xf32> -> vector<256x128xf32>
    %57 = arith.addf %51, %56 : vector<256x128xf32>
    %c0_15 = arith.constant 0 : index
    %c0_16 = arith.constant 0 : index
    %58 = vector.load %arg4[%c0_15, %c0_16] : memref<1x128xf32, #tpu.memory_space<vmem>>, vector<1x128xf32>
    %59 = vector.broadcast %58 : vector<1x128xf32> to vector<256x128xf32>
    %60 = arith.mulf %57, %59 : vector<256x128xf32>
    %c0_17 = arith.constant 0 : index
    %c0_18 = arith.constant 0 : index
    %61 = vector.load %arg5[%c0_17, %c0_18] : memref<1x128xf32, #tpu.memory_space<vmem>>, vector<1x128xf32>
    %62 = vector.broadcast %61 : vector<1x128xf32> to vector<256x128xf32>
    %63 = arith.addf %60, %62 : vector<256x128xf32>
    %64 = arith.negf %63 : vector<256x128xf32>
    %65 = math.exp %64 : vector<256x128xf32>
    %cst_19 = arith.constant 1.000000e+00 : f32
    %66 = vector.broadcast %cst_19 : f32 to vector<256x128xf32>
    %67 = arith.addf %66, %65 : vector<256x128xf32>
    %68 = arith.divf %66, %67 : vector<256x128xf32>
    %69 = arith.mulf %63, %68 : vector<256x128xf32>
    %70 = vector.shape_cast %69 : vector<256x128xf32> to vector<1x16x16x128xf32>
    %71 = arith.truncf %70 : vector<1x16x16x128xf32> to vector<1x16x16x128xbf16>
    %c0_20 = arith.constant 0 : index
    %c0_21 = arith.constant 0 : index
    %c0_22 = arith.constant 0 : index
    %c0_23 = arith.constant 0 : index
    %72 = vector.load %arg6[%c0_20, %c0_21, %c0_22, %c0_23] : memref<1x16x16x128xbf16, #tpu.memory_space<vmem>>, vector<1x16x16x128xbf16>
    tpu.vector_store %arg6[%c0_20, %c0_21, %c0_22, %c0_23], %71 {strides = array<i32>} : memref<1x16x16x128xbf16, #tpu.memory_space<vmem>>, vector<1x16x16x128xbf16>,
    return
  }
  func.func @transform_0(%arg0: i32, %arg1: i32) -> (i32, i32, i32, i32) {
    %c0_i32 = arith.constant 0 : i32
    %c0_i32_0 = arith.constant 0 : i32
    %c0_i32_1 = arith.constant 0 : i32
    %c0_i32_2 = arith.constant 0 : i32
    return %arg1, %c0_i32, %c0_i32_0, %c0_i32_1 : i32, i32, i32, i32
  }
  func.func @transform_1(%arg0: i32, %arg1: i32) -> (i32, i32, i32) {
    %c0_i32 = arith.constant 0 : i32
    %c0_i32_0 = arith.constant 0 : i32
    %c0_i32_1 = arith.constant 0 : i32
    return %c0_i32, %c0_i32_0, %arg0 : i32, i32, i32
  }
  func.func @transform_2(%arg0: i32, %arg1: i32) -> (i32, i32) {
    %c0_i32 = arith.constant 0 : i32
    %c0_i32_0 = arith.constant 0 : i32
    return %c0_i32, %arg0 : i32, i32
  }
  func.func @transform_3(%arg0: i32, %arg1: i32) -> (i32, i32) {
    %c0_i32 = arith.constant 0 : i32
    %c0_i32_0 = arith.constant 0 : i32
    return %c0_i32, %arg0 : i32, i32
  }
  func.func @transform_4(%arg0: i32, %arg1: i32) -> (i32, i32, i32, i32) {
    %c0_i32 = arith.constant 0 : i32
    %c0_i32_0 = arith.constant 0 : i32
    %c0_i32_1 = arith.constant 0 : i32
    return %arg1, %c0_i32, %c0_i32_0, %arg0 : i32, i32, i32, i32
  }
}

</mosaic_0001>

<llo_original>
// kernel: conv_bn_silu.1
$region0: #{conv_bn_silu.1}
  #allocation0 [shape = 'u32[]', space=smem, size = 0x4, offset = 0x4, fixed_abs, tag = 'smem constant byte address 0x4 - core index']
  #allocation1 [shape = 'u32[144,128]{1,0:T(1,128)}', space=vmem, size = 0x12000, scoped, tag = 'internal scratch']
  %s0 = inlined_call_operand.vmem [shape: bf16[2,18,18,4], index: 0, kind: input, shape index: {}]
  %s1 = inlined_call_operand.vmem [shape: bf16[9,4,128], index: 1, kind: input, shape index: {}]
  %s2 = inlined_call_operand.vmem [shape: f32[1,128], index: 2, kind: input, shape index: {}]
  %s3 = inlined_call_operand.vmem [shape: f32[1,128], index: 3, kind: input, shape index: {}]
  %s4 = inlined_call_operand.vmem [shape: bf16[2,16,16,128], index: 4, kind: output, shape index: {}]
  %s5 = sld [smem:[#allocation0]]
  $region49: #{conv_bn_silu.1} parent=0
    _
  %s7 = ssub.s32 1, %s5
  %s8 = scalar_select 0, %s7, %s5
  loop: start=0, step=1, limit=4
  $region2: #{conv_bn_silu.1} parent=0 // loop_pre_header
    _
  $region3: #{conv_bn_silu.1} parent=0 // loop_header
    %s10 = sphi 0, %s14
    %p11 = scmp.ge.s32.totalorder %s10, 4
    %s17 = sphi 0, %s29
    %s18 = sphi 0, %s25
    %s19 = sphi 0, %s17
    %s20 = sphi 0, %s18
    %s21 = sphi 0, %s19
    %s22 = sphi 0, %s20
    %s32 = sphi 0, %s34
    %s35 = sphi 0, %s32
    %s36 = sphi 0, %s35
    %s52 = sphi 0, %s36
    %s58 = sphi 0, %s60
    %s61 = sphi 0, %s58
    %s62 = sphi 0, %s61
    %s78 = sphi 0, %s62
    %s84 = sphi 0, %s86
    %s87 = sphi 0, %s84
    %s88 = sphi 0, %s87
    %s104 = sphi 0, %s88
    %s110 = sphi 0, %s112
    %s113 = sphi 0, %s110
    %s114 = sphi 0, %s113
    %s130 = sphi 0, %s114
    %s138 = sphi 0, %s140
    %s141 = sphi 0, %s138
    %s142 = sphi 0, %s141
    %s158 = sphi 0, %s142
  $region4: #{conv_bn_silu.1} parent=0 // loop_header_branch
    %13 = sbr.rel (%p11) target = $region8
  $region5: #{conv_bn_silu.1} parent=0 // loop_body
    %s15 = ssub.s32 %s10, 1
    %s16 = ssub.s32 %s10, 2
    %s23 = sadd.s32 1, %s18
    %p24 = scmp.ge.s32.totalorder %s23, 2
    %s25 = scalar_select %p24, 0, %s23
    %s26 = sadd.s32 1, %s17
    %s27 = scalar_select %p24, %s26, %s17
    %p28 = scmp.ge.s32.totalorder %s27, 1
    %s29 = scalar_select %p28, 0, %s27
    %s30 = ssub.s32 %s18, %s25
    %p31 = scmp.eq.s32.totalorder %s30, 0
    %s33 = sadd.s32 %s32, 1
    %s34 = scalar_select %p31, %s32, %s33
    %p37 = pneg %p31
    %p38 = scmp.eq.s32.totalorder %s10, 1
    %p39 = por %p37, %p38
    %p40 = scmp.ne.s32.totalorder %s32, %s35
    %p41 = scmp.eq.s32.totalorder %s10, 0
    %p42 = por %p40, %p41
    %p43 = scmp.ne.s32.totalorder %s32, %s35
    %p44 = scmp.eq.s32.totalorder %s15, 1
    %p45 = por %p43, %p44
    %p46 = scmp.ne.s32.totalorder %s35, %s36
    %p47 = scmp.eq.s32.totalorder %s15, 0
    %p48 = por %p46, %p47
    %p49 = scmp.ne.s32.totalorder %s35, %s36
    %p50 = scmp.eq.s32.totalorder %s16, 1
    %p51 = por %p49, %p50
    %p53 = scmp.ne.s32.totalorder %s36, %s52
    %p54 = scmp.eq.s32.totalorder %s16, 0
    %p55 = por %p53, %p54
    %s56 = ssub.s32 %s17, %s29
    %p57 = scmp.eq.s32.totalorder %s56, 0
    %s59 = sadd.s32 %s58, 1
    %s60 = scalar_select %p57, %s58, %s59
    %p63 = pneg %p57
    %p64 = scmp.eq.s32.totalorder %s10, 1
    %p65 = por %p63, %p64
    %p66 = scmp.ne.s32.totalorder %s58, %s61
    %p67 = scmp.eq.s32.totalorder %s10, 0
    %p68 = por %p66, %p67
    %p69 = scmp.ne.s32.totalorder %s58, %s61
    %p70 = scmp.eq.s32.totalorder %s15, 1
    %p71 = por %p69, %p70
    %p72 = scmp.ne.s32.totalorder %s61, %s62
    %p73 = scmp.eq.s32.totalorder %s15, 0
    %p74 = por %p72, %p73
    %p75 = scmp.ne.s32.totalorder %s61, %s62
    %p76 = scmp.eq.s32.totalorder %s16, 1
    %p77 = por %p75, %p76
    %p79 = scmp.ne.s32.totalorder %s62, %s78
    %p80 = scmp.eq.s32.totalorder %s16, 0
    %p81 = por %p79, %p80
    %s82 = ssub.s32 %s17, %s29
    %p83 = scmp.eq.s32.totalorder %s82, 0
    %s85 = sadd.s32 %s84, 1
    %s86 = scalar_select %p83, %s84, %s85
    %p89 = pneg %p83
    %p90 = scmp.eq.s32.totalorder %s10, 1
    %p91 = por %p89, %p90
    %p92 = scmp.ne.s32.totalorder %s84, %s87
    %p93 = scmp.eq.s32.totalorder %s10, 0
    %p94 = por %p92, %p93
    %p95 = scmp.ne.s32.totalorder %s84, %s87
    %p96 = scmp.eq.s32.totalorder %s15, 1
    %p97 = por %p95, %p96
    %p98 = scmp.ne.s32.totalorder %s87, %s88
    %p99 = scmp.eq.s32.totalorder %s15, 0
    %p100 = por %p98, %p99
    %p101 = scmp.ne.s32.totalorder %s87, %s88
    %p102 = scmp.eq.s32.totalorder %s16, 1
    %p103 = por %p101, %p102
    %p105 = scmp.ne.s32.totalorder %s88, %s104
    %p106 = scmp.eq.s32.totalorder %s16, 0
    %p107 = por %p105, %p106
    %s108 = ssub.s32 %s17, %s29
    %p109 = scmp.eq.s32.totalorder %s108, 0
    %s111 = sadd.s32 %s110, 1
    %s112 = scalar_select %p109, %s110, %s111
    %p115 = pneg %p109
    %p116 = scmp.eq.s32.totalorder %s10, 1
    %p117 = por %p115, %p116
    %p118 = scmp.ne.s32.totalorder %s110, %s113
    %p119 = scmp.eq.s32.totalorder %s10, 0
    %p120 = por %p118, %p119
    %p121 = scmp.ne.s32.totalorder %s110, %s113
    %p122 = scmp.eq.s32.totalorder %s15, 1
    %p123 = por %p121, %p122
    %p124 = scmp.ne.s32.totalorder %s113, %s114
    %p125 = scmp.eq.s32.totalorder %s15, 0
    %p126 = por %p124, %p125
    %p127 = scmp.ne.s32.totalorder %s113, %s114
    %p128 = scmp.eq.s32.totalorder %s16, 1
    %p129 = por %p127, %p128
    %p131 = scmp.ne.s32.totalorder %s114, %s130
    %p132 = scmp.eq.s32.totalorder %s16, 0
    %p133 = por %p131, %p132
    %s134 = ssub.s32 %s18, %s25
    %s135 = ssub.s32 %s17, %s29
    %s136 = sor.u32 %s134, %s135
    %p137 = scmp.eq.s32.totalorder %s136, 0
    %s139 = sadd.s32 %s138, 1
    %s140 = scalar_select %p137, %s138, %s139
    %p143 = pneg %p137
    %p144 = scmp.eq.s32.totalorder %s10, 1
    %p145 = por %p143, %p144
    %p146 = scmp.ne.s32.totalorder %s138, %s141
    %p147 = scmp.eq.s32.totalorder %s10, 0
    %p148 = por %p146, %p147
    %p149 = scmp.ne.s32.totalorder %s138, %s141
    %p150 = scmp.eq.s32.totalorder %s15, 1
    %p151 = por %p149, %p150
    %p152 = scmp.ne.s32.totalorder %s141, %s142
    %p153 = scmp.eq.s32.totalorder %s15, 0
    %p154 = por %p152, %p153
    %p155 = scmp.ne.s32.totalorder %s141, %s142
    %p156 = scmp.eq.s32.totalorder %s16, 1
    %p157 = por %p155, %p156
    %p159 = scmp.ne.s32.totalorder %s142, %s158
    %p160 = scmp.eq.s32.totalorder %s16, 0
    %p161 = por %p159, %p160
    %p162 = scmp.le.s32.totalorder 1, %s10
    %p163 = scmp.lt.s32.totalorder %s10, 3
    %p164 = pnand %p162, %p163
    %p165 = pneg %p164
    // Predicated region
    $region9: #{conv_bn_silu.1} parent=5 // pred_check
      _
    $region10: #{conv_bn_silu.1} parent=5 // pred_check_branch
      %167 = sbr.rel (%p164) target = $region12
    $region11: #{conv_bn_silu.1} parent=5 // pred_region
      %s168 = ssub.s32 %s10, 1
      // Predicated region
      $region13: #{conv_bn_silu.1} parent=11 // pred_check
        %p169 = pneg %p74
      $region14: #{conv_bn_silu.1} parent=11 // pred_check_branch
        %171 = sbr.rel (%p169) target = $region16
      $region15: #{conv_bn_silu.1} parent=11 // pred_region
        %p172 = scmp.lt.s32.totalorder %s19, 0
        %s173 = scalar_select %p172, %s19, 0
        %s174 = smul.addr %s173, 2
        %s175 = scalar_lea.vmem %s1, %s174
      $region16: #{conv_bn_silu.1} parent=11 // pred_fallthru
        _
      // Predicated region
      $region17: #{conv_bn_silu.1} parent=11 // pred_check
        %p176 = pneg %p100
      $region18: #{conv_bn_silu.1} parent=11 // pred_check_branch
        %178 = sbr.rel (%p176) target = $region20
      $region19: #{conv_bn_silu.1} parent=11 // pred_region
        %p179 = scmp.lt.s32.totalorder %s19, 0
        %s180 = scalar_select %p179, %s19, 0
        %s181 = scalar_lea.vmem %s2, %s180
      $region20: #{conv_bn_silu.1} parent=11 // pred_fallthru
        _
      // Predicated region
      $region21: #{conv_bn_silu.1} parent=11 // pred_check
        %p182 = pneg %p126
      $region22: #{conv_bn_silu.1} parent=11 // pred_check_branch
        %184 = sbr.rel (%p182) target = $region24
      $region23: #{conv_bn_silu.1} parent=11 // pred_region
        %p185 = scmp.lt.s32.totalorder %s19, 0
        %s186 = scalar_select %p185, %s19, 0
        %s187 = scalar_lea.vmem %s3, %s186
      $region24: #{conv_bn_silu.1} parent=11 // pred_fallthru
        _
    $region12: #{conv_bn_silu.1} parent=5 // pred_fallthru
      _
    %p188 = scmp.lt.s32.totalorder %s10, 2
    // Predicated region
    $region25: #{conv_bn_silu.1} parent=5 // pred_check
      %p189 = pneg %p188
    $region26: #{conv_bn_silu.1} parent=5 // pred_check_branch
      %191 = sbr.rel (%p189) target = $region28
    $region27: #{conv_bn_silu.1} parent=5 // pred_region
      // Predicated region
      $region29: #{conv_bn_silu.1} parent=27 // pred_check
        %p192 = pneg %p42
      $region30: #{conv_bn_silu.1} parent=27 // pred_check_branch
        %194 = sbr.rel (%p192) target = $region32
      $region31: #{conv_bn_silu.1} parent=27 // pred_region
        %p195 = scmp.lt.s32.totalorder %s18, 1
        %s196 = scalar_select %p195, %s18, 1
        %s197 = smul.addr %s196, 54
        %s198 = smul.addr %s197, 4
        %s199 = scalar_lea.vmem %s0, %s198
      $region32: #{conv_bn_silu.1} parent=27 // pred_fallthru
        _
    $region28: #{conv_bn_silu.1} parent=5 // pred_fallthru
      _
    %p200 = scmp.le.s32.totalorder 1, %s10
    %p201 = scmp.lt.s32.totalorder %s10, 3
    %p202 = pnand %p200, %p201
    %p203 = pneg %p202
    // Predicated region
    $region33: #{conv_bn_silu.1} parent=5 // pred_check
      _
    $region34: #{conv_bn_silu.1} parent=5 // pred_check_branch
      %205 = sbr.rel (%p202) target = $region36
    $region35: #{conv_bn_silu.1} parent=5 // pred_region
      %s206 = ssub.s32 %s10, 1
      %p207 = scmp.lt.s32.totalorder %s20, 1
      %s208 = scalar_select %p207, %s20, 1
      %s209 = smul.addr %s208, 54
      %s210 = smul.addr %s209, 4
      %s211 = scalar_lea.vmem %s0, %s210
      %p212 = pneg %p48
      %p213 = pneg %p45
      %p214 = scmp.lt.s32.totalorder %s19, 0
      %s215 = scalar_select %p214, %s19, 0
      %s216 = smul.addr %s215, 2
      %s217 = scalar_lea.vmem %s1, %s216
      %p218 = pneg %p74
      %p219 = pneg %p71
      %p220 = scmp.lt.s32.totalorder %s19, 0
      %s221 = scalar_select %p220, %s19, 0
      %s222 = scalar_lea.vmem %s2, %s221
      %p223 = pneg %p100
      %p224 = pneg %p97
      %p225 = scmp.lt.s32.totalorder %s19, 0
      %s226 = scalar_select %p225, %s19, 0
      %s227 = scalar_lea.vmem %s3, %s226
      %p228 = pneg %p126
      %p229 = pneg %p123
      %p230 = pneg %p154
      %p231 = pneg %p151
      %p232 = scmp.lt.s32.totalorder %s20, 1
      %s233 = scalar_select %p232, %s20, 1
      %p234 = scmp.lt.s32.totalorder %s19, 0
      %s235 = scalar_select %p234, %s19, 0
      %s236 = smul.addr %s233, 32
      %s237 = sadd.s32 %s235, %s236
      %s238 = smul.addr %s237, 4
      %s239 = scalar_lea.vmem %s4, %s238
      %p240 = scmp.lt.s32.totalorder %s20, 1
      %s241 = scalar_select %p240, %s20, 1
      %s242 = smul.addr %s241, 54
      %s243 = smul.addr %s242, 4
      %s244 = scalar_lea.vmem %s0, %s243
      %p245 = scmp.lt.s32.totalorder %s19, 0
      %s246 = scalar_select %p245, %s19, 0
      %s247 = smul.addr %s246, 2
      %s248 = scalar_lea.vmem %s1, %s247
      %p249 = scmp.lt.s32.totalorder %s19, 0
      %s250 = scalar_select %p249, %s19, 0
      %s251 = scalar_lea.vmem %s2, %s250
      %p252 = scmp.lt.s32.totalorder %s19, 0
      %s253 = scalar_select %p252, %s19, 0
      %s254 = scalar_lea.vmem %s3, %s253
      %p255 = scmp.lt.s32.totalorder %s20, 1
      %s256 = scalar_select %p255, %s20, 1
      %p257 = scmp.lt.s32.totalorder %s19, 0
      %s258 = scalar_select %p257, %s19, 0
      %s259 = smul.addr %s256, 32
      %s260 = sadd.s32 %s258, %s259
      %s261 = smul.addr %s260, 4
      %s262 = scalar_lea.vmem %s4, %s261
      %v264 = vld [vmem:[%s244] sm:$0xf]
      %v265 = vld [vmem:[%s244 + $0x4] sm:$0xf]
      %v266 = vld [vmem:[%s244 + $0x8] sm:$0x1]
      %v267 = vld [vmem:[%s244 + $0xc] sm:$0xf]
      %v268 = vld [vmem:[%s244 + $0x10] sm:$0xf]
      %v269 = vld [vmem:[%s244 + $0x14] sm:$0x1]
      %v270 = vld [vmem:[%s244 + $0x18] sm:$0xf]
      %v271 = vld [vmem:[%s244 + $0x1c] sm:$0xf]
      %v272 = vld [vmem:[%s244 + $0x20] sm:$0x1]
      %v273 = vld [vmem:[%s244 + $0x24] sm:$0xf]
      %v274 = vld [vmem:[%s244 + $0x28] sm:$0xf]
      %v275 = vld [vmem:[%s244 + $0x2c] sm:$0x1]
      %v276 = vld [vmem:[%s244 + $0x30] sm:$0xf]
      %v277 = vld [vmem:[%s244 + $0x34] sm:$0xf]
      %v278 = vld [vmem:[%s244 + $0x38] sm:$0x1]
      %v279 = vld [vmem:[%s244 + $0x3c] sm:$0xf]
      %v280 = vld [vmem:[%s244 + $0x40] sm:$0xf]
      %v281 = vld [vmem:[%s244 + $0x44] sm:$0x1]
      %v282 = vld [vmem:[%s244 + $0x48] sm:$0xf]
      %v283 = vld [vmem:[%s244 + $0x4c] sm:$0xf]
      %v284 = vld [vmem:[%s244 + $0x50] sm:$0x1]
      %v285 = vld [vmem:[%s244 + $0x54] sm:$0xf]
      %v286 = vld [vmem:[%s244 + $0x58] sm:$0xf]
      %v287 = vld [vmem:[%s244 + $0x5c] sm:$0x1]
      %v288 = vld [vmem:[%s244 + $0x60] sm:$0xf]
      %v289 = vld [vmem:[%s244 + $0x64] sm:$0xf]
      %v290 = vld [vmem:[%s244 + $0x68] sm:$0x1]
      %v291 = vld [vmem:[%s244 + $0x6c] sm:$0xf]
      %v292 = vld [vmem:[%s244 + $0x70] sm:$0xf]
      %v293 = vld [vmem:[%s244 + $0x74] sm:$0x1]
      %v294 = vld [vmem:[%s244 + $0x78] sm:$0xf]
      %v295 = vld [vmem:[%s244 + $0x7c] sm:$0xf]
      %v296 = vld [vmem:[%s244 + $0x80] sm:$0x1]
      %v297 = vld [vmem:[%s244 + $0x84] sm:$0xf]
      %v298 = vld [vmem:[%s244 + $0x88] sm:$0xf]
      %v299 = vld [vmem:[%s244 + $0x8c] sm:$0x1]
      %v300 = vld [vmem:[%s244 + $0x90] sm:$0xf]
      %v301 = vld [vmem:[%s244 + $0x94] sm:$0xf]
      %v302 = vld [vmem:[%s244 + $0x98] sm:$0x1]
      %v303 = vld [vmem:[%s244 + $0x9c] sm:$0xf]
      %v304 = vld [vmem:[%s244 + $0xa0] sm:$0xf]
      %v305 = vld [vmem:[%s244 + $0xa4] sm:$0x1]
      %v306 = vld [vmem:[%s244 + $0xa8] sm:$0xf]
      %v307 = vld [vmem:[%s244 + $0xac] sm:$0xf]
      %v308 = vld [vmem:[%s244 + $0xb0] sm:$0x1]
      %v309 = vld [vmem:[%s244 + $0xb4] sm:$0xf]
      %v310 = vld [vmem:[%s244 + $0xb8] sm:$0xf]
      %v311 = vld [vmem:[%s244 + $0xbc] sm:$0x1]
      %v312 = vld [vmem:[%s244 + $0xc0] sm:$0xf]
      %v313 = vld [vmem:[%s244 + $0xc4] sm:$0xf]
      %v314 = vld [vmem:[%s244 + $0xc8] sm:$0x1]
      %v315 = vld [vmem:[%s244 + $0xcc] sm:$0xf]
      %v316 = vld [vmem:[%s244 + $0xd0] sm:$0xf]
      %v317 = vld [vmem:[%s244 + $0xd4] sm:$0x1]
      %v318 = vld [vmem:[%s248] sm:$0x3]
      %v319 = vld [vmem:[%s248 + $0x2] sm:$0x3]
      %v320 = vld [vmem:[%s248 + $0x4] sm:$0x3]
      %v321 = vld [vmem:[%s248 + $0x6] sm:$0x3]
      %v322 = vld [vmem:[%s248 + $0x8] sm:$0x3]
      %v323 = vld [vmem:[%s248 + $0xa] sm:$0x3]
      %v324 = vld [vmem:[%s248 + $0xc] sm:$0x3]
      %v325 = vld [vmem:[%s248 + $0xe] sm:$0x3]
      %v326 = vld [vmem:[%s248 + $0x10] sm:$0x3]
      %vm327 = vsmask.f32 3328
      %vm328 = vsmask.f32 7440
      %vm329 = vmor %vm327, %vm328
      %v331 = vshrl.u32 %v264, 16
      %v333 = vrot.slane %v331, 4
      %v334 = vshll.u32 %v264, 16
      %v336 = vrot.slane %v334, 5
      %v337 = vor.u32 %v333, %v336
      %v338 = vrot.slane %v337, 4
      %v340 = vshll.u32 %v265, 16
      %v342 = vrot.slane %v340, 5
      %v343 = vsel %vm329, %v338, %v342
      %v344 = vshrl.u32 %v265, 16
      %v346 = vrot.slane %v344, 4
      %v347 = vor.u32 %v346, %v342
      %v348 = vrot.slane %v347, 4
      %v350 = vshll.u32 %v266, 16
      %v352 = vrot.slane %v350, 5
      %v353 = vsel %vm329, %v348, %v352
      %v355 = vshrl.u32 %v267, 16
      %v357 = vrot.slane %v355, 4
      %v358 = vshll.u32 %v267, 16
      %v360 = vrot.slane %v358, 5
      %v361 = vor.u32 %v357, %v360
      %v362 = vrot.slane %v361, 4
      %v364 = vshll.u32 %v268, 16
      %v366 = vrot.slane %v364, 5
      %v367 = vsel %vm329, %v362, %v366
      %v368 = vshrl.u32 %v268, 16
      %v370 = vrot.slane %v368, 4
      %v371 = vor.u32 %v370, %v366
      %v372 = vrot.slane %v371, 4
      %v374 = vshll.u32 %v269, 16
      %v376 = vrot.slane %v374, 5
      %v377 = vsel %vm329, %v372, %v376
      %v379 = vshrl.u32 %v270, 16
      %v381 = vrot.slane %v379, 4
      %v382 = vshll.u32 %v270, 16
      %v384 = vrot.slane %v382, 5
      %v385 = vor.u32 %v381, %v384
      %v386 = vrot.slane %v385, 4
      %v388 = vshll.u32 %v271, 16
      %v390 = vrot.slane %v388, 5
      %v391 = vsel %vm329, %v386, %v390
      %v392 = vshrl.u32 %v271, 16
      %v394 = vrot.slane %v392, 4
      %v395 = vor.u32 %v394, %v390
      %v396 = vrot.slane %v395, 4
      %v398 = vshll.u32 %v272, 16
      %v400 = vrot.slane %v398, 5
      %v401 = vsel %vm329, %v396, %v400
      %v403 = vshrl.u32 %v273, 16
      %v405 = vrot.slane %v403, 4
      %v406 = vshll.u32 %v273, 16
      %v408 = vrot.slane %v406, 5
      %v409 = vor.u32 %v405, %v408
      %v410 = vrot.slane %v409, 4
      %v412 = vshll.u32 %v274, 16
      %v414 = vrot.slane %v412, 5
      %v415 = vsel %vm329, %v410, %v414
      %v416 = vshrl.u32 %v274, 16
      %v418 = vrot.slane %v416, 4
      %v419 = vor.u32 %v418, %v414
      %v420 = vrot.slane %v419, 4
      %v422 = vshll.u32 %v275, 16
      %v424 = vrot.slane %v422, 5
      %v425 = vsel %vm329, %v420, %v424
      %v427 = vshrl.u32 %v276, 16
      %v429 = vrot.slane %v427, 4
      %v430 = vshll.u32 %v276, 16
      %v432 = vrot.slane %v430, 5
      %v433 = vor.u32 %v429, %v432
      %v434 = vrot.slane %v433, 4
      %v436 = vshll.u32 %v277, 16
      %v438 = vrot.slane %v436, 5
      %v439 = vsel %vm329, %v434, %v438
      %v440 = vshrl.u32 %v277, 16
      %v442 = vrot.slane %v440, 4
      %v443 = vor.u32 %v442, %v438
      %v444 = vrot.slane %v443, 4
      %v446 = vshll.u32 %v278, 16
      %v448 = vrot.slane %v446, 5
      %v449 = vsel %vm329, %v444, %v448
      %v451 = vshrl.u32 %v279, 16
      %v453 = vrot.slane %v451, 4
      %v454 = vshll.u32 %v279, 16
      %v456 = vrot.slane %v454, 5
      %v457 = vor.u32 %v453, %v456
      %v458 = vrot.slane %v457, 4
      %v460 = vshll.u32 %v280, 16
      %v462 = vrot.slane %v460, 5
      %v463 = vsel %vm329, %v458, %v462
      %v464 = vshrl.u32 %v280, 16
      %v466 = vrot.slane %v464, 4
      %v467 = vor.u32 %v466, %v462
      %v468 = vrot.slane %v467, 4
      %v470 = vshll.u32 %v281, 16
      %v472 = vrot.slane %v470, 5
      %v473 = vsel %vm329, %v468, %v472
      %v475 = vshrl.u32 %v282, 16
      %v477 = vrot.slane %v475, 4
      %v478 = vshll.u32 %v282, 16
      %v480 = vrot.slane %v478, 5
      %v481 = vor.u32 %v477, %v480
      %v482 = vrot.slane %v481, 4
      %v484 = vshll.u32 %v283, 16
      %v486 = vrot.slane %v484, 5
      %v487 = vsel %vm329, %v482, %v486
      %v488 = vshrl.u32 %v283, 16
      %v490 = vrot.slane %v488, 4
      %v491 = vor.u32 %v490, %v486
      %v492 = vrot.slane %v491, 4
      %v494 = vshll.u32 %v284, 16
      %v496 = vrot.slane %v494, 5
      %v497 = vsel %vm329, %v492, %v496
      %v499 = vshrl.u32 %v285, 16
      %v501 = vrot.slane %v499, 4
      %v502 = vshll.u32 %v285, 16
      %v504 = vrot.slane %v502, 5
      %v505 = vor.u32 %v501, %v504
      %v506 = vrot.slane %v505, 4
      %v508 = vshll.u32 %v286, 16
      %v510 = vrot.slane %v508, 5
      %v511 = vsel %vm329, %v506, %v510
      %v512 = vshrl.u32 %v286, 16
      %v514 = vrot.slane %v512, 4
      %v515 = vor.u32 %v514, %v510
      %v516 = vrot.slane %v515, 4
      %v518 = vshll.u32 %v287, 16
      %v520 = vrot.slane %v518, 5
      %v521 = vsel %vm329, %v516, %v520
      %v523 = vshrl.u32 %v288, 16
      %v525 = vrot.slane %v523, 4
      %v526 = vshll.u32 %v288, 16
      %v528 = vrot.slane %v526, 5
      %v529 = vor.u32 %v525, %v528
      %v530 = vrot.slane %v529, 4
      %v532 = vshll.u32 %v289, 16
      %v534 = vrot.slane %v532, 5
      %v535 = vsel %vm329, %v530, %v534
      %v536 = vshrl.u32 %v289, 16
      %v538 = vrot.slane %v536, 4
      %v539 = vor.u32 %v538, %v534
      %v540 = vrot.slane %v539, 4
      %v542 = vshll.u32 %v290, 16
      %v544 = vrot.slane %v542, 5
      %v545 = vsel %vm329, %v540, %v544
      %v547 = vshrl.u32 %v291, 16
      %v549 = vrot.slane %v547, 4
      %v550 = vshll.u32 %v291, 16
      %v552 = vrot.slane %v550, 5
      %v553 = vor.u32 %v549, %v552
      %v554 = vrot.slane %v553, 4
      %v556 = vshll.u32 %v292, 16
      %v558 = vrot.slane %v556, 5
      %v559 = vsel %vm329, %v554, %v558
      %v560 = vshrl.u32 %v292, 16
      %v562 = vrot.slane %v560, 4
      %v563 = vor.u32 %v562, %v558
      %v564 = vrot.slane %v563, 4
      %v566 = vshll.u32 %v293, 16
      %v568 = vrot.slane %v566, 5
      %v569 = vsel %vm329, %v564, %v568
      %v571 = vshrl.u32 %v294, 16
      %v573 = vrot.slane %v571, 4
      %v574 = vshll.u32 %v294, 16
      %v576 = vrot.slane %v574, 5
      %v577 = vor.u32 %v573, %v576
      %v578 = vrot.slane %v577, 4
      %v580 = vshll.u32 %v295, 16
      %v582 = vrot.slane %v580, 5
      %v583 = vsel %vm329, %v578, %v582
      %v584 = vshrl.u32 %v295, 16
      %v586 = vrot.slane %v584, 4
      %v587 = vor.u32 %v586, %v582
      %v588 = vrot.slane %v587, 4
      %v590 = vshll.u32 %v296, 16
      %v592 = vrot.slane %v590, 5
      %v593 = vsel %vm329, %v588, %v592
      %v595 = vshrl.u32 %v297, 16
      %v597 = vrot.slane %v595, 4
      %v598 = vshll.u32 %v297, 16
      %v600 = vrot.slane %v598, 5
      %v601 = vor.u32 %v597, %v600
      %v602 = vrot.slane %v601, 4
      %v604 = vshll.u32 %v298, 16
      %v606 = vrot.slane %v604, 5
      %v607 = vsel %vm329, %v602, %v606
      %v608 = vshrl.u32 %v298, 16
      %v610 = vrot.slane %v608, 4
      %v611 = vor.u32 %v610, %v606
      %v612 = vrot.slane %v611, 4
      %v614 = vshll.u32 %v299, 16
      %v616 = vrot.slane %v614, 5
      %v617 = vsel %vm329, %v612, %v616
      %v619 = vshrl.u32 %v300, 16
      %v621 = vrot.slane %v619, 4
      %v622 = vshll.u32 %v300, 16
      %v624 = vrot.slane %v622, 5
      %v625 = vor.u32 %v621, %v624
      %v626 = vrot.slane %v625, 4
      %v628 = vshll.u32 %v301, 16
      %v630 = vrot.slane %v628, 5
      %v631 = vsel %vm329, %v626, %v630
      %v632 = vshrl.u32 %v301, 16
      %v634 = vrot.slane %v632, 4
      %v635 = vor.u32 %v634, %v630
      %v636 = vrot.slane %v635, 4
      %v638 = vshll.u32 %v302, 16
      %v640 = vrot.slane %v638, 5
      %v641 = vsel %vm329, %v636, %v640
      %v643 = vshrl.u32 %v303, 16
      %v645 = vrot.slane %v643, 4
      %v646 = vshll.u32 %v303, 16
      %v648 = vrot.slane %v646, 5
      %v649 = vor.u32 %v645, %v648
      %v650 = vrot.slane %v649, 4
      %v652 = vshll.u32 %v304, 16
      %v654 = vrot.slane %v652, 5
      %v655 = vsel %vm329, %v650, %v654
      %v656 = vshrl.u32 %v304, 16
      %v658 = vrot.slane %v656, 4
      %v659 = vor.u32 %v658, %v654
      %v660 = vrot.slane %v659, 4
      %v662 = vshll.u32 %v305, 16
      %v664 = vrot.slane %v662, 5
      %v665 = vsel %vm329, %v660, %v664
      %v667 = vshrl.u32 %v306, 16
      %v669 = vrot.slane %v667, 4
      %v670 = vshll.u32 %v306, 16
      %v672 = vrot.slane %v670, 5
      %v673 = vor.u32 %v669, %v672
      %v674 = vrot.slane %v673, 4
      %v676 = vshll.u32 %v307, 16
      %v678 = vrot.slane %v676, 5
      %v679 = vsel %vm329, %v674, %v678
      %v680 = vshrl.u32 %v307, 16
      %v682 = vrot.slane %v680, 4
      %v683 = vor.u32 %v682, %v678
      %v684 = vrot.slane %v683, 4
      %v686 = vshll.u32 %v308, 16
      %v688 = vrot.slane %v686, 5
      %v689 = vsel %vm329, %v684, %v688
      %v691 = vshrl.u32 %v309, 16
      %v693 = vrot.slane %v691, 4
      %v694 = vshll.u32 %v309, 16
      %v696 = vrot.slane %v694, 5
      %v697 = vor.u32 %v693, %v696
      %v698 = vrot.slane %v697, 4
      %v700 = vshll.u32 %v310, 16
      %v702 = vrot.slane %v700, 5
      %v703 = vsel %vm329, %v698, %v702
      %v704 = vshrl.u32 %v310, 16
      %v706 = vrot.slane %v704, 4
      %v707 = vor.u32 %v706, %v702
      %v708 = vrot.slane %v707, 4
      %v710 = vshll.u32 %v311, 16
      %v712 = vrot.slane %v710, 5
      %v713 = vsel %vm329, %v708, %v712
      %v714 = vunpack.c.l.b16 %v343
      %v715 = vunpack.c.l.b16 %v353
      %v716 = vunpack.c.l.b16 %v367
      %v717 = vunpack.c.l.b16 %v377
      %v718 = vunpack.c.l.b16 %v391
      %v719 = vunpack.c.l.b16 %v401
      %v720 = vunpack.c.l.b16 %v415
      %v721 = vunpack.c.l.b16 %v425
      %v722 = vunpack.c.l.b16 %v439
      %v723 = vunpack.c.l.b16 %v449
      %v724 = vunpack.c.l.b16 %v463
      %v725 = vunpack.c.l.b16 %v473
      %v726 = vunpack.c.l.b16 %v487
      %v727 = vunpack.c.l.b16 %v497
      %v728 = vunpack.c.l.b16 %v511
      %v729 = vunpack.c.l.b16 %v521
      %v730 = vunpack.c.l.b16 %v535
      %v731 = vunpack.c.l.b16 %v545
      %v732 = vunpack.c.l.b16 %v559
      %v733 = vunpack.c.l.b16 %v569
      %v734 = vunpack.c.l.b16 %v583
      %v735 = vunpack.c.l.b16 %v593
      %v736 = vunpack.c.l.b16 %v607
      %v737 = vunpack.c.l.b16 %v617
      %v738 = vunpack.c.l.b16 %v631
      %v739 = vunpack.c.l.b16 %v641
      %v740 = vunpack.c.l.b16 %v655
      %v741 = vunpack.c.l.b16 %v665
      %v742 = vunpack.c.l.b16 %v679
      %v743 = vunpack.c.l.b16 %v689
      %v744 = vunpack.c.l.b16 %v703
      %v745 = vunpack.c.l.b16 %v713
      %v746 = vpack.c.b16 %v715, %v714
      %v747 = vpack.c.b16 %v717, %v716
      %v748 = vpack.c.b16 %v719, %v718
      %v749 = vpack.c.b16 %v721, %v720
      %v750 = vpack.c.b16 %v723, %v722
      %v751 = vpack.c.b16 %v725, %v724
      %v752 = vpack.c.b16 %v727, %v726
      %v753 = vpack.c.b16 %v729, %v728
      %v754 = vpack.c.b16 %v731, %v730
      %v755 = vpack.c.b16 %v733, %v732
      %v756 = vpack.c.b16 %v735, %v734
      %v757 = vpack.c.b16 %v737, %v736
      %v758 = vpack.c.b16 %v739, %v738
      %v759 = vpack.c.b16 %v741, %v740
      %v760 = vpack.c.b16 %v743, %v742
      %v761 = vpack.c.b16 %v745, %v744
      %vm762 = vcmask 31744
      %v764 = vsel %vm762, %v746, 0
      %v767 = vsel %vm762, %v747, 0
      %v770 = vsel %vm762, %v748, 0
      %v773 = vsel %vm762, %v749, 0
      %v776 = vsel %vm762, %v750, 0
      %v779 = vsel %vm762, %v751, 0
      %v782 = vsel %vm762, %v752, 0
      %v785 = vsel %vm762, %v753, 0
      %v788 = vsel %vm762, %v754, 0
      %v791 = vsel %vm762, %v755, 0
      %v794 = vsel %vm762, %v756, 0
      %v797 = vsel %vm762, %v757, 0
      %v800 = vsel %vm762, %v758, 0
      %v803 = vsel %vm762, %v759, 0
      %v806 = vsel %vm762, %v760, 0
      %v809 = vsel %vm762, %v761, 0
      %vm811 = vcmask 1041408
      %v813 = vsel %vm811, %v319, 0
      %815 = vmatprep.subr.bf16.mxu0 0
      %816 = vmatpush1.bf16.msra.mxu0 0
      %817 = vmatprep.subr.bf16.mxu0 0
      %818 = vmatpush1.bf16.msra.mxu0 0
      %819 = vmatprep.subr.bf16.mxu0 0
      %820 = vmatpush1.bf16.msra.mxu0 0
      %821 = vmatprep.subr.bf16.mxu0 0
      %822 = vmatpush1.bf16.msra.mxu0 0
      %823 = vmatprep.subr.bf16.mxu0 0
      %824 = vmatpush1.bf16.msra.mxu0 0
      %825 = vmatprep.subr.bf16.mxu0 0
      %826 = vmatpush1.bf16.msra.mxu0 0
      %827 = vmatprep.subr.bf16.mxu0 0
      %828 = vmatpush1.bf16.msra.mxu0 0
      %829 = vmatprep.subr.bf16.mxu0 0
      %830 = vmatpush1.bf16.msra.mxu0 %v813
      %831 = vmatprep.subr.bf16.mxu0 0
      %832 = vmatpush2.bf16.msra.mxu0 0
      %833 = vmatprep.subr.bf16.mxu0 0
      %834 = vmatpush2.bf16.msra.mxu0 0
      %835 = vmatprep.subr.bf16.mxu0 0
      %836 = vmatpush2.bf16.msra.mxu0 0
      %837 = vmatprep.subr.bf16.mxu0 0
      %838 = vmatpush2.bf16.msra.mxu0 0
      %839 = vmatprep.subr.bf16.mxu0 0
      %840 = vmatpush2.bf16.msra.mxu0 0
      %841 = vmatprep.subr.bf16.mxu0 0
      %842 = vmatpush2.bf16.msra.mxu0 0
      %843 = vmatprep.subr.bf16.mxu0 0
      %844 = vmatpush2.bf16.msra.mxu0 0
      %845 = vmatprep.subr.bf16.mxu0 0
      %846 = vmatpush2.bf16.msra.mxu0 0
      %847 = vmatprep.mubr.bf16.mxu0 0
      %848 = vmatmul.mubr.bf16.gmra.mxu0 %v764
      %v849 = vpop.f32.mrf.mxu0
      %v850 = vadd.f32 0.0, %v849
      %v851 = vpop.f32.mrf.mxu0
      %v852 = vpop.f32.mrf.mxu0
      %v853 = vadd.f32 0.0, %v852
      %v854 = vpop.f32.mrf.mxu0
      %855 = vmatprep.mubr.bf16.mxu0 0
      %856 = vmatmul.mubr.bf16.gmra.mxu0 %v767
      %v857 = vpop.f32.mrf.mxu0
      %v858 = vadd.f32 0.0, %v857
      %v859 = vpop.f32.mrf.mxu0
      %v860 = vpop.f32.mrf.mxu0
      %v861 = vadd.f32 0.0, %v860
      %v862 = vpop.f32.mrf.mxu0
      %863 = vmatprep.mubr.bf16.mxu0 0
      %864 = vmatmul.mubr.bf16.gmra.mxu0 %v770
      %v865 = vpop.f32.mrf.mxu0
      %v866 = vadd.f32 0.0, %v865
      %v867 = vpop.f32.mrf.mxu0
      %v868 = vpop.f32.mrf.mxu0
      %v869 = vadd.f32 0.0, %v868
      %v870 = vpop.f32.mrf.mxu0
      %871 = vmatprep.mubr.bf16.mxu0 0
      %872 = vmatmul.mubr.bf16.gmra.mxu0 %v773
      %v873 = vpop.f32.mrf.mxu0
      %v874 = vadd.f32 0.0, %v873
      %v875 = vpop.f32.mrf.mxu0
      %v876 = vpop.f32.mrf.mxu0
      %v877 = vadd.f32 0.0, %v876
      %v878 = vpop.f32.mrf.mxu0
      %879 = vmatprep.mubr.bf16.mxu0 0
      %880 = vmatmul.mubr.bf16.gmra.mxu0 %v776
      %v881 = vpop.f32.mrf.mxu0
      %v882 = vadd.f32 0.0, %v881
      %v883 = vpop.f32.mrf.mxu0
      %v884 = vpop.f32.mrf.mxu0
      %v885 = vadd.f32 0.0, %v884
      %v886 = vpop.f32.mrf.mxu0
      %887 = vmatprep.mubr.bf16.mxu0 0
      %888 = vmatmul.mubr.bf16.gmra.mxu0 %v779
      %v889 = vpop.f32.mrf.mxu0
      %v890 = vadd.f32 0.0, %v889
      %v891 = vpop.f32.mrf.mxu0
      %v892 = vpop.f32.mrf.mxu0
      %v893 = vadd.f32 0.0, %v892
      %v894 = vpop.f32.mrf.mxu0
      %895 = vmatprep.mubr.bf16.mxu0 0
      %896 = vmatmul.mubr.bf16.gmra.mxu0 %v782
      %v897 = vpop.f32.mrf.mxu0
      %v898 = vadd.f32 0.0, %v897
      %v899 = vpop.f32.mrf.mxu0
      %v900 = vpop.f32.mrf.mxu0
      %v901 = vadd.f32 0.0, %v900
      %v902 = vpop.f32.mrf.mxu0
      %903 = vmatprep.mubr.bf16.mxu0 0
      %904 = vmatmul.mubr.bf16.gmra.mxu0 %v785
      %v905 = vpop.f32.mrf.mxu0
      %v906 = vadd.f32 0.0, %v905
      %v907 = vpop.f32.mrf.mxu0
      %v908 = vpop.f32.mrf.mxu0
      %v909 = vadd.f32 0.0, %v908
      %v910 = vpop.f32.mrf.mxu0
      %911 = vmatprep.mubr.bf16.mxu0 0
      %912 = vmatmul.mubr.bf16.gmra.mxu0 %v788
      %v913 = vpop.f32.mrf.mxu0
      %v914 = vadd.f32 0.0, %v913
      %v915 = vpop.f32.mrf.mxu0
      %v916 = vpop.f32.mrf.mxu0
      %v917 = vadd.f32 0.0, %v916
      %v918 = vpop.f32.mrf.mxu0
      %919 = vmatprep.mubr.bf16.mxu0 0
      %920 = vmatmul.mubr.bf16.gmra.mxu0 %v791
      %v921 = vpop.f32.mrf.mxu0
      %v922 = vadd.f32 0.0, %v921
      %v923 = vpop.f32.mrf.mxu0
      %v924 = vpop.f32.mrf.mxu0
      %v925 = vadd.f32 0.0, %v924
      %v926 = vpop.f32.mrf.mxu0
      %927 = vmatprep.mubr.bf16.mxu0 0
      %928 = vmatmul.mubr.bf16.gmra.mxu0 %v794
      %v929 = vpop.f32.mrf.mxu0
      %v930 = vadd.f32 0.0, %v929
      %v931 = vpop.f32.mrf.mxu0
      %v932 = vpop.f32.mrf.mxu0
      %v933 = vadd.f32 0.0, %v932
      %v934 = vpop.f32.mrf.mxu0
      %935 = vmatprep.mubr.bf16.mxu0 0
      %936 = vmatmul.mubr.bf16.gmra.mxu0 %v797
      %v937 = vpop.f32.mrf.mxu0
      %v938 = vadd.f32 0.0, %v937
      %v939 = vpop.f32.mrf.mxu0
      %v940 = vpop.f32.mrf.mxu0
      %v941 = vadd.f32 0.0, %v940
      %v942 = vpop.f32.mrf.mxu0
      %943 = vmatprep.mubr.bf16.mxu0 0
      %944 = vmatmul.mubr.bf16.gmra.mxu0 %v800
      %v945 = vpop.f32.mrf.mxu0
      %v946 = vadd.f32 0.0, %v945
      %v947 = vpop.f32.mrf.mxu0
      %v948 = vpop.f32.mrf.mxu0
      %v949 = vadd.f32 0.0, %v948
      %v950 = vpop.f32.mrf.mxu0
      %951 = vmatprep.mubr.bf16.mxu0 0
      %952 = vmatmul.mubr.bf16.gmra.mxu0 %v803
      %v953 = vpop.f32.mrf.mxu0
      %v954 = vadd.f32 0.0, %v953
      %v955 = vpop.f32.mrf.mxu0
      %v956 = vpop.f32.mrf.mxu0
      %v957 = vadd.f32 0.0, %v956
      %v958 = vpop.f32.mrf.mxu0
      %959 = vmatprep.mubr.bf16.mxu0 0
      %960 = vmatmul.mubr.bf16.gmra.mxu0 %v806
      %v961 = vpop.f32.mrf.mxu0
      %v962 = vadd.f32 0.0, %v961
      %v963 = vpop.f32.mrf.mxu0
      %v964 = vpop.f32.mrf.mxu0
      %v965 = vadd.f32 0.0, %v964
      %v966 = vpop.f32.mrf.mxu0
      %967 = vmatprep.mubr.bf16.mxu0 0
      %968 = vmatmul.mubr.bf16.gmra.mxu0 %v809
      %v969 = vpop.f32.mrf.mxu0
      %v970 = vadd.f32 0.0, %v969
      %v971 = vpop.f32.mrf.mxu0
      %v972 = vpop.f32.mrf.mxu0
      %v973 = vadd.f32 0.0, %v972
      %v974 = vpop.f32.mrf.mxu0
      %975 = vdwg.mxu0
      %v1008 = vunpack.c.l.b16 %v264
      %v1009 = vunpack.c.l.b16 %v265
      %v1010 = vunpack.c.l.b16 %v267
      %v1011 = vunpack.c.l.b16 %v268
      %v1012 = vunpack.c.l.b16 %v270
      %v1013 = vunpack.c.l.b16 %v271
      %v1014 = vunpack.c.l.b16 %v273
      %v1015 = vunpack.c.l.b16 %v274
      %v1016 = vunpack.c.l.b16 %v276
      %v1017 = vunpack.c.l.b16 %v277
      %v1018 = vunpack.c.l.b16 %v279
      %v1019 = vunpack.c.l.b16 %v280
      %v1020 = vunpack.c.l.b16 %v282
      %v1021 = vunpack.c.l.b16 %v283
      %v1022 = vunpack.c.l.b16 %v285
      %v1023 = vunpack.c.l.b16 %v286
      %v1024 = vunpack.c.l.b16 %v288
      %v1025 = vunpack.c.l.b16 %v289
      %v1026 = vunpack.c.l.b16 %v291
      %v1027 = vunpack.c.l.b16 %v292
      %v1028 = vunpack.c.l.b16 %v294
      %v1029 = vunpack.c.l.b16 %v295
      %v1030 = vunpack.c.l.b16 %v297
      %v1031 = vunpack.c.l.b16 %v298
      %v1032 = vunpack.c.l.b16 %v300
      %v1033 = vunpack.c.l.b16 %v301
      %v1034 = vunpack.c.l.b16 %v303
      %v1035 = vunpack.c.l.b16 %v304
      %v1036 = vunpack.c.l.b16 %v306
      %v1037 = vunpack.c.l.b16 %v307
      %v1038 = vunpack.c.l.b16 %v309
      %v1039 = vunpack.c.l.b16 %v310
      %v1040 = vpack.c.b16 %v1009, %v1008
      %v1041 = vpack.c.b16 %v1011, %v1010
      %v1042 = vpack.c.b16 %v1013, %v1012
      %v1043 = vpack.c.b16 %v1015, %v1014
      %v1044 = vpack.c.b16 %v1017, %v1016
      %v1045 = vpack.c.b16 %v1019, %v1018
      %v1046 = vpack.c.b16 %v1021, %v1020
      %v1047 = vpack.c.b16 %v1023, %v1022
      %v1048 = vpack.c.b16 %v1025, %v1024
      %v1049 = vpack.c.b16 %v1027, %v1026
      %v1050 = vpack.c.b16 %v1029, %v1028
      %v1051 = vpack.c.b16 %v1031, %v1030
      %v1052 = vpack.c.b16 %v1033, %v1032
      %v1053 = vpack.c.b16 %v1035, %v1034
      %v1054 = vpack.c.b16 %v1037, %v1036
      %v1055 = vpack.c.b16 %v1039, %v1038
      %v1057 = vsel %vm762, %v1040, 0
      %v1060 = vsel %vm762, %v1041, 0
      %v1063 = vsel %vm762, %v1042, 0
      %v1066 = vsel %vm762, %v1043, 0
      %v1069 = vsel %vm762, %v1044, 0
      %v1072 = vsel %vm762, %v1045, 0
      %v1075 = vsel %vm762, %v1046, 0
      %v1078 = vsel %vm762, %v1047, 0
      %v1081 = vsel %vm762, %v1048, 0
      %v1084 = vsel %vm762, %v1049, 0
      %v1087 = vsel %vm762, %v1050, 0
      %v1090 = vsel %vm762, %v1051, 0
      %v1093 = vsel %vm762, %v1052, 0
      %v1096 = vsel %vm762, %v1053, 0
      %v1099 = vsel %vm762, %v1054, 0
      %v1102 = vsel %vm762, %v1055, 0
      %v1105 = vsel %vm811, %v318, 0
      %1107 = vmatprep.subr.bf16.mxu0 0
      %1108 = vmatpush1.bf16.msra.mxu0 0
      %1109 = vmatprep.subr.bf16.mxu0 0
      %1110 = vmatpush1.bf16.msra.mxu0 0
      %1111 = vmatprep.subr.bf16.mxu0 0
      %1112 = vmatpush1.bf16.msra.mxu0 0
      %1113 = vmatprep.subr.bf16.mxu0 0
      %1114 = vmatpush1.bf16.msra.mxu0 0
      %1115 = vmatprep.subr.bf16.mxu0 0
      %1116 = vmatpush1.bf16.msra.mxu0 0
      %1117 = vmatprep.subr.bf16.mxu0 0
      %1118 = vmatpush1.bf16.msra.mxu0 0
      %1119 = vmatprep.subr.bf16.mxu0 0
      %1120 = vmatpush1.bf16.msra.mxu0 0
      %1121 = vmatprep.subr.bf16.mxu0 0
      %1122 = vmatpush1.bf16.msra.mxu0 %v1105
      %1123 = vmatprep.subr.bf16.mxu0 0
      %1124 = vmatpush2.bf16.msra.mxu0 0
      %1125 = vmatprep.subr.bf16.mxu0 0
      %1126 = vmatpush2.bf16.msra.mxu0 0
      %1127 = vmatprep.subr.bf16.mxu0 0
      %1128 = vmatpush2.bf16.msra.mxu0 0
      %1129 = vmatprep.subr.bf16.mxu0 0
      %1130 = vmatpush2.bf16.msra.mxu0 0
      %1131 = vmatprep.subr.bf16.mxu0 0
      %1132 = vmatpush2.bf16.msra.mxu0 0
      %1133 = vmatprep.subr.bf16.mxu0 0
      %1134 = vmatpush2.bf16.msra.mxu0 0
      %1135 = vmatprep.subr.bf16.mxu0 0
      %1136 = vmatpush2.bf16.msra.mxu0 0
      %1137 = vmatprep.subr.bf16.mxu0 0
      %1138 = vmatpush2.bf16.msra.mxu0 0
      %1139 = vmatprep.mubr.bf16.mxu0 0
      %1140 = vmatmul.mubr.bf16.gmra.mxu0 %v1057
      %v1141 = vpop.f32.mrf.mxu0
      %v1142 = vadd.f32 %v850, %v1141
      %v1143 = vpop.f32.mrf.mxu0
      %v1144 = vpop.f32.mrf.mxu0
      %v1145 = vadd.f32 %v853, %v1144
      %v1146 = vpop.f32.mrf.mxu0
      %1147 = vmatprep.mubr.bf16.mxu0 0
      %1148 = vmatmul.mubr.bf16.gmra.mxu0 %v1060
      %v1149 = vpop.f32.mrf.mxu0
      %v1150 = vadd.f32 %v858, %v1149
      %v1151 = vpop.f32.mrf.mxu0
      %v1152 = vpop.f32.mrf.mxu0
      %v1153 = vadd.f32 %v861, %v1152
      %v1154 = vpop.f32.mrf.mxu0
      %1155 = vmatprep.mubr.bf16.mxu0 0
      %1156 = vmatmul.mubr.bf16.gmra.mxu0 %v1063
      %v1157 = vpop.f32.mrf.mxu0
      %v1158 = vadd.f32 %v866, %v1157
      %v1159 = vpop.f32.mrf.mxu0
      %v1160 = vpop.f32.mrf.mxu0
      %v1161 = vadd.f32 %v869, %v1160
      %v1162 = vpop.f32.mrf.mxu0
      %1163 = vmatprep.mubr.bf16.mxu0 0
      %1164 = vmatmul.mubr.bf16.gmra.mxu0 %v1066
      %v1165 = vpop.f32.mrf.mxu0
      %v1166 = vadd.f32 %v874, %v1165
      %v1167 = vpop.f32.mrf.mxu0
      %v1168 = vpop.f32.mrf.mxu0
      %v1169 = vadd.f32 %v877, %v1168
      %v1170 = vpop.f32.mrf.mxu0
      %1171 = vmatprep.mubr.bf16.mxu0 0
      %1172 = vmatmul.mubr.bf16.gmra.mxu0 %v1069
      %v1173 = vpop.f32.mrf.mxu0
      %v1174 = vadd.f32 %v882, %v1173
      %v1175 = vpop.f32.mrf.mxu0
      %v1176 = vpop.f32.mrf.mxu0
      %v1177 = vadd.f32 %v885, %v1176
      %v1178 = vpop.f32.mrf.mxu0
      %1179 = vmatprep.mubr.bf16.mxu0 0
      %1180 = vmatmul.mubr.bf16.gmra.mxu0 %v1072
      %v1181 = vpop.f32.mrf.mxu0
      %v1182 = vadd.f32 %v890, %v1181
      %v1183 = vpop.f32.mrf.mxu0
      %v1184 = vpop.f32.mrf.mxu0
      %v1185 = vadd.f32 %v893, %v1184
      %v1186 = vpop.f32.mrf.mxu0
      %1187 = vmatprep.mubr.bf16.mxu0 0
      %1188 = vmatmul.mubr.bf16.gmra.mxu0 %v1075
      %v1189 = vpop.f32.mrf.mxu0
      %v1190 = vadd.f32 %v898, %v1189
      %v1191 = vpop.f32.mrf.mxu0
      %v1192 = vpop.f32.mrf.mxu0
      %v1193 = vadd.f32 %v901, %v1192
      %v1194 = vpop.f32.mrf.mxu0
      %1195 = vmatprep.mubr.bf16.mxu0 0
      %1196 = vmatmul.mubr.bf16.gmra.mxu0 %v1078
      %v1197 = vpop.f32.mrf.mxu0
      %v1198 = vadd.f32 %v906, %v1197
      %v1199 = vpop.f32.mrf.mxu0
      %v1200 = vpop.f32.mrf.mxu0
      %v1201 = vadd.f32 %v909, %v1200
      %v1202 = vpop.f32.mrf.mxu0
      %1203 = vmatprep.mubr.bf16.mxu0 0
      %1204 = vmatmul.mubr.bf16.gmra.mxu0 %v1081
      %v1205 = vpop.f32.mrf.mxu0
      %v1206 = vadd.f32 %v914, %v1205
      %v1207 = vpop.f32.mrf.mxu0
      %v1208 = vpop.f32.mrf.mxu0
      %v1209 = vadd.f32 %v917, %v1208
      %v1210 = vpop.f32.mrf.mxu0
      %1211 = vmatprep.mubr.bf16.mxu0 0
      %1212 = vmatmul.mubr.bf16.gmra.mxu0 %v1084
      %v1213 = vpop.f32.mrf.mxu0
      %v1214 = vadd.f32 %v922, %v1213
      %v1215 = vpop.f32.mrf.mxu0
      %v1216 = vpop.f32.mrf.mxu0
      %v1217 = vadd.f32 %v925, %v1216
      %v1218 = vpop.f32.mrf.mxu0
      %1219 = vmatprep.mubr.bf16.mxu0 0
      %1220 = vmatmul.mubr.bf16.gmra.mxu0 %v1087
      %v1221 = vpop.f32.mrf.mxu0
      %v1222 = vadd.f32 %v930, %v1221
      %v1223 = vpop.f32.mrf.mxu0
      %v1224 = vpop.f32.mrf.mxu0
      %v1225 = vadd.f32 %v933, %v1224
      %v1226 = vpop.f32.mrf.mxu0
      %1227 = vmatprep.mubr.bf16.mxu0 0
      %1228 = vmatmul.mubr.bf16.gmra.mxu0 %v1090
      %v1229 = vpop.f32.mrf.mxu0
      %v1230 = vadd.f32 %v938, %v1229
      %v1231 = vpop.f32.mrf.mxu0
      %v1232 = vpop.f32.mrf.mxu0
      %v1233 = vadd.f32 %v941, %v1232
      %v1234 = vpop.f32.mrf.mxu0
      %1235 = vmatprep.mubr.bf16.mxu0 0
      %1236 = vmatmul.mubr.bf16.gmra.mxu0 %v1093
      %v1237 = vpop.f32.mrf.mxu0
      %v1238 = vadd.f32 %v946, %v1237
      %v1239 = vpop.f32.mrf.mxu0
      %v1240 = vpop.f32.mrf.mxu0
      %v1241 = vadd.f32 %v949, %v1240
      %v1242 = vpop.f32.mrf.mxu0
      %1243 = vmatprep.mubr.bf16.mxu0 0
      %1244 = vmatmul.mubr.bf16.gmra.mxu0 %v1096
      %v1245 = vpop.f32.mrf.mxu0
      %v1246 = vadd.f32 %v954, %v1245
      %v1247 = vpop.f32.mrf.mxu0
      %v1248 = vpop.f32.mrf.mxu0
      %v1249 = vadd.f32 %v957, %v1248
      %v1250 = vpop.f32.mrf.mxu0
      %1251 = vmatprep.mubr.bf16.mxu0 0
      %1252 = vmatmul.mubr.bf16.gmra.mxu0 %v1099
      %v1253 = vpop.f32.mrf.mxu0
      %v1254 = vadd.f32 %v962, %v1253
      %v1255 = vpop.f32.mrf.mxu0
      %v1256 = vpop.f32.mrf.mxu0
      %v1257 = vadd.f32 %v965, %v1256
      %v1258 = vpop.f32.mrf.mxu0
      %1259 = vmatprep.mubr.bf16.mxu0 0
      %1260 = vmatmul.mubr.bf16.gmra.mxu0 %v1102
      %v1261 = vpop.f32.mrf.mxu0
      %v1262 = vadd.f32 %v970, %v1261
      %v1263 = vpop.f32.mrf.mxu0
      %v1264 = vpop.f32.mrf.mxu0
      %v1265 = vadd.f32 %v973, %v1264
      %v1266 = vpop.f32.mrf.mxu0
      %1267 = vdwg.mxu0
      %vm1284 = vcmask 1042432
      %vm1285 = vcmask 1046532
      %vm1286 = vmor %vm1284, %vm1285
      %v1287 = vrot.slane %v264, 5
      %v1288 = vrot.slane %v1287, 4
      %v1289 = vrot.slane %v265, 5
      %v1290 = vsel %vm1286, %v1288, %v1289
      %v1291 = vrot.slane %v1289, 4
      %v1292 = vrot.slane %v266, 5
      %v1293 = vsel %vm1286, %v1291, %v1292
      %v1294 = vrot.slane %v267, 5
      %v1295 = vrot.slane %v1294, 4
      %v1296 = vrot.slane %v268, 5
      %v1297 = vsel %vm1286, %v1295, %v1296
      %v1298 = vrot.slane %v1296, 4
      %v1299 = vrot.slane %v269, 5
      %v1300 = vsel %vm1286, %v1298, %v1299
      %v1301 = vrot.slane %v270, 5
      %v1302 = vrot.slane %v1301, 4
      %v1303 = vrot.slane %v271, 5
      %v1304 = vsel %vm1286, %v1302, %v1303
      %v1305 = vrot.slane %v1303, 4
      %v1306 = vrot.slane %v272, 5
      %v1307 = vsel %vm1286, %v1305, %v1306
      %v1308 = vrot.slane %v273, 5
      %v1309 = vrot.slane %v1308, 4
      %v1310 = vrot.slane %v274, 5
      %v1311 = vsel %vm1286, %v1309, %v1310
      %v1312 = vrot.slane %v1310, 4
      %v1313 = vrot.slane %v275, 5
      %v1314 = vsel %vm1286, %v1312, %v1313
      %v1315 = vrot.slane %v276, 5
      %v1316 = vrot.slane %v1315, 4
      %v1317 = vrot.slane %v277, 5
      %v1318 = vsel %vm1286, %v1316, %v1317
      %v1319 = vrot.slane %v1317, 4
      %v1320 = vrot.slane %v278, 5
      %v1321 = vsel %vm1286, %v1319, %v1320
      %v1322 = vrot.slane %v279, 5
      %v1323 = vrot.slane %v1322, 4
      %v1324 = vrot.slane %v280, 5
      %v1325 = vsel %vm1286, %v1323, %v1324
      %v1326 = vrot.slane %v1324, 4
      %v1327 = vrot.slane %v281, 5
      %v1328 = vsel %vm1286, %v1326, %v1327
      %v1329 = vrot.slane %v282, 5
      %v1330 = vrot.slane %v1329, 4
      %v1331 = vrot.slane %v283, 5
      %v1332 = vsel %vm1286, %v1330, %v1331
      %v1333 = vrot.slane %v1331, 4
      %v1334 = vrot.slane %v284, 5
      %v1335 = vsel %vm1286, %v1333, %v1334
      %v1336 = vrot.slane %v285, 5
      %v1337 = vrot.slane %v1336, 4
      %v1338 = vrot.slane %v286, 5
      %v1339 = vsel %vm1286, %v1337, %v1338
      %v1340 = vrot.slane %v1338, 4
      %v1341 = vrot.slane %v287, 5
      %v1342 = vsel %vm1286, %v1340, %v1341
      %v1343 = vrot.slane %v288, 5
      %v1344 = vrot.slane %v1343, 4
      %v1345 = vrot.slane %v289, 5
      %v1346 = vsel %vm1286, %v1344, %v1345
      %v1347 = vrot.slane %v1345, 4
      %v1348 = vrot.slane %v290, 5
      %v1349 = vsel %vm1286, %v1347, %v1348
      %v1350 = vrot.slane %v291, 5
      %v1351 = vrot.slane %v1350, 4
      %v1352 = vrot.slane %v292, 5
      %v1353 = vsel %vm1286, %v1351, %v1352
      %v1354 = vrot.slane %v1352, 4
      %v1355 = vrot.slane %v293, 5
      %v1356 = vsel %vm1286, %v1354, %v1355
      %v1357 = vrot.slane %v294, 5
      %v1358 = vrot.slane %v1357, 4
      %v1359 = vrot.slane %v295, 5
      %v1360 = vsel %vm1286, %v1358, %v1359
      %v1361 = vrot.slane %v1359, 4
      %v1362 = vrot.slane %v296, 5
      %v1363 = vsel %vm1286, %v1361, %v1362
      %v1364 = vrot.slane %v297, 5
      %v1365 = vrot.slane %v1364, 4
      %v1366 = vrot.slane %v298, 5
      %v1367 = vsel %vm1286, %v1365, %v1366
      %v1368 = vrot.slane %v1366, 4
      %v1369 = vrot.slane %v299, 5
      %v1370 = vsel %vm1286, %v1368, %v1369
      %v1371 = vrot.slane %v300, 5
      %v1372 = vrot.slane %v1371, 4
      %v1373 = vrot.slane %v301, 5
      %v1374 = vsel %vm1286, %v1372, %v1373
      %v1375 = vrot.slane %v1373, 4
      %v1376 = vrot.slane %v302, 5
      %v1377 = vsel %vm1286, %v1375, %v1376
      %v1378 = vrot.slane %v303, 5
      %v1379 = vrot.slane %v1378, 4
      %v1380 = vrot.slane %v304, 5
      %v1381 = vsel %vm1286, %v1379, %v1380
      %v1382 = vrot.slane %v1380, 4
      %v1383 = vrot.slane %v305, 5
      %v1384 = vsel %vm1286, %v1382, %v1383
      %v1385 = vrot.slane %v306, 5
      %v1386 = vrot.slane %v1385, 4
      %v1387 = vrot.slane %v307, 5
      %v1388 = vsel %vm1286, %v1386, %v1387
      %v1389 = vrot.slane %v1387, 4
      %v1390 = vrot.slane %v308, 5
      %v1391 = vsel %vm1286, %v1389, %v1390
      %v1392 = vrot.slane %v309, 5
      %v1393 = vrot.slane %v1392, 4
      %v1394 = vrot.slane %v310, 5
      %v1395 = vsel %vm1286, %v1393, %v1394
      %v1396 = vrot.slane %v1394, 4
      %v1397 = vrot.slane %v311, 5
      %v1398 = vsel %vm1286, %v1396, %v1397
      %v1399 = vunpack.c.l.b16 %v1290
      %v1400 = vunpack.c.l.b16 %v1293
      %v1401 = vunpack.c.l.b16 %v1297
      %v1402 = vunpack.c.l.b16 %v1300
      %v1403 = vunpack.c.l.b16 %v1304
      %v1404 = vunpack.c.l.b16 %v1307
      %v1405 = vunpack.c.l.b16 %v1311
      %v1406 = vunpack.c.l.b16 %v1314
      %v1407 = vunpack.c.l.b16 %v1318
      %v1408 = vunpack.c.l.b16 %v1321
      %v1409 = vunpack.c.l.b16 %v1325
      %v1410 = vunpack.c.l.b16 %v1328
      %v1411 = vunpack.c.l.b16 %v1332
      %v1412 = vunpack.c.l.b16 %v1335
      %v1413 = vunpack.c.l.b16 %v1339
      %v1414 = vunpack.c.l.b16 %v1342
      %v1415 = vunpack.c.l.b16 %v1346
      %v1416 = vunpack.c.l.b16 %v1349
      %v1417 = vunpack.c.l.b16 %v1353
      %v1418 = vunpack.c.l.b16 %v1356
      %v1419 = vunpack.c.l.b16 %v1360
      %v1420 = vunpack.c.l.b16 %v1363
      %v1421 = vunpack.c.l.b16 %v1367
      %v1422 = vunpack.c.l.b16 %v1370
      %v1423 = vunpack.c.l.b16 %v1374
      %v1424 = vunpack.c.l.b16 %v1377
      %v1425 = vunpack.c.l.b16 %v1381
      %v1426 = vunpack.c.l.b16 %v1384
      %v1427 = vunpack.c.l.b16 %v1388
      %v1428 = vunpack.c.l.b16 %v1391
      %v1429 = vunpack.c.l.b16 %v1395
      %v1430 = vunpack.c.l.b16 %v1398
      %v1431 = vpack.c.b16 %v1400, %v1399
      %v1432 = vpack.c.b16 %v1402, %v1401
      %v1433 = vpack.c.b16 %v1404, %v1403
      %v1434 = vpack.c.b16 %v1406, %v1405
      %v1435 = vpack.c.b16 %v1408, %v1407
      %v1436 = vpack.c.b16 %v1410, %v1409
      %v1437 = vpack.c.b16 %v1412, %v1411
      %v1438 = vpack.c.b16 %v1414, %v1413
      %v1439 = vpack.c.b16 %v1416, %v1415
      %v1440 = vpack.c.b16 %v1418, %v1417
      %v1441 = vpack.c.b16 %v1420, %v1419
      %v1442 = vpack.c.b16 %v1422, %v1421
      %v1443 = vpack.c.b16 %v1424, %v1423
      %v1444 = vpack.c.b16 %v1426, %v1425
      %v1445 = vpack.c.b16 %v1428, %v1427
      %v1446 = vpack.c.b16 %v1430, %v1429
      %v1448 = vsel %vm762, %v1431, 0
      %v1451 = vsel %vm762, %v1432, 0
      %v1454 = vsel %vm762, %v1433, 0
      %v1457 = vsel %vm762, %v1434, 0
      %v1460 = vsel %vm762, %v1435, 0
      %v1463 = vsel %vm762, %v1436, 0
      %v1466 = vsel %vm762, %v1437, 0
      %v1469 = vsel %vm762, %v1438, 0
      %v1472 = vsel %vm762, %v1439, 0
      %v1475 = vsel %vm762, %v1440, 0
      %v1478 = vsel %vm762, %v1441, 0
      %v1481 = vsel %vm762, %v1442, 0
      %v1484 = vsel %vm762, %v1443, 0
      %v1487 = vsel %vm762, %v1444, 0
      %v1490 = vsel %vm762, %v1445, 0
      %v1493 = vsel %vm762, %v1446, 0
      %v1496 = vsel %vm811, %v320, 0
      %1498 = vmatprep.subr.bf16.mxu0 0
      %1499 = vmatpush1.bf16.msra.mxu0 0
      %1500 = vmatprep.subr.bf16.mxu0 0
      %1501 = vmatpush1.bf16.msra.mxu0 0
      %1502 = vmatprep.subr.bf16.mxu0 0
      %1503 = vmatpush1.bf16.msra.mxu0 0
      %1504 = vmatprep.subr.bf16.mxu0 0
      %1505 = vmatpush1.bf16.msra.mxu0 0
      %1506 = vmatprep.subr.bf16.mxu0 0
      %1507 = vmatpush1.bf16.msra.mxu0 0
      %1508 = vmatprep.subr.bf16.mxu0 0
      %1509 = vmatpush1.bf16.msra.mxu0 0
      %1510 = vmatprep.subr.bf16.mxu0 0
      %1511 = vmatpush1.bf16.msra.mxu0 0
      %1512 = vmatprep.subr.bf16.mxu0 0
      %1513 = vmatpush1.bf16.msra.mxu0 %v1496
      %1514 = vmatprep.subr.bf16.mxu0 0
      %1515 = vmatpush2.bf16.msra.mxu0 0
      %1516 = vmatprep.subr.bf16.mxu0 0
      %1517 = vmatpush2.bf16.msra.mxu0 0
      %1518 = vmatprep.subr.bf16.mxu0 0
      %1519 = vmatpush2.bf16.msra.mxu0 0
      %1520 = vmatprep.subr.bf16.mxu0 0
      %1521 = vmatpush2.bf16.msra.mxu0 0
      %1522 = vmatprep.subr.bf16.mxu0 0
      %1523 = vmatpush2.bf16.msra.mxu0 0
      %1524 = vmatprep.subr.bf16.mxu0 0
      %1525 = vmatpush2.bf16.msra.mxu0 0
      %1526 = vmatprep.subr.bf16.mxu0 0
      %1527 = vmatpush2.bf16.msra.mxu0 0
      %1528 = vmatprep.subr.bf16.mxu0 0
      %1529 = vmatpush2.bf16.msra.mxu0 0
      %1530 = vmatprep.mubr.bf16.mxu0 0
      %1531 = vmatmul.mubr.bf16.gmra.mxu0 %v1448
      %v1532 = vpop.f32.mrf.mxu0
      %v1533 = vadd.f32 0.0, %v1532
      %v1534 = vpop.f32.mrf.mxu0
      %v1535 = vpop.f32.mrf.mxu0
      %v1536 = vadd.f32 0.0, %v1535
      %v1537 = vpop.f32.mrf.mxu0
      %1538 = vmatprep.mubr.bf16.mxu0 0
      %1539 = vmatmul.mubr.bf16.gmra.mxu0 %v1451
      %v1540 = vpop.f32.mrf.mxu0
      %v1541 = vadd.f32 0.0, %v1540
      %v1542 = vpop.f32.mrf.mxu0
      %v1543 = vpop.f32.mrf.mxu0
      %v1544 = vadd.f32 0.0, %v1543
      %v1545 = vpop.f32.mrf.mxu0
      %1546 = vmatprep.mubr.bf16.mxu0 0
      %1547 = vmatmul.mubr.bf16.gmra.mxu0 %v1454
      %v1548 = vpop.f32.mrf.mxu0
      %v1549 = vadd.f32 0.0, %v1548
      %v1550 = vpop.f32.mrf.mxu0
      %v1551 = vpop.f32.mrf.mxu0
      %v1552 = vadd.f32 0.0, %v1551
      %v1553 = vpop.f32.mrf.mxu0
      %1554 = vmatprep.mubr.bf16.mxu0 0
      %1555 = vmatmul.mubr.bf16.gmra.mxu0 %v1457
      %v1556 = vpop.f32.mrf.mxu0
      %v1557 = vadd.f32 0.0, %v1556
      %v1558 = vpop.f32.mrf.mxu0
      %v1559 = vpop.f32.mrf.mxu0
      %v1560 = vadd.f32 0.0, %v1559
      %v1561 = vpop.f32.mrf.mxu0
      %1562 = vmatprep.mubr.bf16.mxu0 0
      %1563 = vmatmul.mubr.bf16.gmra.mxu0 %v1460
      %v1564 = vpop.f32.mrf.mxu0
      %v1565 = vadd.f32 0.0, %v1564
      %v1566 = vpop.f32.mrf.mxu0
      %v1567 = vpop.f32.mrf.mxu0
      %v1568 = vadd.f32 0.0, %v1567
      %v1569 = vpop.f32.mrf.mxu0
      %1570 = vmatprep.mubr.bf16.mxu0 0
      %1571 = vmatmul.mubr.bf16.gmra.mxu0 %v1463
      %v1572 = vpop.f32.mrf.mxu0
      %v1573 = vadd.f32 0.0, %v1572
      %v1574 = vpop.f32.mrf.mxu0
      %v1575 = vpop.f32.mrf.mxu0
      %v1576 = vadd.f32 0.0, %v1575
      %v1577 = vpop.f32.mrf.mxu0
      %1578 = vmatprep.mubr.bf16.mxu0 0
      %1579 = vmatmul.mubr.bf16.gmra.mxu0 %v1466
      %v1580 = vpop.f32.mrf.mxu0
      %v1581 = vadd.f32 0.0, %v1580
      %v1582 = vpop.f32.mrf.mxu0
      %v1583 = vpop.f32.mrf.mxu0
      %v1584 = vadd.f32 0.0, %v1583
      %v1585 = vpop.f32.mrf.mxu0
      %1586 = vmatprep.mubr.bf16.mxu0 0
      %1587 = vmatmul.mubr.bf16.gmra.mxu0 %v1469
      %v1588 = vpop.f32.mrf.mxu0
      %v1589 = vadd.f32 0.0, %v1588
      %v1590 = vpop.f32.mrf.mxu0
      %v1591 = vpop.f32.mrf.mxu0
      %v1592 = vadd.f32 0.0, %v1591
      %v1593 = vpop.f32.mrf.mxu0
      %1594 = vmatprep.mubr.bf16.mxu0 0
      %1595 = vmatmul.mubr.bf16.gmra.mxu0 %v1472
      %v1596 = vpop.f32.mrf.mxu0
      %v1597 = vadd.f32 0.0, %v1596
      %v1598 = vpop.f32.mrf.mxu0
      %v1599 = vpop.f32.mrf.mxu0
      %v1600 = vadd.f32 0.0, %v1599
      %v1601 = vpop.f32.mrf.mxu0
      %1602 = vmatprep.mubr.bf16.mxu0 0
      %1603 = vmatmul.mubr.bf16.gmra.mxu0 %v1475
      %v1604 = vpop.f32.mrf.mxu0
      %v1605 = vadd.f32 0.0, %v1604
      %v1606 = vpop.f32.mrf.mxu0
      %v1607 = vpop.f32.mrf.mxu0
      %v1608 = vadd.f32 0.0, %v1607
      %v1609 = vpop.f32.mrf.mxu0
      %1610 = vmatprep.mubr.bf16.mxu0 0
      %1611 = vmatmul.mubr.bf16.gmra.mxu0 %v1478
      %v1612 = vpop.f32.mrf.mxu0
      %v1613 = vadd.f32 0.0, %v1612
      %v1614 = vpop.f32.mrf.mxu0
      %v1615 = vpop.f32.mrf.mxu0
      %v1616 = vadd.f32 0.0, %v1615
      %v1617 = vpop.f32.mrf.mxu0
      %1618 = vmatprep.mubr.bf16.mxu0 0
      %1619 = vmatmul.mubr.bf16.gmra.mxu0 %v1481
      %v1620 = vpop.f32.mrf.mxu0
      %v1621 = vadd.f32 0.0, %v1620
      %v1622 = vpop.f32.mrf.mxu0
      %v1623 = vpop.f32.mrf.mxu0
      %v1624 = vadd.f32 0.0, %v1623
      %v1625 = vpop.f32.mrf.mxu0
      %1626 = vmatprep.mubr.bf16.mxu0 0
      %1627 = vmatmul.mubr.bf16.gmra.mxu0 %v1484
      %v1628 = vpop.f32.mrf.mxu0
      %v1629 = vadd.f32 0.0, %v1628
      %v1630 = vpop.f32.mrf.mxu0
      %v1631 = vpop.f32.mrf.mxu0
      %v1632 = vadd.f32 0.0, %v1631
      %v1633 = vpop.f32.mrf.mxu0
      %1634 = vmatprep.mubr.bf16.mxu0 0
      %1635 = vmatmul.mubr.bf16.gmra.mxu0 %v1487
      %v1636 = vpop.f32.mrf.mxu0
      %v1637 = vadd.f32 0.0, %v1636
      %v1638 = vpop.f32.mrf.mxu0
      %v1639 = vpop.f32.mrf.mxu0
      %v1640 = vadd.f32 0.0, %v1639
      %v1641 = vpop.f32.mrf.mxu0
      %1642 = vmatprep.mubr.bf16.mxu0 0
      %1643 = vmatmul.mubr.bf16.gmra.mxu0 %v1490
      %v1644 = vpop.f32.mrf.mxu0
      %v1645 = vadd.f32 0.0, %v1644
      %v1646 = vpop.f32.mrf.mxu0
      %v1647 = vpop.f32.mrf.mxu0
      %v1648 = vadd.f32 0.0, %v1647
      %v1649 = vpop.f32.mrf.mxu0
      %1650 = vmatprep.mubr.bf16.mxu0 0
      %1651 = vmatmul.mubr.bf16.gmra.mxu0 %v1493
      %v1652 = vpop.f32.mrf.mxu0
      %v1653 = vadd.f32 0.0, %v1652
      %v1654 = vpop.f32.mrf.mxu0
      %v1655 = vpop.f32.mrf.mxu0
      %v1656 = vadd.f32 0.0, %v1655
      %v1657 = vpop.f32.mrf.mxu0
      %1658 = vdwg.mxu0
      %v1659 = vadd.f32 %v1142, %v1533
      %v1660 = vadd.f32 %v1145, %v1536
      %v1661 = vadd.f32 %v1150, %v1541
      %v1662 = vadd.f32 %v1153, %v1544
      %v1663 = vadd.f32 %v1158, %v1549
      %v1664 = vadd.f32 %v1161, %v1552
      %v1665 = vadd.f32 %v1166, %v1557
      %v1666 = vadd.f32 %v1169, %v1560
      %v1667 = vadd.f32 %v1174, %v1565
      %v1668 = vadd.f32 %v1177, %v1568
      %v1669 = vadd.f32 %v1182, %v1573
      %v1670 = vadd.f32 %v1185, %v1576
      %v1671 = vadd.f32 %v1190, %v1581
      %v1672 = vadd.f32 %v1193, %v1584
      %v1673 = vadd.f32 %v1198, %v1589
      %v1674 = vadd.f32 %v1201, %v1592
      %v1675 = vadd.f32 %v1206, %v1597
      %v1676 = vadd.f32 %v1209, %v1600
      %v1677 = vadd.f32 %v1214, %v1605
      %v1678 = vadd.f32 %v1217, %v1608
      %v1679 = vadd.f32 %v1222, %v1613
      %v1680 = vadd.f32 %v1225, %v1616
      %v1681 = vadd.f32 %v1230, %v1621
      %v1682 = vadd.f32 %v1233, %v1624
      %v1683 = vadd.f32 %v1238, %v1629
      %v1684 = vadd.f32 %v1241, %v1632
      %v1685 = vadd.f32 %v1246, %v1637
      %v1686 = vadd.f32 %v1249, %v1640
      %v1687 = vadd.f32 %v1254, %v1645
      %v1688 = vadd.f32 %v1257, %v1648
      %v1689 = vadd.f32 %v1262, %v1653
      %v1690 = vadd.f32 %v1265, %v1656
      %v1693 = vunpack.c.l.b16 %v312
      %v1694 = vunpack.c.l.b16 %v313
      %v1695 = vpack.c.b16 %v1694, %v1693
      %v1697 = vsel %vm762, %v1695, 0
      %v1700 = vsel %vm811, %v321, 0
      %1702 = vmatprep.subr.bf16.mxu0 0
      %1703 = vmatpush1.bf16.msra.mxu0 0
      %1704 = vmatprep.subr.bf16.mxu0 0
      %1705 = vmatpush1.bf16.msra.mxu0 0
      %1706 = vmatprep.subr.bf16.mxu0 0
      %1707 = vmatpush1.bf16.msra.mxu0 0
      %1708 = vmatprep.subr.bf16.mxu0 0
      %1709 = vmatpush1.bf16.msra.mxu0 0
      %1710 = vmatprep.subr.bf16.mxu0 0
      %1711 = vmatpush1.bf16.msra.mxu0 0
      %1712 = vmatprep.subr.bf16.mxu0 0
      %1713 = vmatpush1.bf16.msra.mxu0 0
      %1714 = vmatprep.subr.bf16.mxu0 0
      %1715 = vmatpush1.bf16.msra.mxu0 0
      %1716 = vmatprep.subr.bf16.mxu0 0
      %1717 = vmatpush1.bf16.msra.mxu0 %v1700
      %1718 = vmatprep.subr.bf16.mxu0 0
      %1719 = vmatpush2.bf16.msra.mxu0 0
      %1720 = vmatprep.subr.bf16.mxu0 0
      %1721 = vmatpush2.bf16.msra.mxu0 0
      %1722 = vmatprep.subr.bf16.mxu0 0
      %1723 = vmatpush2.bf16.msra.mxu0 0
      %1724 = vmatprep.subr.bf16.mxu0 0
      %1725 = vmatpush2.bf16.msra.mxu0 0
      %1726 = vmatprep.subr.bf16.mxu0 0
      %1727 = vmatpush2.bf16.msra.mxu0 0
      %1728 = vmatprep.subr.bf16.mxu0 0
      %1729 = vmatpush2.bf16.msra.mxu0 0
      %1730 = vmatprep.subr.bf16.mxu0 0
      %1731 = vmatpush2.bf16.msra.mxu0 0
      %1732 = vmatprep.subr.bf16.mxu0 0
      %1733 = vmatpush2.bf16.msra.mxu0 0
      %1734 = vmatprep.mubr.bf16.mxu0 0
      %1735 = vmatmul.mubr.bf16.gmra.mxu0 %v1060
      %v1736 = vpop.f32.mrf.mxu0
      %v1737 = vadd.f32 0.0, %v1736
      %v1738 = vpop.f32.mrf.mxu0
      %v1739 = vpop.f32.mrf.mxu0
      %v1740 = vadd.f32 0.0, %v1739
      %v1741 = vpop.f32.mrf.mxu0
      %1742 = vmatprep.mubr.bf16.mxu0 0
      %1743 = vmatmul.mubr.bf16.gmra.mxu0 %v1063
      %v1744 = vpop.f32.mrf.mxu0
      %v1745 = vadd.f32 0.0, %v1744
      %v1746 = vpop.f32.mrf.mxu0
      %v1747 = vpop.f32.mrf.mxu0
      %v1748 = vadd.f32 0.0, %v1747
      %v1749 = vpop.f32.mrf.mxu0
      %1750 = vmatprep.mubr.bf16.mxu0 0
      %1751 = vmatmul.mubr.bf16.gmra.mxu0 %v1066
      %v1752 = vpop.f32.mrf.mxu0
      %v1753 = vadd.f32 0.0, %v1752
      %v1754 = vpop.f32.mrf.mxu0
      %v1755 = vpop.f32.mrf.mxu0
      %v1756 = vadd.f32 0.0, %v1755
      %v1757 = vpop.f32.mrf.mxu0
      %1758 = vmatprep.mubr.bf16.mxu0 0
      %1759 = vmatmul.mubr.bf16.gmra.mxu0 %v1069
      %v1760 = vpop.f32.mrf.mxu0
      %v1761 = vadd.f32 0.0, %v1760
      %v1762 = vpop.f32.mrf.mxu0
      %v1763 = vpop.f32.mrf.mxu0
      %v1764 = vadd.f32 0.0, %v1763
      %v1765 = vpop.f32.mrf.mxu0
      %1766 = vmatprep.mubr.bf16.mxu0 0
      %1767 = vmatmul.mubr.bf16.gmra.mxu0 %v1072
      %v1768 = vpop.f32.mrf.mxu0
      %v1769 = vadd.f32 0.0, %v1768
      %v1770 = vpop.f32.mrf.mxu0
      %v1771 = vpop.f32.mrf.mxu0
      %v1772 = vadd.f32 0.0, %v1771
      %v1773 = vpop.f32.mrf.mxu0
      %1774 = vmatprep.mubr.bf16.mxu0 0
      %1775 = vmatmul.mubr.bf16.gmra.mxu0 %v1075
      %v1776 = vpop.f32.mrf.mxu0
      %v1777 = vadd.f32 0.0, %v1776
      %v1778 = vpop.f32.mrf.mxu0
      %v1779 = vpop.f32.mrf.mxu0
      %v1780 = vadd.f32 0.0, %v1779
      %v1781 = vpop.f32.mrf.mxu0
      %1782 = vmatprep.mubr.bf16.mxu0 0
      %1783 = vmatmul.mubr.bf16.gmra.mxu0 %v1078
      %v1784 = vpop.f32.mrf.mxu0
      %v1785 = vadd.f32 0.0, %v1784
      %v1786 = vpop.f32.mrf.mxu0
      %v1787 = vpop.f32.mrf.mxu0
      %v1788 = vadd.f32 0.0, %v1787
      %v1789 = vpop.f32.mrf.mxu0
      %1790 = vmatprep.mubr.bf16.mxu0 0
      %1791 = vmatmul.mubr.bf16.gmra.mxu0 %v1081
      %v1792 = vpop.f32.mrf.mxu0
      %v1793 = vadd.f32 0.0, %v1792
      %v1794 = vpop.f32.mrf.mxu0
      %v1795 = vpop.f32.mrf.mxu0
      %v1796 = vadd.f32 0.0, %v1795
      %v1797 = vpop.f32.mrf.mxu0
      %1798 = vmatprep.mubr.bf16.mxu0 0
      %1799 = vmatmul.mubr.bf16.gmra.mxu0 %v1084
      %v1800 = vpop.f32.mrf.mxu0
      %v1801 = vadd.f32 0.0, %v1800
      %v1802 = vpop.f32.mrf.mxu0
      %v1803 = vpop.f32.mrf.mxu0
      %v1804 = vadd.f32 0.0, %v1803
      %v1805 = vpop.f32.mrf.mxu0
      %1806 = vmatprep.mubr.bf16.mxu0 0
      %1807 = vmatmul.mubr.bf16.gmra.mxu0 %v1087
      %v1808 = vpop.f32.mrf.mxu0
      %v1809 = vadd.f32 0.0, %v1808
      %v1810 = vpop.f32.mrf.mxu0
      %v1811 = vpop.f32.mrf.mxu0
      %v1812 = vadd.f32 0.0, %v1811
      %v1813 = vpop.f32.mrf.mxu0
      %1814 = vmatprep.mubr.bf16.mxu0 0
      %1815 = vmatmul.mubr.bf16.gmra.mxu0 %v1090
      %v1816 = vpop.f32.mrf.mxu0
      %v1817 = vadd.f32 0.0, %v1816
      %v1818 = vpop.f32.mrf.mxu0
      %v1819 = vpop.f32.mrf.mxu0
      %v1820 = vadd.f32 0.0, %v1819
      %v1821 = vpop.f32.mrf.mxu0
      %1822 = vmatprep.mubr.bf16.mxu0 0
      %1823 = vmatmul.mubr.bf16.gmra.mxu0 %v1093
      %v1824 = vpop.f32.mrf.mxu0
      %v1825 = vadd.f32 0.0, %v1824
      %v1826 = vpop.f32.mrf.mxu0
      %v1827 = vpop.f32.mrf.mxu0
      %v1828 = vadd.f32 0.0, %v1827
      %v1829 = vpop.f32.mrf.mxu0
      %1830 = vmatprep.mubr.bf16.mxu0 0
      %1831 = vmatmul.mubr.bf16.gmra.mxu0 %v1096
      %v1832 = vpop.f32.mrf.mxu0
      %v1833 = vadd.f32 0.0, %v1832
      %v1834 = vpop.f32.mrf.mxu0
      %v1835 = vpop.f32.mrf.mxu0
      %v1836 = vadd.f32 0.0, %v1835
      %v1837 = vpop.f32.mrf.mxu0
      %1838 = vmatprep.mubr.bf16.mxu0 0
      %1839 = vmatmul.mubr.bf16.gmra.mxu0 %v1099
      %v1840 = vpop.f32.mrf.mxu0
      %v1841 = vadd.f32 0.0, %v1840
      %v1842 = vpop.f32.mrf.mxu0
      %v1843 = vpop.f32.mrf.mxu0
      %v1844 = vadd.f32 0.0, %v1843
      %v1845 = vpop.f32.mrf.mxu0
      %1846 = vmatprep.mubr.bf16.mxu0 0
      %1847 = vmatmul.mubr.bf16.gmra.mxu0 %v1102
      %v1848 = vpop.f32.mrf.mxu0
      %v1849 = vadd.f32 0.0, %v1848
      %v1850 = vpop.f32.mrf.mxu0
      %v1851 = vpop.f32.mrf.mxu0
      %v1852 = vadd.f32 0.0, %v1851
      %v1853 = vpop.f32.mrf.mxu0
      %1854 = vmatprep.mubr.bf16.mxu0 0
      %1855 = vmatmul.mubr.bf16.gmra.mxu0 %v1697
      %v1856 = vpop.f32.mrf.mxu0
      %v1857 = vadd.f32 0.0, %v1856
      %v1858 = vpop.f32.mrf.mxu0
      %v1859 = vpop.f32.mrf.mxu0
      %v1860 = vadd.f32 0.0, %v1859
      %v1861 = vpop.f32.mrf.mxu0
      %1862 = vdwg.mxu0
      %v1863 = vadd.f32 %v1659, %v1737
      %v1864 = vadd.f32 %v1660, %v1740
      %v1865 = vadd.f32 %v1661, %v1745
      %v1866 = vadd.f32 %v1662, %v1748
      %v1867 = vadd.f32 %v1663, %v1753
      %v1868 = vadd.f32 %v1664, %v1756
      %v1869 = vadd.f32 %v1665, %v1761
      %v1870 = vadd.f32 %v1666, %v1764
      %v1871 = vadd.f32 %v1667, %v1769
      %v1872 = vadd.f32 %v1668, %v1772
      %v1873 = vadd.f32 %v1669, %v1777
      %v1874 = vadd.f32 %v1670, %v1780
      %v1875 = vadd.f32 %v1671, %v1785
      %v1876 = vadd.f32 %v1672, %v1788
      %v1877 = vadd.f32 %v1673, %v1793
      %v1878 = vadd.f32 %v1674, %v1796
      %v1879 = vadd.f32 %v1675, %v1801
      %v1880 = vadd.f32 %v1676, %v1804
      %v1881 = vadd.f32 %v1677, %v1809
      %v1882 = vadd.f32 %v1678, %v1812
      %v1883 = vadd.f32 %v1679, %v1817
      %v1884 = vadd.f32 %v1680, %v1820
      %v1885 = vadd.f32 %v1681, %v1825
      %v1886 = vadd.f32 %v1682, %v1828
      %v1887 = vadd.f32 %v1683, %v1833
      %v1888 = vadd.f32 %v1684, %v1836
      %v1889 = vadd.f32 %v1685, %v1841
      %v1890 = vadd.f32 %v1686, %v1844
      %v1891 = vadd.f32 %v1687, %v1849
      %v1892 = vadd.f32 %v1688, %v1852
      %v1893 = vadd.f32 %v1689, %v1857
      %v1894 = vadd.f32 %v1690, %v1860
      %v1896 = vshrl.u32 %v312, 16
      %v1898 = vrot.slane %v1896, 4
      %v1899 = vshll.u32 %v312, 16
      %v1901 = vrot.slane %v1899, 5
      %v1902 = vor.u32 %v1898, %v1901
      %v1903 = vrot.slane %v1902, 4
      %v1905 = vshll.u32 %v313, 16
      %v1907 = vrot.slane %v1905, 5
      %v1908 = vsel %vm329, %v1903, %v1907
      %v1909 = vshrl.u32 %v313, 16
      %v1911 = vrot.slane %v1909, 4
      %v1912 = vor.u32 %v1911, %v1907
      %v1913 = vrot.slane %v1912, 4
      %v1915 = vshll.u32 %v314, 16
      %v1917 = vrot.slane %v1915, 5
      %v1918 = vsel %vm329, %v1913, %v1917
      %v1919 = vunpack.c.l.b16 %v1908
      %v1920 = vunpack.c.l.b16 %v1918
      %v1921 = vpack.c.b16 %v1920, %v1919
      %v1923 = vsel %vm762, %v1921, 0
      %v1926 = vsel %vm811, %v322, 0
      %1928 = vmatprep.subr.bf16.mxu0 0
      %1929 = vmatpush1.bf16.msra.mxu0 0
      %1930 = vmatprep.subr.bf16.mxu0 0
      %1931 = vmatpush1.bf16.msra.mxu0 0
      %1932 = vmatprep.subr.bf16.mxu0 0
      %1933 = vmatpush1.bf16.msra.mxu0 0
      %1934 = vmatprep.subr.bf16.mxu0 0
      %1935 = vmatpush1.bf16.msra.mxu0 0
      %1936 = vmatprep.subr.bf16.mxu0 0
      %1937 = vmatpush1.bf16.msra.mxu0 0
      %1938 = vmatprep.subr.bf16.mxu0 0
      %1939 = vmatpush1.bf16.msra.mxu0 0
      %1940 = vmatprep.subr.bf16.mxu0 0
      %1941 = vmatpush1.bf16.msra.mxu0 0
      %1942 = vmatprep.subr.bf16.mxu0 0
      %1943 = vmatpush1.bf16.msra.mxu0 %v1926
      %1944 = vmatprep.subr.bf16.mxu0 0
      %1945 = vmatpush2.bf16.msra.mxu0 0
      %1946 = vmatprep.subr.bf16.mxu0 0
      %1947 = vmatpush2.bf16.msra.mxu0 0
      %1948 = vmatprep.subr.bf16.mxu0 0
      %1949 = vmatpush2.bf16.msra.mxu0 0
      %1950 = vmatprep.subr.bf16.mxu0 0
      %1951 = vmatpush2.bf16.msra.mxu0 0
      %1952 = vmatprep.subr.bf16.mxu0 0
      %1953 = vmatpush2.bf16.msra.mxu0 0
      %1954 = vmatprep.subr.bf16.mxu0 0
      %1955 = vmatpush2.bf16.msra.mxu0 0
      %1956 = vmatprep.subr.bf16.mxu0 0
      %1957 = vmatpush2.bf16.msra.mxu0 0
      %1958 = vmatprep.subr.bf16.mxu0 0
      %1959 = vmatpush2.bf16.msra.mxu0 0
      %1960 = vmatprep.mubr.bf16.mxu0 0
      %1961 = vmatmul.mubr.bf16.gmra.mxu0 %v767
      %v1962 = vpop.f32.mrf.mxu0
      %v1963 = vadd.f32 0.0, %v1962
      %v1964 = vpop.f32.mrf.mxu0
      %v1965 = vpop.f32.mrf.mxu0
      %v1966 = vadd.f32 0.0, %v1965
      %v1967 = vpop.f32.mrf.mxu0
      %1968 = vmatprep.mubr.bf16.mxu0 0
      %1969 = vmatmul.mubr.bf16.gmra.mxu0 %v770
      %v1970 = vpop.f32.mrf.mxu0
      %v1971 = vadd.f32 0.0, %v1970
      %v1972 = vpop.f32.mrf.mxu0
      %v1973 = vpop.f32.mrf.mxu0
      %v1974 = vadd.f32 0.0, %v1973
      %v1975 = vpop.f32.mrf.mxu0
      %1976 = vmatprep.mubr.bf16.mxu0 0
      %1977 = vmatmul.mubr.bf16.gmra.mxu0 %v773
      %v1978 = vpop.f32.mrf.mxu0
      %v1979 = vadd.f32 0.0, %v1978
      %v1980 = vpop.f32.mrf.mxu0
      %v1981 = vpop.f32.mrf.mxu0
      %v1982 = vadd.f32 0.0, %v1981
      %v1983 = vpop.f32.mrf.mxu0
      %1984 = vmatprep.mubr.bf16.mxu0 0
      %1985 = vmatmul.mubr.bf16.gmra.mxu0 %v776
      %v1986 = vpop.f32.mrf.mxu0
      %v1987 = vadd.f32 0.0, %v1986
      %v1988 = vpop.f32.mrf.mxu0
      %v1989 = vpop.f32.mrf.mxu0
      %v1990 = vadd.f32 0.0, %v1989
      %v1991 = vpop.f32.mrf.mxu0
      %1992 = vmatprep.mubr.bf16.mxu0 0
      %1993 = vmatmul.mubr.bf16.gmra.mxu0 %v779
      %v1994 = vpop.f32.mrf.mxu0
      %v1995 = vadd.f32 0.0, %v1994
      %v1996 = vpop.f32.mrf.mxu0
      %v1997 = vpop.f32.mrf.mxu0
      %v1998 = vadd.f32 0.0, %v1997
      %v1999 = vpop.f32.mrf.mxu0
      %2000 = vmatprep.mubr.bf16.mxu0 0
      %2001 = vmatmul.mubr.bf16.gmra.mxu0 %v782
      %v2002 = vpop.f32.mrf.mxu0
      %v2003 = vadd.f32 0.0, %v2002
      %v2004 = vpop.f32.mrf.mxu0
      %v2005 = vpop.f32.mrf.mxu0
      %v2006 = vadd.f32 0.0, %v2005
      %v2007 = vpop.f32.mrf.mxu0
      %2008 = vmatprep.mubr.bf16.mxu0 0
      %2009 = vmatmul.mubr.bf16.gmra.mxu0 %v785
      %v2010 = vpop.f32.mrf.mxu0
      %v2011 = vadd.f32 0.0, %v2010
      %v2012 = vpop.f32.mrf.mxu0
      %v2013 = vpop.f32.mrf.mxu0
      %v2014 = vadd.f32 0.0, %v2013
      %v2015 = vpop.f32.mrf.mxu0
      %2016 = vmatprep.mubr.bf16.mxu0 0
      %2017 = vmatmul.mubr.bf16.gmra.mxu0 %v788
      %v2018 = vpop.f32.mrf.mxu0
      %v2019 = vadd.f32 0.0, %v2018
      %v2020 = vpop.f32.mrf.mxu0
      %v2021 = vpop.f32.mrf.mxu0
      %v2022 = vadd.f32 0.0, %v2021
      %v2023 = vpop.f32.mrf.mxu0
      %2024 = vmatprep.mubr.bf16.mxu0 0
      %2025 = vmatmul.mubr.bf16.gmra.mxu0 %v791
      %v2026 = vpop.f32.mrf.mxu0
      %v2027 = vadd.f32 0.0, %v2026
      %v2028 = vpop.f32.mrf.mxu0
      %v2029 = vpop.f32.mrf.mxu0
      %v2030 = vadd.f32 0.0, %v2029
      %v2031 = vpop.f32.mrf.mxu0
      %2032 = vmatprep.mubr.bf16.mxu0 0
      %2033 = vmatmul.mubr.bf16.gmra.mxu0 %v794
      %v2034 = vpop.f32.mrf.mxu0
      %v2035 = vadd.f32 0.0, %v2034
      %v2036 = vpop.f32.mrf.mxu0
      %v2037 = vpop.f32.mrf.mxu0
      %v2038 = vadd.f32 0.0, %v2037
      %v2039 = vpop.f32.mrf.mxu0
      %2040 = vmatprep.mubr.bf16.mxu0 0
      %2041 = vmatmul.mubr.bf16.gmra.mxu0 %v797
      %v2042 = vpop.f32.mrf.mxu0
      %v2043 = vadd.f32 0.0, %v2042
      %v2044 = vpop.f32.mrf.mxu0
      %v2045 = vpop.f32.mrf.mxu0
      %v2046 = vadd.f32 0.0, %v2045
      %v2047 = vpop.f32.mrf.mxu0
      %2048 = vmatprep.mubr.bf16.mxu0 0
      %2049 = vmatmul.mubr.bf16.gmra.mxu0 %v800
      %v2050 = vpop.f32.mrf.mxu0
      %v2051 = vadd.f32 0.0, %v2050
      %v2052 = vpop.f32.mrf.mxu0
      %v2053 = vpop.f32.mrf.mxu0
      %v2054 = vadd.f32 0.0, %v2053
      %v2055 = vpop.f32.mrf.mxu0
      %2056 = vmatprep.mubr.bf16.mxu0 0
      %2057 = vmatmul.mubr.bf16.gmra.mxu0 %v803
      %v2058 = vpop.f32.mrf.mxu0
      %v2059 = vadd.f32 0.0, %v2058
      %v2060 = vpop.f32.mrf.mxu0
      %v2061 = vpop.f32.mrf.mxu0
      %v2062 = vadd.f32 0.0, %v2061
      %v2063 = vpop.f32.mrf.mxu0
      %2064 = vmatprep.mubr.bf16.mxu0 0
      %2065 = vmatmul.mubr.bf16.gmra.mxu0 %v806
      %v2066 = vpop.f32.mrf.mxu0
      %v2067 = vadd.f32 0.0, %v2066
      %v2068 = vpop.f32.mrf.mxu0
      %v2069 = vpop.f32.mrf.mxu0
      %v2070 = vadd.f32 0.0, %v2069
      %v2071 = vpop.f32.mrf.mxu0
      %2072 = vmatprep.mubr.bf16.mxu0 0
      %2073 = vmatmul.mubr.bf16.gmra.mxu0 %v809
      %v2074 = vpop.f32.mrf.mxu0
      %v2075 = vadd.f32 0.0, %v2074
      %v2076 = vpop.f32.mrf.mxu0
      %v2077 = vpop.f32.mrf.mxu0
      %v2078 = vadd.f32 0.0, %v2077
      %v2079 = vpop.f32.mrf.mxu0
      %2080 = vmatprep.mubr.bf16.mxu0 0
      %2081 = vmatmul.mubr.bf16.gmra.mxu0 %v1923
      %v2082 = vpop.f32.mrf.mxu0
      %v2083 = vadd.f32 0.0, %v2082
      %v2084 = vpop.f32.mrf.mxu0
      %v2085 = vpop.f32.mrf.mxu0
      %v2086 = vadd.f32 0.0, %v2085
      %v2087 = vpop.f32.mrf.mxu0
      %2088 = vdwg.mxu0
      %v2089 = vadd.f32 %v1863, %v1963
      %v2090 = vadd.f32 %v1864, %v1966
      %v2091 = vadd.f32 %v1865, %v1971
      %v2092 = vadd.f32 %v1866, %v1974
      %v2093 = vadd.f32 %v1867, %v1979
      %v2094 = vadd.f32 %v1868, %v1982
      %v2095 = vadd.f32 %v1869, %v1987
      %v2096 = vadd.f32 %v1870, %v1990
      %v2097 = vadd.f32 %v1871, %v1995
      %v2098 = vadd.f32 %v1872, %v1998
      %v2099 = vadd.f32 %v1873, %v2003
      %v2100 = vadd.f32 %v1874, %v2006
      %v2101 = vadd.f32 %v1875, %v2011
      %v2102 = vadd.f32 %v1876, %v2014
      %v2103 = vadd.f32 %v1877, %v2019
      %v2104 = vadd.f32 %v1878, %v2022
      %v2105 = vadd.f32 %v1879, %v2027
      %v2106 = vadd.f32 %v1880, %v2030
      %v2107 = vadd.f32 %v1881, %v2035
      %v2108 = vadd.f32 %v1882, %v2038
      %v2109 = vadd.f32 %v1883, %v2043
      %v2110 = vadd.f32 %v1884, %v2046
      %v2111 = vadd.f32 %v1885, %v2051
      %v2112 = vadd.f32 %v1886, %v2054
      %v2113 = vadd.f32 %v1887, %v2059
      %v2114 = vadd.f32 %v1888, %v2062
      %v2115 = vadd.f32 %v1889, %v2067
      %v2116 = vadd.f32 %v1890, %v2070
      %v2117 = vadd.f32 %v1891, %v2075
      %v2118 = vadd.f32 %v1892, %v2078
      %v2119 = vadd.f32 %v1893, %v2083
      %v2120 = vadd.f32 %v1894, %v2086
      %v2122 = vrot.slane %v312, 5
      %v2123 = vrot.slane %v2122, 4
      %v2124 = vrot.slane %v313, 5
      %v2125 = vsel %vm1286, %v2123, %v2124
      %v2126 = vrot.slane %v2124, 4
      %v2127 = vrot.slane %v314, 5
      %v2128 = vsel %vm1286, %v2126, %v2127
      %v2129 = vunpack.c.l.b16 %v2125
      %v2130 = vunpack.c.l.b16 %v2128
      %v2131 = vpack.c.b16 %v2130, %v2129
      %v2133 = vsel %vm762, %v2131, 0
      %v2136 = vsel %vm811, %v323, 0
      %2138 = vmatprep.subr.bf16.mxu0 0
      %2139 = vmatpush1.bf16.msra.mxu0 0
      %2140 = vmatprep.subr.bf16.mxu0 0
      %2141 = vmatpush1.bf16.msra.mxu0 0
      %2142 = vmatprep.subr.bf16.mxu0 0
      %2143 = vmatpush1.bf16.msra.mxu0 0
      %2144 = vmatprep.subr.bf16.mxu0 0
      %2145 = vmatpush1.bf16.msra.mxu0 0
      %2146 = vmatprep.subr.bf16.mxu0 0
      %2147 = vmatpush1.bf16.msra.mxu0 0
      %2148 = vmatprep.subr.bf16.mxu0 0
      %2149 = vmatpush1.bf16.msra.mxu0 0
      %2150 = vmatprep.subr.bf16.mxu0 0
      %2151 = vmatpush1.bf16.msra.mxu0 0
      %2152 = vmatprep.subr.bf16.mxu0 0
      %2153 = vmatpush1.bf16.msra.mxu0 %v2136
      %2154 = vmatprep.subr.bf16.mxu0 0
      %2155 = vmatpush2.bf16.msra.mxu0 0
      %2156 = vmatprep.subr.bf16.mxu0 0
      %2157 = vmatpush2.bf16.msra.mxu0 0
      %2158 = vmatprep.subr.bf16.mxu0 0
      %2159 = vmatpush2.bf16.msra.mxu0 0
      %2160 = vmatprep.subr.bf16.mxu0 0
      %2161 = vmatpush2.bf16.msra.mxu0 0
      %2162 = vmatprep.subr.bf16.mxu0 0
      %2163 = vmatpush2.bf16.msra.mxu0 0
      %2164 = vmatprep.subr.bf16.mxu0 0
      %2165 = vmatpush2.bf16.msra.mxu0 0
      %2166 = vmatprep.subr.bf16.mxu0 0
      %2167 = vmatpush2.bf16.msra.mxu0 0
      %2168 = vmatprep.subr.bf16.mxu0 0
      %2169 = vmatpush2.bf16.msra.mxu0 0
      %2170 = vmatprep.mubr.bf16.mxu0 0
      %2171 = vmatmul.mubr.bf16.gmra.mxu0 %v1451
      %v2172 = vpop.f32.mrf.mxu0
      %v2173 = vadd.f32 0.0, %v2172
      %v2174 = vpop.f32.mrf.mxu0
      %v2175 = vpop.f32.mrf.mxu0
      %v2176 = vadd.f32 0.0, %v2175
      %v2177 = vpop.f32.mrf.mxu0
      %2178 = vmatprep.mubr.bf16.mxu0 0
      %2179 = vmatmul.mubr.bf16.gmra.mxu0 %v1454
      %v2180 = vpop.f32.mrf.mxu0
      %v2181 = vadd.f32 0.0, %v2180
      %v2182 = vpop.f32.mrf.mxu0
      %v2183 = vpop.f32.mrf.mxu0
      %v2184 = vadd.f32 0.0, %v2183
      %v2185 = vpop.f32.mrf.mxu0
      %2186 = vmatprep.mubr.bf16.mxu0 0
      %2187 = vmatmul.mubr.bf16.gmra.mxu0 %v1457
      %v2188 = vpop.f32.mrf.mxu0
      %v2189 = vadd.f32 0.0, %v2188
      %v2190 = vpop.f32.mrf.mxu0
      %v2191 = vpop.f32.mrf.mxu0
      %v2192 = vadd.f32 0.0, %v2191
      %v2193 = vpop.f32.mrf.mxu0
      %2194 = vmatprep.mubr.bf16.mxu0 0
      %2195 = vmatmul.mubr.bf16.gmra.mxu0 %v1460
      %v2196 = vpop.f32.mrf.mxu0
      %v2197 = vadd.f32 0.0, %v2196
      %v2198 = vpop.f32.mrf.mxu0
      %v2199 = vpop.f32.mrf.mxu0
      %v2200 = vadd.f32 0.0, %v2199
      %v2201 = vpop.f32.mrf.mxu0
      %2202 = vmatprep.mubr.bf16.mxu0 0
      %2203 = vmatmul.mubr.bf16.gmra.mxu0 %v1463
      %v2204 = vpop.f32.mrf.mxu0
      %v2205 = vadd.f32 0.0, %v2204
      %v2206 = vpop.f32.mrf.mxu0
      %v2207 = vpop.f32.mrf.mxu0
      %v2208 = vadd.f32 0.0, %v2207
      %v2209 = vpop.f32.mrf.mxu0
      %2210 = vmatprep.mubr.bf16.mxu0 0
      %2211 = vmatmul.mubr.bf16.gmra.mxu0 %v1466
      %v2212 = vpop.f32.mrf.mxu0
      %v2213 = vadd.f32 0.0, %v2212
      %v2214 = vpop.f32.mrf.mxu0
      %v2215 = vpop.f32.mrf.mxu0
      %v2216 = vadd.f32 0.0, %v2215
      %v2217 = vpop.f32.mrf.mxu0
      %2218 = vmatprep.mubr.bf16.mxu0 0
      %2219 = vmatmul.mubr.bf16.gmra.mxu0 %v1469
      %v2220 = vpop.f32.mrf.mxu0
      %v2221 = vadd.f32 0.0, %v2220
      %v2222 = vpop.f32.mrf.mxu0
      %v2223 = vpop.f32.mrf.mxu0
      %v2224 = vadd.f32 0.0, %v2223
      %v2225 = vpop.f32.mrf.mxu0
      %2226 = vmatprep.mubr.bf16.mxu0 0
      %2227 = vmatmul.mubr.bf16.gmra.mxu0 %v1472
      %v2228 = vpop.f32.mrf.mxu0
      %v2229 = vadd.f32 0.0, %v2228
      %v2230 = vpop.f32.mrf.mxu0
      %v2231 = vpop.f32.mrf.mxu0
      %v2232 = vadd.f32 0.0, %v2231
      %v2233 = vpop.f32.mrf.mxu0
      %2234 = vmatprep.mubr.bf16.mxu0 0
      %2235 = vmatmul.mubr.bf16.gmra.mxu0 %v1475
      %v2236 = vpop.f32.mrf.mxu0
      %v2237 = vadd.f32 0.0, %v2236
      %v2238 = vpop.f32.mrf.mxu0
      %v2239 = vpop.f32.mrf.mxu0
      %v2240 = vadd.f32 0.0, %v2239
      %v2241 = vpop.f32.mrf.mxu0
      %2242 = vmatprep.mubr.bf16.mxu0 0
      %2243 = vmatmul.mubr.bf16.gmra.mxu0 %v1478
      %v2244 = vpop.f32.mrf.mxu0
      %v2245 = vadd.f32 0.0, %v2244
      %v2246 = vpop.f32.mrf.mxu0
      %v2247 = vpop.f32.mrf.mxu0
      %v2248 = vadd.f32 0.0, %v2247
      %v2249 = vpop.f32.mrf.mxu0
      %2250 = vmatprep.mubr.bf16.mxu0 0
      %2251 = vmatmul.mubr.bf16.gmra.mxu0 %v1481
      %v2252 = vpop.f32.mrf.mxu0
      %v2253 = vadd.f32 0.0, %v2252
      %v2254 = vpop.f32.mrf.mxu0
      %v2255 = vpop.f32.mrf.mxu0
      %v2256 = vadd.f32 0.0, %v2255
      %v2257 = vpop.f32.mrf.mxu0
      %2258 = vmatprep.mubr.bf16.mxu0 0
      %2259 = vmatmul.mubr.bf16.gmra.mxu0 %v1484
      %v2260 = vpop.f32.mrf.mxu0
      %v2261 = vadd.f32 0.0, %v2260
      %v2262 = vpop.f32.mrf.mxu0
      %v2263 = vpop.f32.mrf.mxu0
      %v2264 = vadd.f32 0.0, %v2263
      %v2265 = vpop.f32.mrf.mxu0
      %2266 = vmatprep.mubr.bf16.mxu0 0
      %2267 = vmatmul.mubr.bf16.gmra.mxu0 %v1487
      %v2268 = vpop.f32.mrf.mxu0
      %v2269 = vadd.f32 0.0, %v2268
      %v2270 = vpop.f32.mrf.mxu0
      %v2271 = vpop.f32.mrf.mxu0
      %v2272 = vadd.f32 0.0, %v2271
      %v2273 = vpop.f32.mrf.mxu0
      %2274 = vmatprep.mubr.bf16.mxu0 0
      %2275 = vmatmul.mubr.bf16.gmra.mxu0 %v1490
      %v2276 = vpop.f32.mrf.mxu0
      %v2277 = vadd.f32 0.0, %v2276
      %v2278 = vpop.f32.mrf.mxu0
      %v2279 = vpop.f32.mrf.mxu0
      %v2280 = vadd.f32 0.0, %v2279
      %v2281 = vpop.f32.mrf.mxu0
      %2282 = vmatprep.mubr.bf16.mxu0 0
      %2283 = vmatmul.mubr.bf16.gmra.mxu0 %v1493
      %v2284 = vpop.f32.mrf.mxu0
      %v2285 = vadd.f32 0.0, %v2284
      %v2286 = vpop.f32.mrf.mxu0
      %v2287 = vpop.f32.mrf.mxu0
      %v2288 = vadd.f32 0.0, %v2287
      %v2289 = vpop.f32.mrf.mxu0
      %2290 = vmatprep.mubr.bf16.mxu0 0
      %2291 = vmatmul.mubr.bf16.gmra.mxu0 %v2133
      %v2292 = vpop.f32.mrf.mxu0
      %v2293 = vadd.f32 0.0, %v2292
      %v2294 = vpop.f32.mrf.mxu0
      %v2295 = vpop.f32.mrf.mxu0
      %v2296 = vadd.f32 0.0, %v2295
      %v2297 = vpop.f32.mrf.mxu0
      %2298 = vdwg.mxu0
      %v2299 = vadd.f32 %v2089, %v2173
      %v2300 = vadd.f32 %v2090, %v2176
      %v2301 = vadd.f32 %v2091, %v2181
      %v2302 = vadd.f32 %v2092, %v2184
      %v2303 = vadd.f32 %v2093, %v2189
      %v2304 = vadd.f32 %v2094, %v2192
      %v2305 = vadd.f32 %v2095, %v2197
      %v2306 = vadd.f32 %v2096, %v2200
      %v2307 = vadd.f32 %v2097, %v2205
      %v2308 = vadd.f32 %v2098, %v2208
      %v2309 = vadd.f32 %v2099, %v2213
      %v2310 = vadd.f32 %v2100, %v2216
      %v2311 = vadd.f32 %v2101, %v2221
      %v2312 = vadd.f32 %v2102, %v2224
      %v2313 = vadd.f32 %v2103, %v2229
      %v2314 = vadd.f32 %v2104, %v2232
      %v2315 = vadd.f32 %v2105, %v2237
      %v2316 = vadd.f32 %v2106, %v2240
      %v2317 = vadd.f32 %v2107, %v2245
      %v2318 = vadd.f32 %v2108, %v2248
      %v2319 = vadd.f32 %v2109, %v2253
      %v2320 = vadd.f32 %v2110, %v2256
      %v2321 = vadd.f32 %v2111, %v2261
      %v2322 = vadd.f32 %v2112, %v2264
      %v2323 = vadd.f32 %v2113, %v2269
      %v2324 = vadd.f32 %v2114, %v2272
      %v2325 = vadd.f32 %v2115, %v2277
      %v2326 = vadd.f32 %v2116, %v2280
      %v2327 = vadd.f32 %v2117, %v2285
      %v2328 = vadd.f32 %v2118, %v2288
      %v2329 = vadd.f32 %v2119, %v2293
      %v2330 = vadd.f32 %v2120, %v2296
      %v2333 = vunpack.c.l.b16 %v315
      %v2334 = vunpack.c.l.b16 %v316
      %v2335 = vpack.c.b16 %v2334, %v2333
      %v2337 = vsel %vm762, %v2335, 0
      %v2340 = vsel %vm811, %v324, 0
      %2342 = vmatprep.subr.bf16.mxu0 0
      %2343 = vmatpush1.bf16.msra.mxu0 0
      %2344 = vmatprep.subr.bf16.mxu0 0
      %2345 = vmatpush1.bf16.msra.mxu0 0
      %2346 = vmatprep.subr.bf16.mxu0 0
      %2347 = vmatpush1.bf16.msra.mxu0 0
      %2348 = vmatprep.subr.bf16.mxu0 0
      %2349 = vmatpush1.bf16.msra.mxu0 0
      %2350 = vmatprep.subr.bf16.mxu0 0
      %2351 = vmatpush1.bf16.msra.mxu0 0
      %2352 = vmatprep.subr.bf16.mxu0 0
      %2353 = vmatpush1.bf16.msra.mxu0 0
      %2354 = vmatprep.subr.bf16.mxu0 0
      %2355 = vmatpush1.bf16.msra.mxu0 0
      %2356 = vmatprep.subr.bf16.mxu0 0
      %2357 = vmatpush1.bf16.msra.mxu0 %v2340
      %2358 = vmatprep.subr.bf16.mxu0 0
      %2359 = vmatpush2.bf16.msra.mxu0 0
      %2360 = vmatprep.subr.bf16.mxu0 0
      %2361 = vmatpush2.bf16.msra.mxu0 0
      %2362 = vmatprep.subr.bf16.mxu0 0
      %2363 = vmatpush2.bf16.msra.mxu0 0
      %2364 = vmatprep.subr.bf16.mxu0 0
      %2365 = vmatpush2.bf16.msra.mxu0 0
      %2366 = vmatprep.subr.bf16.mxu0 0
      %2367 = vmatpush2.bf16.msra.mxu0 0
      %2368 = vmatprep.subr.bf16.mxu0 0
      %2369 = vmatpush2.bf16.msra.mxu0 0
      %2370 = vmatprep.subr.bf16.mxu0 0
      %2371 = vmatpush2.bf16.msra.mxu0 0
      %2372 = vmatprep.subr.bf16.mxu0 0
      %2373 = vmatpush2.bf16.msra.mxu0 0
      %2374 = vmatprep.mubr.bf16.mxu0 0
      %2375 = vmatmul.mubr.bf16.gmra.mxu0 %v1063
      %v2376 = vpop.f32.mrf.mxu0
      %v2377 = vadd.f32 0.0, %v2376
      %v2378 = vpop.f32.mrf.mxu0
      %v2379 = vpop.f32.mrf.mxu0
      %v2380 = vadd.f32 0.0, %v2379
      %v2381 = vpop.f32.mrf.mxu0
      %2382 = vmatprep.mubr.bf16.mxu0 0
      %2383 = vmatmul.mubr.bf16.gmra.mxu0 %v1066
      %v2384 = vpop.f32.mrf.mxu0
      %v2385 = vadd.f32 0.0, %v2384
      %v2386 = vpop.f32.mrf.mxu0
      %v2387 = vpop.f32.mrf.mxu0
      %v2388 = vadd.f32 0.0, %v2387
      %v2389 = vpop.f32.mrf.mxu0
      %2390 = vmatprep.mubr.bf16.mxu0 0
      %2391 = vmatmul.mubr.bf16.gmra.mxu0 %v1069
      %v2392 = vpop.f32.mrf.mxu0
      %v2393 = vadd.f32 0.0, %v2392
      %v2394 = vpop.f32.mrf.mxu0
      %v2395 = vpop.f32.mrf.mxu0
      %v2396 = vadd.f32 0.0, %v2395
      %v2397 = vpop.f32.mrf.mxu0
      %2398 = vmatprep.mubr.bf16.mxu0 0
      %2399 = vmatmul.mubr.bf16.gmra.mxu0 %v1072
      %v2400 = vpop.f32.mrf.mxu0
      %v2401 = vadd.f32 0.0, %v2400
      %v2402 = vpop.f32.mrf.mxu0
      %v2403 = vpop.f32.mrf.mxu0
      %v2404 = vadd.f32 0.0, %v2403
      %v2405 = vpop.f32.mrf.mxu0
      %2406 = vmatprep.mubr.bf16.mxu0 0
      %2407 = vmatmul.mubr.bf16.gmra.mxu0 %v1075
      %v2408 = vpop.f32.mrf.mxu0
      %v2409 = vadd.f32 0.0, %v2408
      %v2410 = vpop.f32.mrf.mxu0
      %v2411 = vpop.f32.mrf.mxu0
      %v2412 = vadd.f32 0.0, %v2411
      %v2413 = vpop.f32.mrf.mxu0
      %2414 = vmatprep.mubr.bf16.mxu0 0
      %2415 = vmatmul.mubr.bf16.gmra.mxu0 %v1078
      %v2416 = vpop.f32.mrf.mxu0
      %v2417 = vadd.f32 0.0, %v2416
      %v2418 = vpop.f32.mrf.mxu0
      %v2419 = vpop.f32.mrf.mxu0
      %v2420 = vadd.f32 0.0, %v2419
      %v2421 = vpop.f32.mrf.mxu0
      %2422 = vmatprep.mubr.bf16.mxu0 0
      %2423 = vmatmul.mubr.bf16.gmra.mxu0 %v1081
      %v2424 = vpop.f32.mrf.mxu0
      %v2425 = vadd.f32 0.0, %v2424
      %v2426 = vpop.f32.mrf.mxu0
      %v2427 = vpop.f32.mrf.mxu0
      %v2428 = vadd.f32 0.0, %v2427
      %v2429 = vpop.f32.mrf.mxu0
      %2430 = vmatprep.mubr.bf16.mxu0 0
      %2431 = vmatmul.mubr.bf16.gmra.mxu0 %v1084
      %v2432 = vpop.f32.mrf.mxu0
      %v2433 = vadd.f32 0.0, %v2432
      %v2434 = vpop.f32.mrf.mxu0
      %v2435 = vpop.f32.mrf.mxu0
      %v2436 = vadd.f32 0.0, %v2435
      %v2437 = vpop.f32.mrf.mxu0
      %2438 = vmatprep.mubr.bf16.mxu0 0
      %2439 = vmatmul.mubr.bf16.gmra.mxu0 %v1087
      %v2440 = vpop.f32.mrf.mxu0
      %v2441 = vadd.f32 0.0, %v2440
      %v2442 = vpop.f32.mrf.mxu0
      %v2443 = vpop.f32.mrf.mxu0
      %v2444 = vadd.f32 0.0, %v2443
      %v2445 = vpop.f32.mrf.mxu0
      %2446 = vmatprep.mubr.bf16.mxu0 0
      %2447 = vmatmul.mubr.bf16.gmra.mxu0 %v1090
      %v2448 = vpop.f32.mrf.mxu0
      %v2449 = vadd.f32 0.0, %v2448
      %v2450 = vpop.f32.mrf.mxu0
      %v2451 = vpop.f32.mrf.mxu0
      %v2452 = vadd.f32 0.0, %v2451
      %v2453 = vpop.f32.mrf.mxu0
      %2454 = vmatprep.mubr.bf16.mxu0 0
      %2455 = vmatmul.mubr.bf16.gmra.mxu0 %v1093
      %v2456 = vpop.f32.mrf.mxu0
      %v2457 = vadd.f32 0.0, %v2456
      %v2458 = vpop.f32.mrf.mxu0
      %v2459 = vpop.f32.mrf.mxu0
      %v2460 = vadd.f32 0.0, %v2459
      %v2461 = vpop.f32.mrf.mxu0
      %2462 = vmatprep.mubr.bf16.mxu0 0
      %2463 = vmatmul.mubr.bf16.gmra.mxu0 %v1096
      %v2464 = vpop.f32.mrf.mxu0
      %v2465 = vadd.f32 0.0, %v2464
      %v2466 = vpop.f32.mrf.mxu0
      %v2467 = vpop.f32.mrf.mxu0
      %v2468 = vadd.f32 0.0, %v2467
      %v2469 = vpop.f32.mrf.mxu0
      %2470 = vmatprep.mubr.bf16.mxu0 0
      %2471 = vmatmul.mubr.bf16.gmra.mxu0 %v1099
      %v2472 = vpop.f32.mrf.mxu0
      %v2473 = vadd.f32 0.0, %v2472
      %v2474 = vpop.f32.mrf.mxu0
      %v2475 = vpop.f32.mrf.mxu0
      %v2476 = vadd.f32 0.0, %v2475
      %v2477 = vpop.f32.mrf.mxu0
      %2478 = vmatprep.mubr.bf16.mxu0 0
      %2479 = vmatmul.mubr.bf16.gmra.mxu0 %v1102
      %v2480 = vpop.f32.mrf.mxu0
      %v2481 = vadd.f32 0.0, %v2480
      %v2482 = vpop.f32.mrf.mxu0
      %v2483 = vpop.f32.mrf.mxu0
      %v2484 = vadd.f32 0.0, %v2483
      %v2485 = vpop.f32.mrf.mxu0
      %2486 = vmatprep.mubr.bf16.mxu0 0
      %2487 = vmatmul.mubr.bf16.gmra.mxu0 %v1697
      %v2488 = vpop.f32.mrf.mxu0
      %v2489 = vadd.f32 0.0, %v2488
      %v2490 = vpop.f32.mrf.mxu0
      %v2491 = vpop.f32.mrf.mxu0
      %v2492 = vadd.f32 0.0, %v2491
      %v2493 = vpop.f32.mrf.mxu0
      %2494 = vmatprep.mubr.bf16.mxu0 0
      %2495 = vmatmul.mubr.bf16.gmra.mxu0 %v2337
      %v2496 = vpop.f32.mrf.mxu0
      %v2497 = vadd.f32 0.0, %v2496
      %v2498 = vpop.f32.mrf.mxu0
      %v2499 = vpop.f32.mrf.mxu0
      %v2500 = vadd.f32 0.0, %v2499
      %v2501 = vpop.f32.mrf.mxu0
      %2502 = vdwg.mxu0
      %v2503 = vadd.f32 %v2299, %v2377
      %v2504 = vadd.f32 %v2300, %v2380
      %v2505 = vadd.f32 %v2301, %v2385
      %v2506 = vadd.f32 %v2302, %v2388
      %v2507 = vadd.f32 %v2303, %v2393
      %v2508 = vadd.f32 %v2304, %v2396
      %v2509 = vadd.f32 %v2305, %v2401
      %v2510 = vadd.f32 %v2306, %v2404
      %v2511 = vadd.f32 %v2307, %v2409
      %v2512 = vadd.f32 %v2308, %v2412
      %v2513 = vadd.f32 %v2309, %v2417
      %v2514 = vadd.f32 %v2310, %v2420
      %v2515 = vadd.f32 %v2311, %v2425
      %v2516 = vadd.f32 %v2312, %v2428
      %v2517 = vadd.f32 %v2313, %v2433
      %v2518 = vadd.f32 %v2314, %v2436
      %v2519 = vadd.f32 %v2315, %v2441
      %v2520 = vadd.f32 %v2316, %v2444
      %v2521 = vadd.f32 %v2317, %v2449
      %v2522 = vadd.f32 %v2318, %v2452
      %v2523 = vadd.f32 %v2319, %v2457
      %v2524 = vadd.f32 %v2320, %v2460
      %v2525 = vadd.f32 %v2321, %v2465
      %v2526 = vadd.f32 %v2322, %v2468
      %v2527 = vadd.f32 %v2323, %v2473
      %v2528 = vadd.f32 %v2324, %v2476
      %v2529 = vadd.f32 %v2325, %v2481
      %v2530 = vadd.f32 %v2326, %v2484
      %v2531 = vadd.f32 %v2327, %v2489
      %v2532 = vadd.f32 %v2328, %v2492
      %v2533 = vadd.f32 %v2329, %v2497
      %v2534 = vadd.f32 %v2330, %v2500
      %v2536 = vshrl.u32 %v315, 16
      %v2538 = vrot.slane %v2536, 4
      %v2539 = vshll.u32 %v315, 16
      %v2541 = vrot.slane %v2539, 5
      %v2542 = vor.u32 %v2538, %v2541
      %v2543 = vrot.slane %v2542, 4
      %v2545 = vshll.u32 %v316, 16
      %v2547 = vrot.slane %v2545, 5
      %v2548 = vsel %vm329, %v2543, %v2547
      %v2549 = vshrl.u32 %v316, 16
      %v2551 = vrot.slane %v2549, 4
      %v2552 = vor.u32 %v2551, %v2547
      %v2553 = vrot.slane %v2552, 4
      %v2555 = vshll.u32 %v317, 16
      %v2557 = vrot.slane %v2555, 5
      %v2558 = vsel %vm329, %v2553, %v2557
      %v2559 = vunpack.c.l.b16 %v2548
      %v2560 = vunpack.c.l.b16 %v2558
      %v2561 = vpack.c.b16 %v2560, %v2559
      %v2563 = vsel %vm762, %v2561, 0
      %v2566 = vsel %vm811, %v325, 0
      %2568 = vmatprep.subr.bf16.mxu0 0
      %2569 = vmatpush1.bf16.msra.mxu0 0
      %2570 = vmatprep.subr.bf16.mxu0 0
      %2571 = vmatpush1.bf16.msra.mxu0 0
      %2572 = vmatprep.subr.bf16.mxu0 0
      %2573 = vmatpush1.bf16.msra.mxu0 0
      %2574 = vmatprep.subr.bf16.mxu0 0
      %2575 = vmatpush1.bf16.msra.mxu0 0
      %2576 = vmatprep.subr.bf16.mxu0 0
      %2577 = vmatpush1.bf16.msra.mxu0 0
      %2578 = vmatprep.subr.bf16.mxu0 0
      %2579 = vmatpush1.bf16.msra.mxu0 0
      %2580 = vmatprep.subr.bf16.mxu0 0
      %2581 = vmatpush1.bf16.msra.mxu0 0
      %2582 = vmatprep.subr.bf16.mxu0 0
      %2583 = vmatpush1.bf16.msra.mxu0 %v2566
      %2584 = vmatprep.subr.bf16.mxu0 0
      %2585 = vmatpush2.bf16.msra.mxu0 0
      %2586 = vmatprep.subr.bf16.mxu0 0
      %2587 = vmatpush2.bf16.msra.mxu0 0
      %2588 = vmatprep.subr.bf16.mxu0 0
      %2589 = vmatpush2.bf16.msra.mxu0 0
      %2590 = vmatprep.subr.bf16.mxu0 0
      %2591 = vmatpush2.bf16.msra.mxu0 0
      %2592 = vmatprep.subr.bf16.mxu0 0
      %2593 = vmatpush2.bf16.msra.mxu0 0
      %2594 = vmatprep.subr.bf16.mxu0 0
      %2595 = vmatpush2.bf16.msra.mxu0 0
      %2596 = vmatprep.subr.bf16.mxu0 0
      %2597 = vmatpush2.bf16.msra.mxu0 0
      %2598 = vmatprep.subr.bf16.mxu0 0
      %2599 = vmatpush2.bf16.msra.mxu0 0
      %2600 = vmatprep.mubr.bf16.mxu0 0
      %2601 = vmatmul.mubr.bf16.gmra.mxu0 %v770
      %v2602 = vpop.f32.mrf.mxu0
      %v2603 = vadd.f32 0.0, %v2602
      %v2604 = vpop.f32.mrf.mxu0
      %v2605 = vpop.f32.mrf.mxu0
      %v2606 = vadd.f32 0.0, %v2605
      %v2607 = vpop.f32.mrf.mxu0
      %2608 = vmatprep.mubr.bf16.mxu0 0
      %2609 = vmatmul.mubr.bf16.gmra.mxu0 %v773
      %v2610 = vpop.f32.mrf.mxu0
      %v2611 = vadd.f32 0.0, %v2610
      %v2612 = vpop.f32.mrf.mxu0
      %v2613 = vpop.f32.mrf.mxu0
      %v2614 = vadd.f32 0.0, %v2613
      %v2615 = vpop.f32.mrf.mxu0
      %2616 = vmatprep.mubr.bf16.mxu0 0
      %2617 = vmatmul.mubr.bf16.gmra.mxu0 %v776
      %v2618 = vpop.f32.mrf.mxu0
      %v2619 = vadd.f32 0.0, %v2618
      %v2620 = vpop.f32.mrf.mxu0
      %v2621 = vpop.f32.mrf.mxu0
      %v2622 = vadd.f32 0.0, %v2621
      %v2623 = vpop.f32.mrf.mxu0
      %2624 = vmatprep.mubr.bf16.mxu0 0
      %2625 = vmatmul.mubr.bf16.gmra.mxu0 %v779
      %v2626 = vpop.f32.mrf.mxu0
      %v2627 = vadd.f32 0.0, %v2626
      %v2628 = vpop.f32.mrf.mxu0
      %v2629 = vpop.f32.mrf.mxu0
      %v2630 = vadd.f32 0.0, %v2629
      %v2631 = vpop.f32.mrf.mxu0
      %2632 = vmatprep.mubr.bf16.mxu0 0
      %2633 = vmatmul.mubr.bf16.gmra.mxu0 %v782
      %v2634 = vpop.f32.mrf.mxu0
      %v2635 = vadd.f32 0.0, %v2634
      %v2636 = vpop.f32.mrf.mxu0
      %v2637 = vpop.f32.mrf.mxu0
      %v2638 = vadd.f32 0.0, %v2637
      %v2639 = vpop.f32.mrf.mxu0
      %2640 = vmatprep.mubr.bf16.mxu0 0
      %2641 = vmatmul.mubr.bf16.gmra.mxu0 %v785
      %v2642 = vpop.f32.mrf.mxu0
      %v2643 = vadd.f32 0.0, %v2642
      %v2644 = vpop.f32.mrf.mxu0
      %v2645 = vpop.f32.mrf.mxu0
      %v2646 = vadd.f32 0.0, %v2645
      %v2647 = vpop.f32.mrf.mxu0
      %2648 = vmatprep.mubr.bf16.mxu0 0
      %2649 = vmatmul.mubr.bf16.gmra.mxu0 %v788
      %v2650 = vpop.f32.mrf.mxu0
      %v2651 = vadd.f32 0.0, %v2650
      %v2652 = vpop.f32.mrf.mxu0
      %v2653 = vpop.f32.mrf.mxu0
      %v2654 = vadd.f32 0.0, %v2653
      %v2655 = vpop.f32.mrf.mxu0
      %2656 = vmatprep.mubr.bf16.mxu0 0
      %2657 = vmatmul.mubr.bf16.gmra.mxu0 %v791
      %v2658 = vpop.f32.mrf.mxu0
      %v2659 = vadd.f32 0.0, %v2658
      %v2660 = vpop.f32.mrf.mxu0
      %v2661 = vpop.f32.mrf.mxu0
      %v2662 = vadd.f32 0.0, %v2661
      %v2663 = vpop.f32.mrf.mxu0
      %2664 = vmatprep.mubr.bf16.mxu0 0
      %2665 = vmatmul.mubr.bf16.gmra.mxu0 %v794
      %v2666 = vpop.f32.mrf.mxu0
      %v2667 = vadd.f32 0.0, %v2666
      %v2668 = vpop.f32.mrf.mxu0
      %v2669 = vpop.f32.mrf.mxu0
      %v2670 = vadd.f32 0.0, %v2669
      %v2671 = vpop.f32.mrf.mxu0
      %2672 = vmatprep.mubr.bf16.mxu0 0
      %2673 = vmatmul.mubr.bf16.gmra.mxu0 %v797
      %v2674 = vpop.f32.mrf.mxu0
      %v2675 = vadd.f32 0.0, %v2674
      %v2676 = vpop.f32.mrf.mxu0
      %v2677 = vpop.f32.mrf.mxu0
      %v2678 = vadd.f32 0.0, %v2677
      %v2679 = vpop.f32.mrf.mxu0
      %2680 = vmatprep.mubr.bf16.mxu0 0
      %2681 = vmatmul.mubr.bf16.gmra.mxu0 %v800
      %v2682 = vpop.f32.mrf.mxu0
      %v2683 = vadd.f32 0.0, %v2682
      %v2684 = vpop.f32.mrf.mxu0
      %v2685 = vpop.f32.mrf.mxu0
      %v2686 = vadd.f32 0.0, %v2685
      %v2687 = vpop.f32.mrf.mxu0
      %2688 = vmatprep.mubr.bf16.mxu0 0
      %2689 = vmatmul.mubr.bf16.gmra.mxu0 %v803
      %v2690 = vpop.f32.mrf.mxu0
      %v2691 = vadd.f32 0.0, %v2690
      %v2692 = vpop.f32.mrf.mxu0
      %v2693 = vpop.f32.mrf.mxu0
      %v2694 = vadd.f32 0.0, %v2693
      %v2695 = vpop.f32.mrf.mxu0
      %2696 = vmatprep.mubr.bf16.mxu0 0
      %2697 = vmatmul.mubr.bf16.gmra.mxu0 %v806
      %v2698 = vpop.f32.mrf.mxu0
      %v2699 = vadd.f32 0.0, %v2698
      %v2700 = vpop.f32.mrf.mxu0
      %v2701 = vpop.f32.mrf.mxu0
      %v2702 = vadd.f32 0.0, %v2701
      %v2703 = vpop.f32.mrf.mxu0
      %2704 = vmatprep.mubr.bf16.mxu0 0
      %2705 = vmatmul.mubr.bf16.gmra.mxu0 %v809
      %v2706 = vpop.f32.mrf.mxu0
      %v2707 = vadd.f32 0.0, %v2706
      %v2708 = vpop.f32.mrf.mxu0
      %v2709 = vpop.f32.mrf.mxu0
      %v2710 = vadd.f32 0.0, %v2709
      %v2711 = vpop.f32.mrf.mxu0
      %2712 = vmatprep.mubr.bf16.mxu0 0
      %2713 = vmatmul.mubr.bf16.gmra.mxu0 %v1923
      %v2714 = vpop.f32.mrf.mxu0
      %v2715 = vadd.f32 0.0, %v2714
      %v2716 = vpop.f32.mrf.mxu0
      %v2717 = vpop.f32.mrf.mxu0
      %v2718 = vadd.f32 0.0, %v2717
      %v2719 = vpop.f32.mrf.mxu0
      %2720 = vmatprep.mubr.bf16.mxu0 0
      %2721 = vmatmul.mubr.bf16.gmra.mxu0 %v2563
      %v2722 = vpop.f32.mrf.mxu0
      %v2723 = vadd.f32 0.0, %v2722
      %v2724 = vpop.f32.mrf.mxu0
      %v2725 = vpop.f32.mrf.mxu0
      %v2726 = vadd.f32 0.0, %v2725
      %v2727 = vpop.f32.mrf.mxu0
      %2728 = vdwg.mxu0
      %v2729 = vadd.f32 %v2503, %v2603
      %v2730 = vadd.f32 %v2504, %v2606
      %v2731 = vadd.f32 %v2505, %v2611
      %v2732 = vadd.f32 %v2506, %v2614
      %v2733 = vadd.f32 %v2507, %v2619
      %v2734 = vadd.f32 %v2508, %v2622
      %v2735 = vadd.f32 %v2509, %v2627
      %v2736 = vadd.f32 %v2510, %v2630
      %v2737 = vadd.f32 %v2511, %v2635
      %v2738 = vadd.f32 %v2512, %v2638
      %v2739 = vadd.f32 %v2513, %v2643
      %v2740 = vadd.f32 %v2514, %v2646
      %v2741 = vadd.f32 %v2515, %v2651
      %v2742 = vadd.f32 %v2516, %v2654
      %v2743 = vadd.f32 %v2517, %v2659
      %v2744 = vadd.f32 %v2518, %v2662
      %v2745 = vadd.f32 %v2519, %v2667
      %v2746 = vadd.f32 %v2520, %v2670
      %v2747 = vadd.f32 %v2521, %v2675
      %v2748 = vadd.f32 %v2522, %v2678
      %v2749 = vadd.f32 %v2523, %v2683
      %v2750 = vadd.f32 %v2524, %v2686
      %v2751 = vadd.f32 %v2525, %v2691
      %v2752 = vadd.f32 %v2526, %v2694
      %v2753 = vadd.f32 %v2527, %v2699
      %v2754 = vadd.f32 %v2528, %v2702
      %v2755 = vadd.f32 %v2529, %v2707
      %v2756 = vadd.f32 %v2530, %v2710
      %v2757 = vadd.f32 %v2531, %v2715
      %v2758 = vadd.f32 %v2532, %v2718
      %v2759 = vadd.f32 %v2533, %v2723
      %v2760 = vadd.f32 %v2534, %v2726
      %v2762 = vrot.slane %v315, 5
      %v2763 = vrot.slane %v2762, 4
      %v2764 = vrot.slane %v316, 5
      %v2765 = vsel %vm1286, %v2763, %v2764
      %v2766 = vrot.slane %v2764, 4
      %v2767 = vrot.slane %v317, 5
      %v2768 = vsel %vm1286, %v2766, %v2767
      %v2769 = vunpack.c.l.b16 %v2765
      %v2770 = vunpack.c.l.b16 %v2768
      %v2771 = vpack.c.b16 %v2770, %v2769
      %v2773 = vsel %vm762, %v2771, 0
      %v2776 = vsel %vm811, %v326, 0
      %2778 = vmatprep.subr.bf16.mxu0 0
      %2779 = vmatpush1.bf16.msra.mxu0 0
      %2780 = vmatprep.subr.bf16.mxu0 0
      %2781 = vmatpush1.bf16.msra.mxu0 0
      %2782 = vmatprep.subr.bf16.mxu0 0
      %2783 = vmatpush1.bf16.msra.mxu0 0
      %2784 = vmatprep.subr.bf16.mxu0 0
      %2785 = vmatpush1.bf16.msra.mxu0 0
      %2786 = vmatprep.subr.bf16.mxu0 0
      %2787 = vmatpush1.bf16.msra.mxu0 0
      %2788 = vmatprep.subr.bf16.mxu0 0
      %2789 = vmatpush1.bf16.msra.mxu0 0
      %2790 = vmatprep.subr.bf16.mxu0 0
      %2791 = vmatpush1.bf16.msra.mxu0 0
      %2792 = vmatprep.subr.bf16.mxu0 0
      %2793 = vmatpush1.bf16.msra.mxu0 %v2776
      %2794 = vmatprep.subr.bf16.mxu0 0
      %2795 = vmatpush2.bf16.msra.mxu0 0
      %2796 = vmatprep.subr.bf16.mxu0 0
      %2797 = vmatpush2.bf16.msra.mxu0 0
      %2798 = vmatprep.subr.bf16.mxu0 0
      %2799 = vmatpush2.bf16.msra.mxu0 0
      %2800 = vmatprep.subr.bf16.mxu0 0
      %2801 = vmatpush2.bf16.msra.mxu0 0
      %2802 = vmatprep.subr.bf16.mxu0 0
      %2803 = vmatpush2.bf16.msra.mxu0 0
      %2804 = vmatprep.subr.bf16.mxu0 0
      %2805 = vmatpush2.bf16.msra.mxu0 0
      %2806 = vmatprep.subr.bf16.mxu0 0
      %2807 = vmatpush2.bf16.msra.mxu0 0
      %2808 = vmatprep.subr.bf16.mxu0 0
      %2809 = vmatpush2.bf16.msra.mxu0 0
      %2810 = vmatprep.mubr.bf16.mxu0 0
      %2811 = vmatmul.mubr.bf16.gmra.mxu0 %v1454
      %v2812 = vpop.f32.mrf.mxu0
      %v2813 = vadd.f32 0.0, %v2812
      %v2814 = vpop.f32.mrf.mxu0
      %v2815 = vpop.f32.mrf.mxu0
      %v2816 = vadd.f32 0.0, %v2815
      %v2817 = vpop.f32.mrf.mxu0
      %2818 = vmatprep.mubr.bf16.mxu0 0
      %2819 = vmatmul.mubr.bf16.gmra.mxu0 %v1457
      %v2820 = vpop.f32.mrf.mxu0
      %v2821 = vadd.f32 0.0, %v2820
      %v2822 = vpop.f32.mrf.mxu0
      %v2823 = vpop.f32.mrf.mxu0
      %v2824 = vadd.f32 0.0, %v2823
      %v2825 = vpop.f32.mrf.mxu0
      %2826 = vmatprep.mubr.bf16.mxu0 0
      %2827 = vmatmul.mubr.bf16.gmra.mxu0 %v1460
      %v2828 = vpop.f32.mrf.mxu0
      %v2829 = vadd.f32 0.0, %v2828
      %v2830 = vpop.f32.mrf.mxu0
      %v2831 = vpop.f32.mrf.mxu0
      %v2832 = vadd.f32 0.0, %v2831
      %v2833 = vpop.f32.mrf.mxu0
      %2834 = vmatprep.mubr.bf16.mxu0 0
      %2835 = vmatmul.mubr.bf16.gmra.mxu0 %v1463
      %v2836 = vpop.f32.mrf.mxu0
      %v2837 = vadd.f32 0.0, %v2836
      %v2838 = vpop.f32.mrf.mxu0
      %v2839 = vpop.f32.mrf.mxu0
      %v2840 = vadd.f32 0.0, %v2839
      %v2841 = vpop.f32.mrf.mxu0
      %2842 = vmatprep.mubr.bf16.mxu0 0
      %2843 = vmatmul.mubr.bf16.gmra.mxu0 %v1466
      %v2844 = vpop.f32.mrf.mxu0
      %v2845 = vadd.f32 0.0, %v2844
      %v2846 = vpop.f32.mrf.mxu0
      %v2847 = vpop.f32.mrf.mxu0
      %v2848 = vadd.f32 0.0, %v2847
      %v2849 = vpop.f32.mrf.mxu0
      %2850 = vmatprep.mubr.bf16.mxu0 0
      %2851 = vmatmul.mubr.bf16.gmra.mxu0 %v1469
      %v2852 = vpop.f32.mrf.mxu0
      %v2853 = vadd.f32 0.0, %v2852
      %v2854 = vpop.f32.mrf.mxu0
      %v2855 = vpop.f32.mrf.mxu0
      %v2856 = vadd.f32 0.0, %v2855
      %v2857 = vpop.f32.mrf.mxu0
      %2858 = vmatprep.mubr.bf16.mxu0 0
      %2859 = vmatmul.mubr.bf16.gmra.mxu0 %v1472
      %v2860 = vpop.f32.mrf.mxu0
      %v2861 = vadd.f32 0.0, %v2860
      %v2862 = vpop.f32.mrf.mxu0
      %v2863 = vpop.f32.mrf.mxu0
      %v2864 = vadd.f32 0.0, %v2863
      %v2865 = vpop.f32.mrf.mxu0
      %2866 = vmatprep.mubr.bf16.mxu0 0
      %2867 = vmatmul.mubr.bf16.gmra.mxu0 %v1475
      %v2868 = vpop.f32.mrf.mxu0
      %v2869 = vadd.f32 0.0, %v2868
      %v2870 = vpop.f32.mrf.mxu0
      %v2871 = vpop.f32.mrf.mxu0
      %v2872 = vadd.f32 0.0, %v2871
      %v2873 = vpop.f32.mrf.mxu0
      %2874 = vmatprep.mubr.bf16.mxu0 0
      %2875 = vmatmul.mubr.bf16.gmra.mxu0 %v1478
      %v2876 = vpop.f32.mrf.mxu0
      %v2877 = vadd.f32 0.0, %v2876
      %v2878 = vpop.f32.mrf.mxu0
      %v2879 = vpop.f32.mrf.mxu0
      %v2880 = vadd.f32 0.0, %v2879
      %v2881 = vpop.f32.mrf.mxu0
      %2882 = vmatprep.mubr.bf16.mxu0 0
      %2883 = vmatmul.mubr.bf16.gmra.mxu0 %v1481
      %v2884 = vpop.f32.mrf.mxu0
      %v2885 = vadd.f32 0.0, %v2884
      %v2886 = vpop.f32.mrf.mxu0
      %v2887 = vpop.f32.mrf.mxu0
      %v2888 = vadd.f32 0.0, %v2887
      %v2889 = vpop.f32.mrf.mxu0
      %2890 = vmatprep.mubr.bf16.mxu0 0
      %2891 = vmatmul.mubr.bf16.gmra.mxu0 %v1484
      %v2892 = vpop.f32.mrf.mxu0
      %v2893 = vadd.f32 0.0, %v2892
      %v2894 = vpop.f32.mrf.mxu0
      %v2895 = vpop.f32.mrf.mxu0
      %v2896 = vadd.f32 0.0, %v2895
      %v2897 = vpop.f32.mrf.mxu0
      %2898 = vmatprep.mubr.bf16.mxu0 0
      %2899 = vmatmul.mubr.bf16.gmra.mxu0 %v1487
      %v2900 = vpop.f32.mrf.mxu0
      %v2901 = vadd.f32 0.0, %v2900
      %v2902 = vpop.f32.mrf.mxu0
      %v2903 = vpop.f32.mrf.mxu0
      %v2904 = vadd.f32 0.0, %v2903
      %v2905 = vpop.f32.mrf.mxu0
      %2906 = vmatprep.mubr.bf16.mxu0 0
      %2907 = vmatmul.mubr.bf16.gmra.mxu0 %v1490
      %v2908 = vpop.f32.mrf.mxu0
      %v2909 = vadd.f32 0.0, %v2908
      %v2910 = vpop.f32.mrf.mxu0
      %v2911 = vpop.f32.mrf.mxu0
      %v2912 = vadd.f32 0.0, %v2911
      %v2913 = vpop.f32.mrf.mxu0
      %2914 = vmatprep.mubr.bf16.mxu0 0
      %2915 = vmatmul.mubr.bf16.gmra.mxu0 %v1493
      %v2916 = vpop.f32.mrf.mxu0
      %v2917 = vadd.f32 0.0, %v2916
      %v2918 = vpop.f32.mrf.mxu0
      %v2919 = vpop.f32.mrf.mxu0
      %v2920 = vadd.f32 0.0, %v2919
      %v2921 = vpop.f32.mrf.mxu0
      %2922 = vmatprep.mubr.bf16.mxu0 0
      %2923 = vmatmul.mubr.bf16.gmra.mxu0 %v2133
      %v2924 = vpop.f32.mrf.mxu0
      %v2925 = vadd.f32 0.0, %v2924
      %v2926 = vpop.f32.mrf.mxu0
      %v2927 = vpop.f32.mrf.mxu0
      %v2928 = vadd.f32 0.0, %v2927
      %v2929 = vpop.f32.mrf.mxu0
      %2930 = vmatprep.mubr.bf16.mxu0 0
      %2931 = vmatmul.mubr.bf16.gmra.mxu0 %v2773
      %v2932 = vpop.f32.mrf.mxu0
      %v2933 = vadd.f32 0.0, %v2932
      %v2934 = vpop.f32.mrf.mxu0
      %v2935 = vpop.f32.mrf.mxu0
      %v2936 = vadd.f32 0.0, %v2935
      %v2937 = vpop.f32.mrf.mxu0
      %2938 = vdwg.mxu0
      %v2939 = vadd.f32 %v2729, %v2813
      %v2940 = vadd.f32 %v2730, %v2816
      %v2941 = vadd.f32 %v2731, %v2821
      %v2942 = vadd.f32 %v2732, %v2824
      %v2943 = vadd.f32 %v2733, %v2829
      %v2944 = vadd.f32 %v2734, %v2832
      %v2945 = vadd.f32 %v2735, %v2837
      %v2946 = vadd.f32 %v2736, %v2840
      %v2947 = vadd.f32 %v2737, %v2845
      %v2948 = vadd.f32 %v2738, %v2848
      %v2949 = vadd.f32 %v2739, %v2853
      %v2950 = vadd.f32 %v2740, %v2856
      %v2951 = vadd.f32 %v2741, %v2861
      %v2952 = vadd.f32 %v2742, %v2864
      %v2953 = vadd.f32 %v2743, %v2869
      %v2954 = vadd.f32 %v2744, %v2872
      %v2955 = vadd.f32 %v2745, %v2877
      %v2956 = vadd.f32 %v2746, %v2880
      %v2957 = vadd.f32 %v2747, %v2885
      %v2958 = vadd.f32 %v2748, %v2888
      %v2959 = vadd.f32 %v2749, %v2893
      %v2960 = vadd.f32 %v2750, %v2896
      %v2961 = vadd.f32 %v2751, %v2901
      %v2962 = vadd.f32 %v2752, %v2904
      %v2963 = vadd.f32 %v2753, %v2909
      %v2964 = vadd.f32 %v2754, %v2912
      %v2965 = vadd.f32 %v2755, %v2917
      %v2966 = vadd.f32 %v2756, %v2920
      %v2967 = vadd.f32 %v2757, %v2925
      %v2968 = vadd.f32 %v2758, %v2928
      %v2969 = vadd.f32 %v2759, %v2933
      %v2970 = vadd.f32 %v2760, %v2936
      %v2971 = vld [vmem:[%s251] sm:$0x1]
      %v2973 = vlaneseq
      %v2974 = vshrl.u32 %v2973, 7
      %v2975 = vsub.s32 0, %v2974
      %v2976 = vrot.slane %v2971, %v2975
      %v2978 = vmul.f32 %v2939, %v2976
      %v2979 = vmul.f32 %v2940, %v2976
      %v2980 = vmul.f32 %v2941, %v2976
      %v2981 = vmul.f32 %v2942, %v2976
      %v2982 = vmul.f32 %v2943, %v2976
      %v2983 = vmul.f32 %v2944, %v2976
      %v2984 = vmul.f32 %v2945, %v2976
      %v2985 = vmul.f32 %v2946, %v2976
      %v2986 = vmul.f32 %v2947, %v2976
      %v2987 = vmul.f32 %v2948, %v2976
      %v2988 = vmul.f32 %v2949, %v2976
      %v2989 = vmul.f32 %v2950, %v2976
      %v2990 = vmul.f32 %v2951, %v2976
      %v2991 = vmul.f32 %v2952, %v2976
      %v2992 = vmul.f32 %v2953, %v2976
      %v2993 = vmul.f32 %v2954, %v2976
      %v2994 = vmul.f32 %v2955, %v2976
      %v2995 = vmul.f32 %v2956, %v2976
      %v2996 = vmul.f32 %v2957, %v2976
      %v2997 = vmul.f32 %v2958, %v2976
      %v2998 = vmul.f32 %v2959, %v2976
      %v2999 = vmul.f32 %v2960, %v2976
      %v3000 = vmul.f32 %v2961, %v2976
      %v3001 = vmul.f32 %v2962, %v2976
      %v3002 = vmul.f32 %v2963, %v2976
      %v3003 = vmul.f32 %v2964, %v2976
      %v3004 = vmul.f32 %v2965, %v2976
      %v3005 = vmul.f32 %v2966, %v2976
      %v3006 = vmul.f32 %v2967, %v2976
      %v3007 = vmul.f32 %v2968, %v2976
      %v3008 = vmul.f32 %v2969, %v2976
      %v3009 = vmul.f32 %v2970, %v2976
      %v3010 = vld [vmem:[%s254] sm:$0x1]
      %v3012 = vlaneseq
      %v3013 = vshrl.u32 %v3012, 7
      %v3014 = vsub.s32 0, %v3013
      %v3015 = vrot.slane %v3010, %v3014
      %v3017 = vadd.f32 %v2978, %v3015
      %v3018 = vadd.f32 %v2979, %v3015
      %v3019 = vadd.f32 %v2980, %v3015
      %v3020 = vadd.f32 %v2981, %v3015
      %v3021 = vadd.f32 %v2982, %v3015
      %v3022 = vadd.f32 %v2983, %v3015
      %v3023 = vadd.f32 %v2984, %v3015
      %v3024 = vadd.f32 %v2985, %v3015
      %v3025 = vadd.f32 %v2986, %v3015
      %v3026 = vadd.f32 %v2987, %v3015
      %v3027 = vadd.f32 %v2988, %v3015
      %v3028 = vadd.f32 %v2989, %v3015
      %v3029 = vadd.f32 %v2990, %v3015
      %v3030 = vadd.f32 %v2991, %v3015
      %v3031 = vadd.f32 %v2992, %v3015
      %v3032 = vadd.f32 %v2993, %v3015
      %v3033 = vadd.f32 %v2994, %v3015
      %v3034 = vadd.f32 %v2995, %v3015
      %v3035 = vadd.f32 %v2996, %v3015
      %v3036 = vadd.f32 %v2997, %v3015
      %v3037 = vadd.f32 %v2998, %v3015
      %v3038 = vadd.f32 %v2999, %v3015
      %v3039 = vadd.f32 %v3000, %v3015
      %v3040 = vadd.f32 %v3001, %v3015
      %v3041 = vadd.f32 %v3002, %v3015
      %v3042 = vadd.f32 %v3003, %v3015
      %v3043 = vadd.f32 %v3004, %v3015
      %v3044 = vadd.f32 %v3005, %v3015
      %v3045 = vadd.f32 %v3006, %v3015
      %v3046 = vadd.f32 %v3007, %v3015
      %v3047 = vadd.f32 %v3008, %v3015
      %v3048 = vadd.f32 %v3009, %v3015
      %v3049 = vxor.u32 %v3017, 2147483648
      %v3050 = vxor.u32 %v3018, 2147483648
      %v3051 = vxor.u32 %v3019, 2147483648
      %v3052 = vxor.u32 %v3020, 2147483648
      %v3053 = vxor.u32 %v3021, 2147483648
      %v3054 = vxor.u32 %v3022, 2147483648
      %v3055 = vxor.u32 %v3023, 2147483648
      %v3056 = vxor.u32 %v3024, 2147483648
      %v3057 = vxor.u32 %v3025, 2147483648
      %v3058 = vxor.u32 %v3026, 2147483648
      %v3059 = vxor.u32 %v3027, 2147483648
      %v3060 = vxor.u32 %v3028, 2147483648
      %v3061 = vxor.u32 %v3029, 2147483648
      %v3062 = vxor.u32 %v3030, 2147483648
      %v3063 = vxor.u32 %v3031, 2147483648
      %v3064 = vxor.u32 %v3032, 2147483648
      %v3065 = vxor.u32 %v3033, 2147483648
      %v3066 = vxor.u32 %v3034, 2147483648
      %v3067 = vxor.u32 %v3035, 2147483648
      %v3068 = vxor.u32 %v3036, 2147483648
      %v3069 = vxor.u32 %v3037, 2147483648
      %v3070 = vxor.u32 %v3038, 2147483648
      %v3071 = vxor.u32 %v3039, 2147483648
      %v3072 = vxor.u32 %v3040, 2147483648
      %v3073 = vxor.u32 %v3041, 2147483648
      %v3074 = vxor.u32 %v3042, 2147483648
      %v3075 = vxor.u32 %v3043, 2147483648
      %v3076 = vxor.u32 %v3044, 2147483648
      %v3077 = vxor.u32 %v3045, 2147483648
      %v3078 = vxor.u32 %v3046, 2147483648
      %v3079 = vxor.u32 %v3047, 2147483648
      %v3080 = vxor.u32 %v3048, 2147483648
      %v3081 = vmul.f32 %v3049, 1.442695
      %v3082 = vpow.pop %v3081
      %v3083 = vmul.f32 %v3050, 1.442695
      %v3084 = vpow.pop %v3083
      %v3085 = vmul.f32 %v3051, 1.442695
      %v3086 = vpow.pop %v3085
      %v3087 = vmul.f32 %v3052, 1.442695
      %v3088 = vpow.pop %v3087
      %v3089 = vmul.f32 %v3053, 1.442695
      %v3090 = vpow.pop %v3089
      %v3091 = vmul.f32 %v3054, 1.442695
      %v3092 = vpow.pop %v3091
      %v3093 = vmul.f32 %v3055, 1.442695
      %v3094 = vpow.pop %v3093
      %v3095 = vmul.f32 %v3056, 1.442695
      %v3096 = vpow.pop %v3095
      %v3097 = vmul.f32 %v3057, 1.442695
      %v3098 = vpow.pop %v3097
      %v3099 = vmul.f32 %v3058, 1.442695
      %v3100 = vpow.pop %v3099
      %v3101 = vmul.f32 %v3059, 1.442695
      %v3102 = vpow.pop %v3101
      %v3103 = vmul.f32 %v3060, 1.442695
      %v3104 = vpow.pop %v3103
      %v3105 = vmul.f32 %v3061, 1.442695
      %v3106 = vpow.pop %v3105
      %v3107 = vmul.f32 %v3062, 1.442695
      %v3108 = vpow.pop %v3107
      %v3109 = vmul.f32 %v3063, 1.442695
      %v3110 = vpow.pop %v3109
      %v3111 = vmul.f32 %v3064, 1.442695
      %v3112 = vpow.pop %v3111
      %v3113 = vmul.f32 %v3065, 1.442695
      %v3114 = vpow.pop %v3113
      %v3115 = vmul.f32 %v3066, 1.442695
      %v3116 = vpow.pop %v3115
      %v3117 = vmul.f32 %v3067, 1.442695
      %v3118 = vpow.pop %v3117
      %v3119 = vmul.f32 %v3068, 1.442695
      %v3120 = vpow.pop %v3119
      %v3121 = vmul.f32 %v3069, 1.442695
      %v3122 = vpow.pop %v3121
      %v3123 = vmul.f32 %v3070, 1.442695
      %v3124 = vpow.pop %v3123
      %v3125 = vmul.f32 %v3071, 1.442695
      %v3126 = vpow.pop %v3125
      %v3127 = vmul.f32 %v3072, 1.442695
      %v3128 = vpow.pop %v3127
      %v3129 = vmul.f32 %v3073, 1.442695
      %v3130 = vpow.pop %v3129
      %v3131 = vmul.f32 %v3074, 1.442695
      %v3132 = vpow.pop %v3131
      %v3133 = vmul.f32 %v3075, 1.442695
      %v3134 = vpow.pop %v3133
      %v3135 = vmul.f32 %v3076, 1.442695
      %v3136 = vpow.pop %v3135
      %v3137 = vmul.f32 %v3077, 1.442695
      %v3138 = vpow.pop %v3137
      %v3139 = vmul.f32 %v3078, 1.442695
      %v3140 = vpow.pop %v3139
      %v3141 = vmul.f32 %v3079, 1.442695
      %v3142 = vpow.pop %v3141
      %v3143 = vmul.f32 %v3080, 1.442695
      %v3144 = vpow.pop %v3143
      %v3145 = vadd.f32 %v3082, 1.0
      %v3146 = vadd.f32 %v3084, 1.0
      %v3147 = vadd.f32 %v3086, 1.0
      %v3148 = vadd.f32 %v3088, 1.0
      %v3149 = vadd.f32 %v3090, 1.0
      %v3150 = vadd.f32 %v3092, 1.0
      %v3151 = vadd.f32 %v3094, 1.0
      %v3152 = vadd.f32 %v3096, 1.0
      %v3153 = vadd.f32 %v3098, 1.0
      %v3154 = vadd.f32 %v3100, 1.0
      %v3155 = vadd.f32 %v3102, 1.0
      %v3156 = vadd.f32 %v3104, 1.0
      %v3157 = vadd.f32 %v3106, 1.0
      %v3158 = vadd.f32 %v3108, 1.0
      %v3159 = vadd.f32 %v3110, 1.0
      %v3160 = vadd.f32 %v3112, 1.0
      %v3161 = vadd.f32 %v3114, 1.0
      %v3162 = vadd.f32 %v3116, 1.0
      %v3163 = vadd.f32 %v3118, 1.0
      %v3164 = vadd.f32 %v3120, 1.0
      %v3165 = vadd.f32 %v3122, 1.0
      %v3166 = vadd.f32 %v3124, 1.0
      %v3167 = vadd.f32 %v3126, 1.0
      %v3168 = vadd.f32 %v3128, 1.0
      %v3169 = vadd.f32 %v3130, 1.0
      %v3170 = vadd.f32 %v3132, 1.0
      %v3171 = vadd.f32 %v3134, 1.0
      %v3172 = vadd.f32 %v3136, 1.0
      %v3173 = vadd.f32 %v3138, 1.0
      %v3174 = vadd.f32 %v3140, 1.0
      %v3175 = vadd.f32 %v3142, 1.0
      %v3176 = vadd.f32 %v3144, 1.0
      %v3177 = vrcp.pop %v3145
      %v3178 = vmul.f32 1.0, %v3177
      %v3179 = vrcp.pop %v3146
      %v3180 = vmul.f32 1.0, %v3179
      %v3181 = vrcp.pop %v3147
      %v3182 = vmul.f32 1.0, %v3181
      %v3183 = vrcp.pop %v3148
      %v3184 = vmul.f32 1.0, %v3183
      %v3185 = vrcp.pop %v3149
      %v3186 = vmul.f32 1.0, %v3185
      %v3187 = vrcp.pop %v3150
      %v3188 = vmul.f32 1.0, %v3187
      %v3189 = vrcp.pop %v3151
      %v3190 = vmul.f32 1.0, %v3189
      %v3191 = vrcp.pop %v3152
      %v3192 = vmul.f32 1.0, %v3191
      %v3193 = vrcp.pop %v3153
      %v3194 = vmul.f32 1.0, %v3193
      %v3195 = vrcp.pop %v3154
      %v3196 = vmul.f32 1.0, %v3195
      %v3197 = vrcp.pop %v3155
      %v3198 = vmul.f32 1.0, %v3197
      %v3199 = vrcp.pop %v3156
      %v3200 = vmul.f32 1.0, %v3199
      %v3201 = vrcp.pop %v3157
      %v3202 = vmul.f32 1.0, %v3201
      %v3203 = vrcp.pop %v3158
      %v3204 = vmul.f32 1.0, %v3203
      %v3205 = vrcp.pop %v3159
      %v3206 = vmul.f32 1.0, %v3205
      %v3207 = vrcp.pop %v3160
      %v3208 = vmul.f32 1.0, %v3207
      %v3209 = vrcp.pop %v3161
      %v3210 = vmul.f32 1.0, %v3209
      %v3211 = vrcp.pop %v3162
      %v3212 = vmul.f32 1.0, %v3211
      %v3213 = vrcp.pop %v3163
      %v3214 = vmul.f32 1.0, %v3213
      %v3215 = vrcp.pop %v3164
      %v3216 = vmul.f32 1.0, %v3215
      %v3217 = vrcp.pop %v3165
      %v3218 = vmul.f32 1.0, %v3217
      %v3219 = vrcp.pop %v3166
      %v3220 = vmul.f32 1.0, %v3219
      %v3221 = vrcp.pop %v3167
      %v3222 = vmul.f32 1.0, %v3221
      %v3223 = vrcp.pop %v3168
      %v3224 = vmul.f32 1.0, %v3223
      %v3225 = vrcp.pop %v3169
      %v3226 = vmul.f32 1.0, %v3225
      %v3227 = vrcp.pop %v3170
      %v3228 = vmul.f32 1.0, %v3227
      %v3229 = vrcp.pop %v3171
      %v3230 = vmul.f32 1.0, %v3229
      %v3231 = vrcp.pop %v3172
      %v3232 = vmul.f32 1.0, %v3231
      %v3233 = vrcp.pop %v3173
      %v3234 = vmul.f32 1.0, %v3233
      %v3235 = vrcp.pop %v3174
      %v3236 = vmul.f32 1.0, %v3235
      %v3237 = vrcp.pop %v3175
      %v3238 = vmul.f32 1.0, %v3237
      %v3239 = vrcp.pop %v3176
      %v3240 = vmul.f32 1.0, %v3239
      %v3241 = vmul.f32 %v3017, %v3178
      %v3242 = vmul.f32 %v3018, %v3180
      %v3243 = vmul.f32 %v3019, %v3182
      %v3244 = vmul.f32 %v3020, %v3184
      %v3245 = vmul.f32 %v3021, %v3186
      %v3246 = vmul.f32 %v3022, %v3188
      %v3247 = vmul.f32 %v3023, %v3190
      %v3248 = vmul.f32 %v3024, %v3192
      %v3249 = vmul.f32 %v3025, %v3194
      %v3250 = vmul.f32 %v3026, %v3196
      %v3251 = vmul.f32 %v3027, %v3198
      %v3252 = vmul.f32 %v3028, %v3200
      %v3253 = vmul.f32 %v3029, %v3202
      %v3254 = vmul.f32 %v3030, %v3204
      %v3255 = vmul.f32 %v3031, %v3206
      %v3256 = vmul.f32 %v3032, %v3208
      %v3257 = vmul.f32 %v3033, %v3210
      %v3258 = vmul.f32 %v3034, %v3212
      %v3259 = vmul.f32 %v3035, %v3214
      %v3260 = vmul.f32 %v3036, %v3216
      %v3261 = vmul.f32 %v3037, %v3218
      %v3262 = vmul.f32 %v3038, %v3220
      %v3263 = vmul.f32 %v3039, %v3222
      %v3264 = vmul.f32 %v3040, %v3224
      %v3265 = vmul.f32 %v3041, %v3226
      %v3266 = vmul.f32 %v3042, %v3228
      %v3267 = vmul.f32 %v3043, %v3230
      %v3268 = vmul.f32 %v3044, %v3232
      %v3269 = vmul.f32 %v3045, %v3234
      %v3270 = vmul.f32 %v3046, %v3236
      %v3271 = vmul.f32 %v3047, %v3238
      %v3272 = vmul.f32 %v3048, %v3240
      %v3273 = vpack.c.bf16 %v3242, %v3241
      %v3274 = vpack.c.bf16 %v3244, %v3243
      %v3275 = vpack.c.bf16 %v3246, %v3245
      %v3276 = vpack.c.bf16 %v3248, %v3247
      %v3277 = vpack.c.bf16 %v3250, %v3249
      %v3278 = vpack.c.bf16 %v3252, %v3251
      %v3279 = vpack.c.bf16 %v3254, %v3253
      %v3280 = vpack.c.bf16 %v3256, %v3255
      %v3281 = vpack.c.bf16 %v3258, %v3257
      %v3282 = vpack.c.bf16 %v3260, %v3259
      %v3283 = vpack.c.bf16 %v3262, %v3261
      %v3284 = vpack.c.bf16 %v3264, %v3263
      %v3285 = vpack.c.bf16 %v3266, %v3265
      %v3286 = vpack.c.bf16 %v3268, %v3267
      %v3287 = vpack.c.bf16 %v3270, %v3269
      %v3288 = vpack.c.bf16 %v3272, %v3271
      %v3305 = vunpack.c.l.b16 %v3273
      %v3306 = vunpack.c.h.b16 %v3273
      %v3307 = vunpack.c.l.b16 %v3274
      %v3308 = vunpack.c.h.b16 %v3274
      %v3309 = vunpack.c.l.b16 %v3275
      %v3310 = vunpack.c.h.b16 %v3275
      %v3311 = vunpack.c.l.b16 %v3276
      %v3312 = vunpack.c.h.b16 %v3276
      %v3313 = vunpack.c.l.b16 %v3277
      %v3314 = vunpack.c.h.b16 %v3277
      %v3315 = vunpack.c.l.b16 %v3278
      %v3316 = vunpack.c.h.b16 %v3278
      %v3317 = vunpack.c.l.b16 %v3279
      %v3318 = vunpack.c.h.b16 %v3279
      %v3319 = vunpack.c.l.b16 %v3280
      %v3320 = vunpack.c.h.b16 %v3280
      %v3321 = vunpack.c.l.b16 %v3281
      %v3322 = vunpack.c.h.b16 %v3281
      %v3323 = vunpack.c.l.b16 %v3282
      %v3324 = vunpack.c.h.b16 %v3282
      %v3325 = vunpack.c.l.b16 %v3283
      %v3326 = vunpack.c.h.b16 %v3283
      %v3327 = vunpack.c.l.b16 %v3284
      %v3328 = vunpack.c.h.b16 %v3284
      %v3329 = vunpack.c.l.b16 %v3285
      %v3330 = vunpack.c.h.b16 %v3285
      %v3331 = vunpack.c.l.b16 %v3286
      %v3332 = vunpack.c.h.b16 %v3286
      %v3333 = vunpack.c.l.b16 %v3287
      %v3334 = vunpack.c.h.b16 %v3287
      %v3335 = vunpack.c.l.b16 %v3288
      %v3336 = vunpack.c.h.b16 %v3288
      %v3337 = vpack.c.b16 %v3305, %v3305
      %v3338 = vpack.c.b16 %v3306, %v3306
      %v3339 = vpack.c.b16 %v3307, %v3307
      %v3340 = vpack.c.b16 %v3308, %v3308
      %v3341 = vpack.c.b16 %v3309, %v3309
      %v3342 = vpack.c.b16 %v3310, %v3310
      %v3343 = vpack.c.b16 %v3311, %v3311
      %v3344 = vpack.c.b16 %v3312, %v3312
      %v3345 = vpack.c.b16 %v3313, %v3313
      %v3346 = vpack.c.b16 %v3314, %v3314
      %v3347 = vpack.c.b16 %v3315, %v3315
      %v3348 = vpack.c.b16 %v3316, %v3316
      %v3349 = vpack.c.b16 %v3317, %v3317
      %v3350 = vpack.c.b16 %v3318, %v3318
      %v3351 = vpack.c.b16 %v3319, %v3319
      %v3352 = vpack.c.b16 %v3320, %v3320
      %v3353 = vpack.c.b16 %v3321, %v3321
      %v3354 = vpack.c.b16 %v3322, %v3322
      %v3355 = vpack.c.b16 %v3323, %v3323
      %v3356 = vpack.c.b16 %v3324, %v3324
      %v3357 = vpack.c.b16 %v3325, %v3325
      %v3358 = vpack.c.b16 %v3326, %v3326
      %v3359 = vpack.c.b16 %v3327, %v3327
      %v3360 = vpack.c.b16 %v3328, %v3328
      %v3361 = vpack.c.b16 %v3329, %v3329
      %v3362 = vpack.c.b16 %v3330, %v3330
      %v3363 = vpack.c.b16 %v3331, %v3331
      %v3364 = vpack.c.b16 %v3332, %v3332
      %v3365 = vpack.c.b16 %v3333, %v3333
      %v3366 = vpack.c.b16 %v3334, %v3334
      %v3367 = vpack.c.b16 %v3335, %v3335
      %v3368 = vpack.c.b16 %v3336, %v3336
      %3401 = vst [vmem:[%s262] sm:$0xf] %v3337
      %3402 = vst [vmem:[%s262 + $0x4] sm:$0xf] %v3338
      %3403 = vst [vmem:[%s262 + $0x8] sm:$0xf] %v3339
      %3404 = vst [vmem:[%s262 + $0xc] sm:$0xf] %v3340
      %3405 = vst [vmem:[%s262 + $0x10] sm:$0xf] %v3341
      %3406 = vst [vmem:[%s262 + $0x14] sm:$0xf] %v3342
      %3407 = vst [vmem:[%s262 + $0x18] sm:$0xf] %v3343
      %3408 = vst [vmem:[%s262 + $0x1c] sm:$0xf] %v3344
      %3409 = vst [vmem:[%s262 + $0x20] sm:$0xf] %v3345
      %3410 = vst [vmem:[%s262 + $0x24] sm:$0xf] %v3346
      %3411 = vst [vmem:[%s262 + $0x28] sm:$0xf] %v3347
      %3412 = vst [vmem:[%s262 + $0x2c] sm:$0xf] %v3348
      %3413 = vst [vmem:[%s262 + $0x30] sm:$0xf] %v3349
      %3414 = vst [vmem:[%s262 + $0x34] sm:$0xf] %v3350
      %3415 = vst [vmem:[%s262 + $0x38] sm:$0xf] %v3351
      %3416 = vst [vmem:[%s262 + $0x3c] sm:$0xf] %v3352
      %3417 = vst [vmem:[%s262 + $0x40] sm:$0xf] %v3353
      %3418 = vst [vmem:[%s262 + $0x44] sm:$0xf] %v3354
      %3419 = vst [vmem:[%s262 + $0x48] sm:$0xf] %v3355
      %3420 = vst [vmem:[%s262 + $0x4c] sm:$0xf] %v3356
      %3421 = vst [vmem:[%s262 + $0x50] sm:$0xf] %v3357
      %3422 = vst [vmem:[%s262 + $0x54] sm:$0xf] %v3358
      %3423 = vst [vmem:[%s262 + $0x58] sm:$0xf] %v3359
      %3424 = vst [vmem:[%s262 + $0x5c] sm:$0xf] %v3360
      %3425 = vst [vmem:[%s262 + $0x60] sm:$0xf] %v3361
      %3426 = vst [vmem:[%s262 + $0x64] sm:$0xf] %v3362
      %3427 = vst [vmem:[%s262 + $0x68] sm:$0xf] %v3363
      %3428 = vst [vmem:[%s262 + $0x6c] sm:$0xf] %v3364
      %3429 = vst [vmem:[%s262 + $0x70] sm:$0xf] %v3365
      %3430 = vst [vmem:[%s262 + $0x74] sm:$0xf] %v3366
      %3431 = vst [vmem:[%s262 + $0x78] sm:$0xf] %v3367
      %3432 = vst [vmem:[%s262 + $0x7c] sm:$0xf] %v3368
      %p3433 = scmp.lt.s32.totalorder %s20, 1
      %s3434 = scalar_select %p3433, %s20, 1
      %p3435 = scmp.lt.s32.totalorder %s19, 0
      %s3436 = scalar_select %p3435, %s19, 0
      %s3437 = smul.addr %s3434, 32
      %s3438 = sadd.s32 %s3436, %s3437
      %s3439 = smul.addr %s3438, 4
      %s3440 = scalar_lea.vmem %s4, %s3439
      // Predicated region
      $region37: #{conv_bn_silu.1} parent=35 // pred_check
        %p3441 = pneg %p151
      $region38: #{conv_bn_silu.1} parent=35 // pred_check_branch
        %3443 = sbr.rel (%p3441) target = $region40
      $region39: #{conv_bn_silu.1} parent=35 // pred_region
        _
      $region40: #{conv_bn_silu.1} parent=35 // pred_fallthru
        _
    $region36: #{conv_bn_silu.1} parent=5 // pred_fallthru
      _
    %p3444 = scmp.le.s32.totalorder 2, %s10
    // Predicated region
    $region41: #{conv_bn_silu.1} parent=5 // pred_check
      %p3445 = pneg %p3444
    $region42: #{conv_bn_silu.1} parent=5 // pred_check_branch
      %3447 = sbr.rel (%p3445) target = $region44
    $region43: #{conv_bn_silu.1} parent=5 // pred_region
      %s3448 = ssub.s32 %s10, 2
      // Predicated region
      $region45: #{conv_bn_silu.1} parent=43 // pred_check
        %p3449 = pneg %p157
      $region46: #{conv_bn_silu.1} parent=43 // pred_check_branch
        %3451 = sbr.rel (%p3449) target = $region48
      $region47: #{conv_bn_silu.1} parent=43 // pred_region
        %p3452 = scmp.lt.s32.totalorder %s22, 1
        %s3453 = scalar_select %p3452, %s22, 1
        %p3454 = scmp.lt.s32.totalorder %s21, 0
        %s3455 = scalar_select %p3454, %s21, 0
        %s3456 = smul.addr %s3453, 32
        %s3457 = sadd.s32 %s3455, %s3456
        %s3458 = smul.addr %s3457, 4
        %s3459 = scalar_lea.vmem %s4, %s3458
      $region48: #{conv_bn_silu.1} parent=43 // pred_fallthru
        _
    $region44: #{conv_bn_silu.1} parent=5 // pred_fallthru
      _
  $region6: #{conv_bn_silu.1} parent=0 // loop_footer
    %s14 = sadd.s32 1, %s10
  $region7: #{conv_bn_silu.1} parent=0 // loop_footer_branch
    %9 = sbr.rel target = $region3
  $region8: #{conv_bn_silu.1} parent=0 // loop_exit
    _

</llo_original>
